<compile_context>
chip_gen: v6e
topology: v6e:2x2x1
jax: 0.10.0
libtpu: 0.0.40
codegen_flags: <defaults>
</compile_context>

<pallas_src>
import jax
import jax.numpy as jnp
from jax.experimental import pallas as pl
from jax.experimental.pallas import tpu as pltpu


def mlp_kernel(x_ref, w1_ref, b1_ref, w2_ref, b2_ref, w3_ref, b3_ref,
               w4_ref, b4_ref, o_ref):
    # Layer 1: bf16 MXU matmul with f32 accumulation; bias + ReLU in f32 on the
    # VPU; cast to bf16 *before* the value spills to VMEM between layers.
    h = jnp.dot(x_ref[...], w1_ref[...], preferred_element_type=jnp.float32)
    h = jnp.maximum(h + b1_ref[...], 0.0).astype(jnp.bfloat16)

    # Layer 2.
    h = jnp.dot(h, w2_ref[...], preferred_element_type=jnp.float32)
    h = jnp.maximum(h + b2_ref[...], 0.0).astype(jnp.bfloat16)

    # Layer 3.
    h = jnp.dot(h, w3_ref[...], preferred_element_type=jnp.float32)
    h = jnp.maximum(h + b3_ref[...], 0.0).astype(jnp.bfloat16)

    # Layer 4 (out_features == 1): on the MXU — it is idle here, the VPU/vst
    # slots are not.  N=1 "waste" is irrelevant when the MXU isn't the bottleneck.
    z = jnp.dot(h, w4_ref[...], preferred_element_type=jnp.float32)   # (tile_m, 1)
    o_ref[...] = jax.nn.sigmoid(z + b4_ref[...]).astype(o_ref.dtype)


def _round_up(n, m):
    return ((n + m - 1) // m) * m


def _choose_tiling(B):
    """Pad the batch to a multiple of 128 (minimal lane/sublane-friendly padding)
    and pick tile_m = largest 128-multiple (<= 512) dividing B_p that still
    leaves >= 2 grid steps (v7x 2-TC balance + cross-step DMA overlap)."""
    B_p = _round_up(max(B, 1), 128)
    n = B_p // 128
    if n == 1:
        return B_p, 128
    for t in (4, 3, 2, 1):          # tile_m = t * 128, capped at 512
        if n % t == 0 and n // t >= 2:
            return B_p, t * 128
    return B_p, 128


def mlp_forward(x, params):
    """x: (B, in_features) float32. params: dict of pre-transposed weights/biases."""
    B, in_features = x.shape
    H = params["w1"].shape[1]

    # ---- wrapper-side layout plumbing (free) --------------------------------
    in_p = _round_up(in_features, 128)        # lane-dense layer-1 operands
    B_p, tile_m = _choose_tiling(B)

    x_p = jnp.zeros((B_p, in_p), jnp.bfloat16)
    x_p = x_p.at[:B, :in_features].set(x.astype(jnp.bfloat16))

    w1 = jnp.zeros((in_p, H), jnp.bfloat16).at[:in_features].set(
        params["w1"].astype(jnp.bfloat16))
    w2 = params["w2"].astype(jnp.bfloat16)
    w3 = params["w3"].astype(jnp.bfloat16)
    w4 = params["w4"].reshape(H, 1).astype(jnp.bfloat16)     # (H, 1) for the MXU
    b1, b2, b3 = params["b1"], params["b2"], params["b3"]
    b4 = params["b4"].reshape(1, 1)

    grid = (B_p // tile_m,)

    # Grid-invariant operands: same block every step -> DMA'd into VMEM once.
    # Buffered(1): no point double-buffering blocks that never change (halves
    # the weight VMEM footprint — relevant on v7x at larger hidden sizes).
    def rep(shape):
        return pl.BlockSpec(shape, lambda i: (0, 0), pipeline_mode=pl.Buffered(1))

    weight_bytes = (w1.size + w2.size + w3.size + w4.size) * 2
    bias_bytes = (b1.size + b2.size + b3.size + b4.size) * 4
    flops = 2 * B_p * (in_p * H + 2 * H * H + H)
    bytes_accessed = x_p.size * 2 + weight_bytes + bias_bytes + B_p * 4

    # Explicit VMEM budget: double-buffered x + output, single-buffered
    # weights/biases, bf16 inter-layer spill, plus generous slack.
    vmem_est = (2 * tile_m * in_p * 2 + weight_bytes + bias_bytes
                + 2 * tile_m * 4 + 4 * tile_m * H * 2)
    vmem_limit = int(min(100 << 20, max(16 << 20, 2 * vmem_est)))

    out = pl.pallas_call(
        mlp_kernel,
        out_shape=jax.ShapeDtypeStruct((B_p, 1), jnp.float32),
        grid_spec=pltpu.PrefetchScalarGridSpec(
            num_scalar_prefetch=0,
            grid=grid,
            in_specs=[
                pl.BlockSpec((tile_m, in_p), lambda i: (i, 0)),   # x: batch-tiled
                rep(w1.shape), rep(b1.shape),
                rep(w2.shape), rep(b2.shape),
                rep(w3.shape), rep(b3.shape),
                rep(w4.shape), rep(b4.shape),
            ],
            out_specs=pl.BlockSpec((tile_m, 1), lambda i: (i, 0)),
        ),
        compiler_params=pltpu.CompilerParams(
            dimension_semantics=("parallel",),     # batch tiles shard across TCs
            vmem_limit_bytes=vmem_limit),
        cost_estimate=pl.CostEstimate(
            flops=flops, transcendentals=B_p, bytes_accessed=bytes_accessed),
    )(x_p, w1, b1, w2, b2, w3, b3, w4, b4)

    return out[:B]


def init_params(key, in_features, hidden_features):
    """Deterministic init mimicking nn.Linear default (uniform +/- 1/sqrt(fan_in)).
    Weights stored as (in_dim, out_dim) — i.e. PyTorch weight transposed."""
    def linear(key, fan_in, fan_out):
        kw, kb = jax.random.split(key)
        bound = 1.0 / jnp.sqrt(fan_in)
        w = jax.random.uniform(kw, (fan_in, fan_out), jnp.float32, -bound, bound)
        b = jax.random.uniform(kb, (1, fan_out), jnp.float32, -bound, bound)
        return w, b

    k1, k2, k3, k4 = jax.random.split(key, 4)
    w1, b1 = linear(k1, in_features, hidden_features)
    w2, b2 = linear(k2, hidden_features, hidden_features)
    w3, b3 = linear(k3, hidden_features, hidden_features)
    w4, b4 = linear(k4, hidden_features, 1)
    return dict(w1=w1, b1=b1, w2=w2, b2=b2, w3=w3, b3=b3, w4=w4, b4=b4)


def mlp_reference(x, p):
    """Plain-JAX reference using the same bf16 operands / f32 accumulation."""
    bf = lambda a: a.astype(jnp.bfloat16)
    h = jnp.maximum(
        jnp.dot(bf(x), bf(p["w1"]), preferred_element_type=jnp.float32) + p["b1"], 0.0)
    h = jnp.maximum(
        jnp.dot(bf(h), bf(p["w2"]), preferred_element_type=jnp.float32) + p["b2"], 0.0)
    h = jnp.maximum(
        jnp.dot(bf(h), bf(p["w3"]), preferred_element_type=jnp.float32) + p["b3"], 0.0)
    z = jnp.dot(bf(h), bf(p["w4"]), preferred_element_type=jnp.float32) + p["b4"]
    return jax.nn.sigmoid(z)


if __name__ == "__main__":
    key = jax.random.PRNGKey(0)
    k_params, k_x = jax.random.split(key)

    batch = 300            # not a multiple of 128: exercises padding (-> 384, grid=3)
    in_features = 32
    hidden_features = 512  # matches the nn.Module default

    params = init_params(k_params, in_features, hidden_features)
    x = jax.random.normal(k_x, (batch, in_features), jnp.float32)

    out = jax.block_until_ready(mlp_forward(x, params))
    ref = mlp_reference(x, params)

    assert out.shape == (batch, 1), out.shape
    assert jnp.allclose(out, ref, atol=3e-3, rtol=1e-3), (
        "max abs err", float(jnp.max(jnp.abs(out - ref))))

    print("KERNEL_OK")
</pallas_src>

<mosaic_0001>
module attributes {stable_mosaic.version = 11 : i64} {
  func.func @mlp_kernel(%arg0: i32, %arg1: memref<128x128xbf16, #tpu.memory_space<vmem>>, %arg2: memref<128x512xbf16, #tpu.memory_space<vmem>>, %arg3: memref<1x512xf32, #tpu.memory_space<vmem>>, %arg4: memref<512x512xbf16, #tpu.memory_space<vmem>>, %arg5: memref<1x512xf32, #tpu.memory_space<vmem>>, %arg6: memref<512x512xbf16, #tpu.memory_space<vmem>>, %arg7: memref<1x512xf32, #tpu.memory_space<vmem>>, %arg8: memref<512x1xbf16, #tpu.memory_space<vmem>>, %arg9: memref<1x1xf32, #tpu.memory_space<vmem>>, %arg10: memref<128x1xf32, #tpu.memory_space<vmem>>) attributes {dimension_semantics = [#tpu.dimension_semantics<parallel>], iteration_bounds = array<i64: 3>, scalar_prefetch = 0 : i64, scratch_operands = 0 : i64, tpu.core_type = #tpu.core_type<tc>, window_params = [{transform_indices = @transform_0, window_bounds = array<i64: 128, 128>}, {pipeline_mode = #tpu.pipeline_mode<synchronous>, transform_indices = @transform_1, window_bounds = array<i64: 128, 512>}, {pipeline_mode = #tpu.pipeline_mode<synchronous>, transform_indices = @transform_2, window_bounds = array<i64: 1, 512>}, {pipeline_mode = #tpu.pipeline_mode<synchronous>, transform_indices = @transform_3, window_bounds = array<i64: 512, 512>}, {pipeline_mode = #tpu.pipeline_mode<synchronous>, transform_indices = @transform_4, window_bounds = array<i64: 1, 512>}, {pipeline_mode = #tpu.pipeline_mode<synchronous>, transform_indices = @transform_5, window_bounds = array<i64: 512, 512>}, {pipeline_mode = #tpu.pipeline_mode<synchronous>, transform_indices = @transform_6, window_bounds = array<i64: 1, 512>}, {pipeline_mode = #tpu.pipeline_mode<synchronous>, transform_indices = @transform_7, window_bounds = array<i64: 512, 1>}, {pipeline_mode = #tpu.pipeline_mode<synchronous>, transform_indices = @transform_8, window_bounds = array<i64: 1, 1>}, {transform_indices = @transform_9, window_bounds = array<i64: 128, 1>}]} {
    %c0 = arith.constant 0 : index
    %c0_0 = arith.constant 0 : index
    %0 = vector.load %arg1[%c0, %c0_0] : memref<128x128xbf16, #tpu.memory_space<vmem>>, vector<128x128xbf16>
    %c0_1 = arith.constant 0 : index
    %c0_2 = arith.constant 0 : index
    %1 = vector.load %arg2[%c0_1, %c0_2] : memref<128x512xbf16, #tpu.memory_space<vmem>>, vector<128x512xbf16>
    %cst = arith.constant dense<0.000000e+00> : vector<128x512xf32>
    %2 = tpu.matmul %0, %1, %cst {dimension_numbers = #tpu.dot_dimension_numbers<[1], [0], [0], [1], [0, 0, 1, 1], [], []>} : vector<128x128xbf16>, vector<128x512xbf16>, vector<128x512xf32> -> vector<128x512xf32>
    %c0_3 = arith.constant 0 : index
    %c0_4 = arith.constant 0 : index
    %3 = vector.load %arg3[%c0_3, %c0_4] : memref<1x512xf32, #tpu.memory_space<vmem>>, vector<1x512xf32>
    %4 = vector.broadcast %3 : vector<1x512xf32> to vector<128x512xf32>
    %5 = arith.addf %2, %4 : vector<128x512xf32>
    %cst_5 = arith.constant 0.000000e+00 : f32
    %6 = vector.broadcast %cst_5 : f32 to vector<128x512xf32>
    %7 = arith.maximumf %5, %6 : vector<128x512xf32>
    %8 = arith.truncf %7 : vector<128x512xf32> to vector<128x512xbf16>
    %c0_6 = arith.constant 0 : index
    %c0_7 = arith.constant 0 : index
    %9 = vector.load %arg4[%c0_6, %c0_7] : memref<512x512xbf16, #tpu.memory_space<vmem>>, vector<512x512xbf16>
    %cst_8 = arith.constant dense<0.000000e+00> : vector<128x512xf32>
    %10 = tpu.matmul %8, %9, %cst_8 {dimension_numbers = #tpu.dot_dimension_numbers<[1], [0], [0], [1], [0, 0, 1, 1], [], []>} : vector<128x512xbf16>, vector<512x512xbf16>, vector<128x512xf32> -> vector<128x512xf32>
    %c0_9 = arith.constant 0 : index
    %c0_10 = arith.constant 0 : index
    %11 = vector.load %arg5[%c0_9, %c0_10] : memref<1x512xf32, #tpu.memory_space<vmem>>, vector<1x512xf32>
    %12 = vector.broadcast %11 : vector<1x512xf32> to vector<128x512xf32>
    %13 = arith.addf %10, %12 : vector<128x512xf32>
    %cst_11 = arith.constant 0.000000e+00 : f32
    %14 = vector.broadcast %cst_11 : f32 to vector<128x512xf32>
    %15 = arith.maximumf %13, %14 : vector<128x512xf32>
    %16 = arith.truncf %15 : vector<128x512xf32> to vector<128x512xbf16>
    %c0_12 = arith.constant 0 : index
    %c0_13 = arith.constant 0 : index
    %17 = vector.load %arg6[%c0_12, %c0_13] : memref<512x512xbf16, #tpu.memory_space<vmem>>, vector<512x512xbf16>
    %cst_14 = arith.constant dense<0.000000e+00> : vector<128x512xf32>
    %18 = tpu.matmul %16, %17, %cst_14 {dimension_numbers = #tpu.dot_dimension_numbers<[1], [0], [0], [1], [0, 0, 1, 1], [], []>} : vector<128x512xbf16>, vector<512x512xbf16>, vector<128x512xf32> -> vector<128x512xf32>
    %c0_15 = arith.constant 0 : index
    %c0_16 = arith.constant 0 : index
    %19 = vector.load %arg7[%c0_15, %c0_16] : memref<1x512xf32, #tpu.memory_space<vmem>>, vector<1x512xf32>
    %20 = vector.broadcast %19 : vector<1x512xf32> to vector<128x512xf32>
    %21 = arith.addf %18, %20 : vector<128x512xf32>
    %cst_17 = arith.constant 0.000000e+00 : f32
    %22 = vector.broadcast %cst_17 : f32 to vector<128x512xf32>
    %23 = arith.maximumf %21, %22 : vector<128x512xf32>
    %24 = arith.truncf %23 : vector<128x512xf32> to vector<128x512xbf16>
    %c0_18 = arith.constant 0 : index
    %c0_19 = arith.constant 0 : index
    %25 = vector.load %arg8[%c0_18, %c0_19] : memref<512x1xbf16, #tpu.memory_space<vmem>>, vector<512x1xbf16>
    %cst_20 = arith.constant dense<0.000000e+00> : vector<128x1xf32>
    %26 = tpu.matmul %24, %25, %cst_20 {dimension_numbers = #tpu.dot_dimension_numbers<[1], [0], [0], [1], [0, 0, 1, 1], [], []>} : vector<128x512xbf16>, vector<512x1xbf16>, vector<128x1xf32> -> vector<128x1xf32>
    %c0_21 = arith.constant 0 : index
    %c0_22 = arith.constant 0 : index
    %27 = vector.load %arg9[%c0_21, %c0_22] : memref<1x1xf32, #tpu.memory_space<vmem>>, vector<1x1xf32>
    %28 = vector.broadcast %27 : vector<1x1xf32> to vector<128x1xf32>
    %29 = arith.addf %26, %28 : vector<128x1xf32>
    %30 = arith.negf %29 : vector<128x1xf32>
    %31 = math.exp %30 : vector<128x1xf32>
    %cst_23 = arith.constant 1.000000e+00 : f32
    %32 = vector.broadcast %cst_23 : f32 to vector<128x1xf32>
    %33 = arith.addf %32, %31 : vector<128x1xf32>
    %34 = arith.divf %32, %33 : vector<128x1xf32>
    %c0_24 = arith.constant 0 : index
    %c0_25 = arith.constant 0 : index
    %35 = vector.load %arg10[%c0_24, %c0_25] : memref<128x1xf32, #tpu.memory_space<vmem>>, vector<128x1xf32>
    tpu.vector_store %arg10[%c0_24, %c0_25], %34 {strides = array<i32>} : memref<128x1xf32, #tpu.memory_space<vmem>>, vector<128x1xf32>,
    return
  }
  func.func @transform_0(%arg0: i32) -> (i32, i32) {
    %c0_i32 = arith.constant 0 : i32
    %c0_i32_0 = arith.constant 0 : i32
    return %arg0, %c0_i32 : i32, i32
  }
  func.func @transform_1(%arg0: i32) -> (i32, i32) {
    %c0_i32 = arith.constant 0 : i32
    %c0_i32_0 = arith.constant 0 : i32
    %c0_i32_1 = arith.constant 0 : i32
    return %c0_i32, %c0_i32_0 : i32, i32
  }
  func.func @transform_2(%arg0: i32) -> (i32, i32) {
    %c0_i32 = arith.constant 0 : i32
    %c0_i32_0 = arith.constant 0 : i32
    %c0_i32_1 = arith.constant 0 : i32
    return %c0_i32, %c0_i32_0 : i32, i32
  }
  func.func @transform_3(%arg0: i32) -> (i32, i32) {
    %c0_i32 = arith.constant 0 : i32
    %c0_i32_0 = arith.constant 0 : i32
    %c0_i32_1 = arith.constant 0 : i32
    return %c0_i32, %c0_i32_0 : i32, i32
  }
  func.func @transform_4(%arg0: i32) -> (i32, i32) {
    %c0_i32 = arith.constant 0 : i32
    %c0_i32_0 = arith.constant 0 : i32
    %c0_i32_1 = arith.constant 0 : i32
    return %c0_i32, %c0_i32_0 : i32, i32
  }
  func.func @transform_5(%arg0: i32) -> (i32, i32) {
    %c0_i32 = arith.constant 0 : i32
    %c0_i32_0 = arith.constant 0 : i32
    %c0_i32_1 = arith.constant 0 : i32
    return %c0_i32, %c0_i32_0 : i32, i32
  }
  func.func @transform_6(%arg0: i32) -> (i32, i32) {
    %c0_i32 = arith.constant 0 : i32
    %c0_i32_0 = arith.constant 0 : i32
    %c0_i32_1 = arith.constant 0 : i32
    return %c0_i32, %c0_i32_0 : i32, i32
  }
  func.func @transform_7(%arg0: i32) -> (i32, i32) {
    %c0_i32 = arith.constant 0 : i32
    %c0_i32_0 = arith.constant 0 : i32
    %c0_i32_1 = arith.constant 0 : i32
    return %c0_i32, %c0_i32_0 : i32, i32
  }
  func.func @transform_8(%arg0: i32) -> (i32, i32) {
    %c0_i32 = arith.constant 0 : i32
    %c0_i32_0 = arith.constant 0 : i32
    %c0_i32_1 = arith.constant 0 : i32
    return %c0_i32, %c0_i32_0 : i32, i32
  }
  func.func @transform_9(%arg0: i32) -> (i32, i32) {
    %c0_i32 = arith.constant 0 : i32
    %c0_i32_0 = arith.constant 0 : i32
    return %arg0, %c0_i32 : i32, i32
  }
}

</mosaic_0001>

<llo_original>
// kernel: tpu_custom_call.1
$region0: #{tpu_custom_call.1}
  #allocation0 [shape = 'u32[]', space=smem, size = 0x4, offset = 0x4, fixed_abs, tag = 'smem constant byte address 0x4 - core index']
  #allocation1 [shape = 'u32[144,128]{1,0:T(1,128)}', space=vmem, size = 0x12000, scoped, tag = 'internal scratch']
  #allocation2 [shape = 'f32[1,1]{1,0:T(1,128)S(1)}', space=vmem, size = 0x200, scoped, tag = 'scoped memory for tpu_custom_call.1']
  %s0 = inlined_call_operand.hbm [shape: bf16[384,128], index: 0, kind: input, shape index: {}]
  %s1 = inlined_call_operand.vmem [shape: bf16[128,512], index: 1, kind: input, shape index: {}]
  %s2 = inlined_call_operand.vmem [shape: f32[1,512], index: 2, kind: input, shape index: {}]
  %s3 = inlined_call_operand.hbm [shape: bf16[512,512], index: 3, kind: input, shape index: {}]
  %s4 = inlined_call_operand.vmem [shape: f32[1,512], index: 4, kind: input, shape index: {}]
  %s5 = inlined_call_operand.hbm [shape: bf16[512,512], index: 5, kind: input, shape index: {}]
  %s6 = inlined_call_operand.vmem [shape: f32[1,512], index: 6, kind: input, shape index: {}]
  %s7 = inlined_call_operand.vmem [shape: bf16[512,1], index: 7, kind: input, shape index: {}]
  %s8 = inlined_call_operand.<no memory space> [shape: f32[1,1], index: 8, kind: input, shape index: {}]
  %s9 = inlined_call_operand.vmem [shape: f32[384,1], index: 9, kind: output, shape index: {}]
  %s10 = sld [smem:[#allocation0]]
  $region81: #{tpu_custom_call.1} parent=0
    _
  %s12 = ssub.s32 1, %s10
  %s13 = scalar_select 0, %s12, %s10
  %v14 = vstv %s8
  %15 = vst [vmem:[#allocation2] sm:$0x1] %v14
  $region1: #{tpu_custom_call.1} parent=0
    #allocation3 [shape = 'u8[65536]{0}', space=vmem, size = 0x10000, scoped, tag = 'input window, operand 0']
    #allocation4 [shape = 's32[2]{0}', space=sflag, size = 0x8, scoped, tag = 'scoped memory for tpu_custom_call.1']
    #allocation5 [shape = 'u8[524288]{0}', space=vmem, size = 0x80000, scoped, tag = 'input window, operand 3, single buffered']
    #allocation6 [shape = 's32[1]{0}', space=sflag, size = 0x4, scoped, tag = 'scoped memory for tpu_custom_call.1']
    #allocation7 [shape = 'u8[524288]{0}', space=vmem, size = 0x80000, scoped, tag = 'input window, operand 5, single buffered']
    %16 = vsyncpa [#allocation4], 0
    %s17 = scalar_lea.sflag [#allocation4], 1
    %18 = vsyncpa %s17, 0
    %19 = vsyncpa [#allocation6], 0
    loop: start=0, step=1, limit=5
    $region2: #{tpu_custom_call.1} parent=1 // loop_pre_header
      _
    $region3: #{tpu_custom_call.1} parent=1 // loop_header
      %s21 = sphi 0, %s25
      %p22 = scmp.ge.s32.totalorder %s21, 5
      %s31 = sphi 0, %s33
      %s34 = sphi 0, %s31
      %s35 = sphi 0, %s34
      %s51 = sphi 0, %s35
      %s55 = sphi 0, %s55
      %s57 = sphi 0, %s55
      %s58 = sphi 0, %s57
      %s72 = sphi 0, %s58
      %s76 = sphi 0, %s76
      %s78 = sphi 0, %s76
      %s79 = sphi 0, %s78
      %s93 = sphi 0, %s79
      %s97 = sphi 0, %s97
      %s99 = sphi 0, %s97
      %s100 = sphi 0, %s99
      %s114 = sphi 0, %s100
      %s118 = sphi 0, %s118
      %s120 = sphi 0, %s118
      %s121 = sphi 0, %s120
      %s135 = sphi 0, %s121
      %s139 = sphi 0, %s139
      %s141 = sphi 0, %s139
      %s142 = sphi 0, %s141
      %s156 = sphi 0, %s142
      %s160 = sphi 0, %s160
      %s162 = sphi 0, %s160
      %s163 = sphi 0, %s162
      %s177 = sphi 0, %s163
      %s181 = sphi 0, %s181
      %s183 = sphi 0, %s181
      %s184 = sphi 0, %s183
      %s198 = sphi 0, %s184
      %s202 = sphi 0, %s202
      %s204 = sphi 0, %s202
      %s205 = sphi 0, %s204
      %s219 = sphi 0, %s205
      %s225 = sphi 0, %s227
      %s228 = sphi 0, %s225
      %s229 = sphi 0, %s228
      %s245 = sphi 0, %s229
    $region4: #{tpu_custom_call.1} parent=1 // loop_header_branch
      %24 = sbr.rel (%p22) target = $region8
    $region5: #{tpu_custom_call.1} parent=1 // loop_body
      %s26 = ssub.s32 %s21, 1
      %s27 = ssub.s32 %s21, 2
      %s28 = sadd.s32 %s21, 1
      %s29 = ssub.s32 %s21, %s28
      %p30 = scmp.eq.s32.totalorder %s29, 0
      %s32 = sadd.s32 %s31, 1
      %s33 = scalar_select %p30, %s31, %s32
      %p36 = pneg %p30
      %p37 = scmp.eq.s32.totalorder %s21, 2
      %p38 = por %p36, %p37
      %p39 = scmp.ne.s32.totalorder %s31, %s34
      %p40 = scmp.eq.s32.totalorder %s21, 0
      %p41 = por %p39, %p40
      %p42 = scmp.ne.s32.totalorder %s31, %s34
      %p43 = scmp.eq.s32.totalorder %s26, 2
      %p44 = por %p42, %p43
      %p45 = scmp.ne.s32.totalorder %s34, %s35
      %p46 = scmp.eq.s32.totalorder %s26, 0
      %p47 = por %p45, %p46
      %p48 = scmp.ne.s32.totalorder %s34, %s35
      %p49 = scmp.eq.s32.totalorder %s27, 2
      %p50 = por %p48, %p49
      %p52 = scmp.ne.s32.totalorder %s35, %s51
      %p53 = scmp.eq.s32.totalorder %s27, 0
      %p54 = por %p52, %p53
      %s56 = sadd.s32 %s55, 1
      %p59 = scmp.eq.s32.totalorder %s21, 2
      %p60 = scmp.ne.s32.totalorder %s55, %s57
      %p61 = scmp.eq.s32.totalorder %s21, 0
      %p62 = por %p60, %p61
      %p63 = scmp.ne.s32.totalorder %s55, %s57
      %p64 = scmp.eq.s32.totalorder %s26, 2
      %p65 = por %p63, %p64
      %p66 = scmp.ne.s32.totalorder %s57, %s58
      %p67 = scmp.eq.s32.totalorder %s26, 0
      %p68 = por %p66, %p67
      %p69 = scmp.ne.s32.totalorder %s57, %s58
      %p70 = scmp.eq.s32.totalorder %s27, 2
      %p71 = por %p69, %p70
      %p73 = scmp.ne.s32.totalorder %s58, %s72
      %p74 = scmp.eq.s32.totalorder %s27, 0
      %p75 = por %p73, %p74
      %s77 = sadd.s32 %s76, 1
      %p80 = scmp.eq.s32.totalorder %s21, 2
      %p81 = scmp.ne.s32.totalorder %s76, %s78
      %p82 = scmp.eq.s32.totalorder %s21, 0
      %p83 = por %p81, %p82
      %p84 = scmp.ne.s32.totalorder %s76, %s78
      %p85 = scmp.eq.s32.totalorder %s26, 2
      %p86 = por %p84, %p85
      %p87 = scmp.ne.s32.totalorder %s78, %s79
      %p88 = scmp.eq.s32.totalorder %s26, 0
      %p89 = por %p87, %p88
      %p90 = scmp.ne.s32.totalorder %s78, %s79
      %p91 = scmp.eq.s32.totalorder %s27, 2
      %p92 = por %p90, %p91
      %p94 = scmp.ne.s32.totalorder %s79, %s93
      %p95 = scmp.eq.s32.totalorder %s27, 0
      %p96 = por %p94, %p95
      %s98 = sadd.s32 %s97, 1
      %p101 = scmp.eq.s32.totalorder %s21, 2
      %p102 = scmp.ne.s32.totalorder %s97, %s99
      %p103 = scmp.eq.s32.totalorder %s21, 0
      %p104 = por %p102, %p103
      %p105 = scmp.ne.s32.totalorder %s97, %s99
      %p106 = scmp.eq.s32.totalorder %s26, 2
      %p107 = por %p105, %p106
      %p108 = scmp.ne.s32.totalorder %s99, %s100
      %p109 = scmp.eq.s32.totalorder %s26, 0
      %p110 = por %p108, %p109
      %p111 = scmp.ne.s32.totalorder %s99, %s100
      %p112 = scmp.eq.s32.totalorder %s27, 2
      %p113 = por %p111, %p112
      %p115 = scmp.ne.s32.totalorder %s100, %s114
      %p116 = scmp.eq.s32.totalorder %s27, 0
      %p117 = por %p115, %p116
      %s119 = sadd.s32 %s118, 1
      %p122 = scmp.eq.s32.totalorder %s21, 2
      %p123 = scmp.ne.s32.totalorder %s118, %s120
      %p124 = scmp.eq.s32.totalorder %s21, 0
      %p125 = por %p123, %p124
      %p126 = scmp.ne.s32.totalorder %s118, %s120
      %p127 = scmp.eq.s32.totalorder %s26, 2
      %p128 = por %p126, %p127
      %p129 = scmp.ne.s32.totalorder %s120, %s121
      %p130 = scmp.eq.s32.totalorder %s26, 0
      %p131 = por %p129, %p130
      %p132 = scmp.ne.s32.totalorder %s120, %s121
      %p133 = scmp.eq.s32.totalorder %s27, 2
      %p134 = por %p132, %p133
      %p136 = scmp.ne.s32.totalorder %s121, %s135
      %p137 = scmp.eq.s32.totalorder %s27, 0
      %p138 = por %p136, %p137
      %s140 = sadd.s32 %s139, 1
      %p143 = scmp.eq.s32.totalorder %s21, 2
      %p144 = scmp.ne.s32.totalorder %s139, %s141
      %p145 = scmp.eq.s32.totalorder %s21, 0
      %p146 = por %p144, %p145
      %p147 = scmp.ne.s32.totalorder %s139, %s141
      %p148 = scmp.eq.s32.totalorder %s26, 2
      %p149 = por %p147, %p148
      %p150 = scmp.ne.s32.totalorder %s141, %s142
      %p151 = scmp.eq.s32.totalorder %s26, 0
      %p152 = por %p150, %p151
      %p153 = scmp.ne.s32.totalorder %s141, %s142
      %p154 = scmp.eq.s32.totalorder %s27, 2
      %p155 = por %p153, %p154
      %p157 = scmp.ne.s32.totalorder %s142, %s156
      %p158 = scmp.eq.s32.totalorder %s27, 0
      %p159 = por %p157, %p158
      %s161 = sadd.s32 %s160, 1
      %p164 = scmp.eq.s32.totalorder %s21, 2
      %p165 = scmp.ne.s32.totalorder %s160, %s162
      %p166 = scmp.eq.s32.totalorder %s21, 0
      %p167 = por %p165, %p166
      %p168 = scmp.ne.s32.totalorder %s160, %s162
      %p169 = scmp.eq.s32.totalorder %s26, 2
      %p170 = por %p168, %p169
      %p171 = scmp.ne.s32.totalorder %s162, %s163
      %p172 = scmp.eq.s32.totalorder %s26, 0
      %p173 = por %p171, %p172
      %p174 = scmp.ne.s32.totalorder %s162, %s163
      %p175 = scmp.eq.s32.totalorder %s27, 2
      %p176 = por %p174, %p175
      %p178 = scmp.ne.s32.totalorder %s163, %s177
      %p179 = scmp.eq.s32.totalorder %s27, 0
      %p180 = por %p178, %p179
      %s182 = sadd.s32 %s181, 1
      %p185 = scmp.eq.s32.totalorder %s21, 2
      %p186 = scmp.ne.s32.totalorder %s181, %s183
      %p187 = scmp.eq.s32.totalorder %s21, 0
      %p188 = por %p186, %p187
      %p189 = scmp.ne.s32.totalorder %s181, %s183
      %p190 = scmp.eq.s32.totalorder %s26, 2
      %p191 = por %p189, %p190
      %p192 = scmp.ne.s32.totalorder %s183, %s184
      %p193 = scmp.eq.s32.totalorder %s26, 0
      %p194 = por %p192, %p193
      %p195 = scmp.ne.s32.totalorder %s183, %s184
      %p196 = scmp.eq.s32.totalorder %s27, 2
      %p197 = por %p195, %p196
      %p199 = scmp.ne.s32.totalorder %s184, %s198
      %p200 = scmp.eq.s32.totalorder %s27, 0
      %p201 = por %p199, %p200
      %s203 = sadd.s32 %s202, 1
      %p206 = scmp.eq.s32.totalorder %s21, 2
      %p207 = scmp.ne.s32.totalorder %s202, %s204
      %p208 = scmp.eq.s32.totalorder %s21, 0
      %p209 = por %p207, %p208
      %p210 = scmp.ne.s32.totalorder %s202, %s204
      %p211 = scmp.eq.s32.totalorder %s26, 2
      %p212 = por %p210, %p211
      %p213 = scmp.ne.s32.totalorder %s204, %s205
      %p214 = scmp.eq.s32.totalorder %s26, 0
      %p215 = por %p213, %p214
      %p216 = scmp.ne.s32.totalorder %s204, %s205
      %p217 = scmp.eq.s32.totalorder %s27, 2
      %p218 = por %p216, %p217
      %p220 = scmp.ne.s32.totalorder %s205, %s219
      %p221 = scmp.eq.s32.totalorder %s27, 0
      %p222 = por %p220, %p221
      %s223 = ssub.s32 %s21, %s28
      %p224 = scmp.eq.s32.totalorder %s223, 0
      %s226 = sadd.s32 %s225, 1
      %s227 = scalar_select %p224, %s225, %s226
      %p230 = pneg %p224
      %p231 = scmp.eq.s32.totalorder %s21, 2
      %p232 = por %p230, %p231
      %p233 = scmp.ne.s32.totalorder %s225, %s228
      %p234 = scmp.eq.s32.totalorder %s21, 0
      %p235 = por %p233, %p234
      %p236 = scmp.ne.s32.totalorder %s225, %s228
      %p237 = scmp.eq.s32.totalorder %s26, 2
      %p238 = por %p236, %p237
      %p239 = scmp.ne.s32.totalorder %s228, %s229
      %p240 = scmp.eq.s32.totalorder %s26, 0
      %p241 = por %p239, %p240
      %p242 = scmp.ne.s32.totalorder %s228, %s229
      %p243 = scmp.eq.s32.totalorder %s27, 2
      %p244 = por %p242, %p243
      %p246 = scmp.ne.s32.totalorder %s229, %s245
      %p247 = scmp.eq.s32.totalorder %s27, 0
      %p248 = por %p246, %p247
      %p249 = scmp.le.s32.totalorder 1, %s21
      %p250 = scmp.lt.s32.totalorder %s21, 4
      %p251 = pnand %p249, %p250
      %p252 = pneg %p251
      // Predicated region
      $region9: #{tpu_custom_call.1} parent=5 // pred_check
        _
      $region10: #{tpu_custom_call.1} parent=5 // pred_check_branch
        %254 = sbr.rel (%p251) target = $region12
      $region11: #{tpu_custom_call.1} parent=5 // pred_region
        %s255 = ssub.s32 %s21, 1
        // Predicated region
        $region13: #{tpu_custom_call.1} parent=11 // pred_check
          %p256 = pneg %p68
        $region14: #{tpu_custom_call.1} parent=11 // pred_check_branch
          %258 = sbr.rel (%p256) target = $region16
        $region15: #{tpu_custom_call.1} parent=11 // pred_region
          _
        $region16: #{tpu_custom_call.1} parent=11 // pred_fallthru
          _
        // Predicated region
        $region17: #{tpu_custom_call.1} parent=11 // pred_check
          %p259 = pneg %p89
        $region18: #{tpu_custom_call.1} parent=11 // pred_check_branch
          %261 = sbr.rel (%p259) target = $region20
        $region19: #{tpu_custom_call.1} parent=11 // pred_region
          _
        $region20: #{tpu_custom_call.1} parent=11 // pred_fallthru
          _
        // Predicated region
        $region21: #{tpu_custom_call.1} parent=11 // pred_check
          %p262 = pneg %p110
        $region22: #{tpu_custom_call.1} parent=11 // pred_check_branch
          %264 = sbr.rel (%p262) target = $region24
        $region23: #{tpu_custom_call.1} parent=11 // pred_region
          %s266 = ssub.s32 16384, 16384
          %267 = vsyncadd [#allocation6], %s266
          %s268 = sshll.u32 [#allocation5], 4
          %s269 = int_to_ptr.vmem [resolvable:$true] %s268
          %274 = dma.hbm_to_vmem [thread:$0]  %s3, 16384, %s269, [#allocation6], 256, 256, 16
        $region24: #{tpu_custom_call.1} parent=11 // pred_fallthru
          _
        // Predicated region
        $region25: #{tpu_custom_call.1} parent=11 // pred_check
          %p275 = pneg %p131
        $region26: #{tpu_custom_call.1} parent=11 // pred_check_branch
          %277 = sbr.rel (%p275) target = $region28
        $region27: #{tpu_custom_call.1} parent=11 // pred_region
          _
        $region28: #{tpu_custom_call.1} parent=11 // pred_fallthru
          _
        // Predicated region
        $region29: #{tpu_custom_call.1} parent=11 // pred_check
          %p278 = pneg %p152
        $region30: #{tpu_custom_call.1} parent=11 // pred_check_branch
          %280 = sbr.rel (%p278) target = $region32
        $region31: #{tpu_custom_call.1} parent=11 // pred_region
          %s282 = ssub.s32 16384, 16384
          %283 = vsyncadd [#allocation6], %s282
          %s284 = sshll.u32 [#allocation7], 4
          %s285 = int_to_ptr.vmem [resolvable:$true] %s284
          %290 = dma.hbm_to_vmem [thread:$0]  %s5, 16384, %s285, [#allocation6], 256, 256, 16
        $region32: #{tpu_custom_call.1} parent=11 // pred_fallthru
          _
        // Predicated region
        $region33: #{tpu_custom_call.1} parent=11 // pred_check
          %p291 = pneg %p173
        $region34: #{tpu_custom_call.1} parent=11 // pred_check_branch
          %293 = sbr.rel (%p291) target = $region36
        $region35: #{tpu_custom_call.1} parent=11 // pred_region
          _
        $region36: #{tpu_custom_call.1} parent=11 // pred_fallthru
          _
        // Predicated region
        $region37: #{tpu_custom_call.1} parent=11 // pred_check
          %p294 = pneg %p194
        $region38: #{tpu_custom_call.1} parent=11 // pred_check_branch
          %296 = sbr.rel (%p294) target = $region40
        $region39: #{tpu_custom_call.1} parent=11 // pred_region
          _
        $region40: #{tpu_custom_call.1} parent=11 // pred_fallthru
          _
        // Predicated region
        $region41: #{tpu_custom_call.1} parent=11 // pred_check
          %p297 = pneg %p215
        $region42: #{tpu_custom_call.1} parent=11 // pred_check_branch
          %299 = sbr.rel (%p297) target = $region44
        $region43: #{tpu_custom_call.1} parent=11 // pred_region
          _
        $region44: #{tpu_custom_call.1} parent=11 // pred_fallthru
          _
      $region12: #{tpu_custom_call.1} parent=5 // pred_fallthru
        _
      %p300 = scmp.lt.s32.totalorder %s21, 3
      // Predicated region
      $region45: #{tpu_custom_call.1} parent=5 // pred_check
        %p301 = pneg %p300
      $region46: #{tpu_custom_call.1} parent=5 // pred_check_branch
        %303 = sbr.rel (%p301) target = $region48
      $region47: #{tpu_custom_call.1} parent=5 // pred_region
        // Predicated region
        $region49: #{tpu_custom_call.1} parent=47 // pred_check
          %p304 = pneg %p41
        $region50: #{tpu_custom_call.1} parent=47 // pred_check_branch
          %306 = sbr.rel (%p304) target = $region52
        $region51: #{tpu_custom_call.1} parent=47 // pred_region
          %s307 = sand.u32 %s31, 1
          %s308 = scalar_lea.sflag [#allocation4], %s307
          %s309 = sand.u32 %s31, 1
          %s310 = smul.addr %s309, 64
          %s311 = scalar_lea.vmem [#allocation3], %s310
          %s312 = smul.u32 16, %s21
          %s314 = ssub.s32 1024, 1024
          %315 = vsyncadd %s308, %s314
          %s316 = smul.addr %s312, 64
          %s317 = scalar_lea.hbm %s0, %s316
          %s318 = sshll.u32 %s311, 4
          %s319 = int_to_ptr.vmem [resolvable:$true] %s318
          %324 = dma.hbm_to_vmem [thread:$0]  %s317, 1024, %s319, %s308, 64, 64, 4
        $region52: #{tpu_custom_call.1} parent=47 // pred_fallthru
          _
      $region48: #{tpu_custom_call.1} parent=5 // pred_fallthru
        _
      %p325 = scmp.le.s32.totalorder 1, %s21
      %p326 = scmp.lt.s32.totalorder %s21, 4
      %p327 = pnand %p325, %p326
      %p328 = pneg %p327
      // Predicated region
      $region53: #{tpu_custom_call.1} parent=5 // pred_check
        _
      $region54: #{tpu_custom_call.1} parent=5 // pred_check_branch
        %330 = sbr.rel (%p327) target = $region56
      $region55: #{tpu_custom_call.1} parent=5 // pred_region
        %s331 = ssub.s32 %s21, 1
        %s332 = sand.u32 %s34, 1
        %s333 = scalar_lea.sflag [#allocation4], %s332
        %s334 = sand.u32 %s34, 1
        %s335 = smul.addr %s334, 64
        %s336 = scalar_lea.vmem [#allocation3], %s335
        // Predicated region
        $region57: #{tpu_custom_call.1} parent=55 // pred_check
          %p337 = pneg %p47
        $region58: #{tpu_custom_call.1} parent=55 // pred_check_branch
          %339 = sbr.rel (%p337) target = $region60
        $region59: #{tpu_custom_call.1} parent=55 // pred_region
          %340 = dma.done %s333, 1024
        $region60: #{tpu_custom_call.1} parent=55 // pred_fallthru
          _
        // Predicated region
        $region61: #{tpu_custom_call.1} parent=55 // pred_check
          %p341 = pneg %p110
        $region62: #{tpu_custom_call.1} parent=55 // pred_check_branch
          %343 = sbr.rel (%p341) target = $region64
        $region63: #{tpu_custom_call.1} parent=55 // pred_region
          %344 = dma.done [#allocation6], 16384
        $region64: #{tpu_custom_call.1} parent=55 // pred_fallthru
          _
        // Predicated region
        $region65: #{tpu_custom_call.1} parent=55 // pred_check
          %p345 = pneg %p152
        $region66: #{tpu_custom_call.1} parent=55 // pred_check_branch
          %347 = sbr.rel (%p345) target = $region68
        $region67: #{tpu_custom_call.1} parent=55 // pred_region
          %348 = dma.done [#allocation6], 16384
        $region68: #{tpu_custom_call.1} parent=55 // pred_fallthru
          _
        %s349 = sand.u32 %s34, 1
        %s350 = scalar_lea.sflag [#allocation4], %s349
        %s351 = sand.u32 %s34, 1
        %s352 = smul.addr %s351, 64
        %s353 = scalar_lea.vmem [#allocation3], %s352
        %p354 = pneg %p47
        %p355 = pneg %p44
        %p356 = pneg %p68
        %p357 = pneg %p65
        %p358 = pneg %p89
        %p359 = pneg %p86
        %p360 = pneg %p110
        %p361 = pneg %p107
        %p362 = pneg %p131
        %p363 = pneg %p128
        %p364 = pneg %p152
        %p365 = pneg %p149
        %p366 = pneg %p173
        %p367 = pneg %p170
        %p368 = pneg %p194
        %p369 = pneg %p191
        %p370 = pneg %p215
        %p371 = pneg %p212
        %p372 = pneg %p241
        %p373 = pneg %p238
        %s374 = smul.u32 16, %s26
        %p375 = scmp.lt.s32.totalorder %s374, 47
        %s376 = scalar_select %p375, %s374, 47
        %s377 = smul.addr %s376, 8
        %s378 = scalar_lea.vmem %s9, %s377
        %s379 = smul.u32 16, %s26
        %s380 = smul.u32 16, %s26
        %p381 = scmp.lt.s32.totalorder %s380, 47
        %s382 = scalar_select %p381, %s380, 47
        %s383 = smul.addr %s382, 8
        %s384 = scalar_lea.vmem %s9, %s383
        %s385 = smul.u32 16, %s26
        %v387 = vld [vmem:[%s336] sm:$0xf]
        %v388 = vld [vmem:[%s336 + $0x4] sm:$0xf]
        %v389 = vld [vmem:[%s336 + $0x8] sm:$0xf]
        %v390 = vld [vmem:[%s336 + $0xc] sm:$0xf]
        %v391 = vld [vmem:[%s336 + $0x10] sm:$0xf]
        %v392 = vld [vmem:[%s336 + $0x14] sm:$0xf]
        %v393 = vld [vmem:[%s336 + $0x18] sm:$0xf]
        %v394 = vld [vmem:[%s336 + $0x1c] sm:$0xf]
        %v395 = vld [vmem:[%s336 + $0x20] sm:$0xf]
        %v396 = vld [vmem:[%s336 + $0x24] sm:$0xf]
        %v397 = vld [vmem:[%s336 + $0x28] sm:$0xf]
        %v398 = vld [vmem:[%s336 + $0x2c] sm:$0xf]
        %v399 = vld [vmem:[%s336 + $0x30] sm:$0xf]
        %v400 = vld [vmem:[%s336 + $0x34] sm:$0xf]
        %v401 = vld [vmem:[%s336 + $0x38] sm:$0xf]
        %v402 = vld [vmem:[%s336 + $0x3c] sm:$0xf]
        %v403 = vld [vmem:[%s1] sm:$0xff]
        %v404 = vld [vmem:[%s1 + $0x8] sm:$0xff]
        %v405 = vld [vmem:[%s1 + $0x10] sm:$0xff]
        %v406 = vld [vmem:[%s1 + $0x18] sm:$0xff]
        %v407 = vld [vmem:[%s1 + $0x20] sm:$0xff]
        %v408 = vld [vmem:[%s1 + $0x28] sm:$0xff]
        %v409 = vld [vmem:[%s1 + $0x30] sm:$0xff]
        %v410 = vld [vmem:[%s1 + $0x38] sm:$0xff]
        %v411 = vld [vmem:[%s1 + $0x40] sm:$0xff]
        %v412 = vld [vmem:[%s1 + $0x48] sm:$0xff]
        %v413 = vld [vmem:[%s1 + $0x50] sm:$0xff]
        %v414 = vld [vmem:[%s1 + $0x58] sm:$0xff]
        %v415 = vld [vmem:[%s1 + $0x60] sm:$0xff]
        %v416 = vld [vmem:[%s1 + $0x68] sm:$0xff]
        %v417 = vld [vmem:[%s1 + $0x70] sm:$0xff]
        %v418 = vld [vmem:[%s1 + $0x78] sm:$0xff]
        %v419 = vld [vmem:[%s1 + $0x80] sm:$0xff]
        %v420 = vld [vmem:[%s1 + $0x88] sm:$0xff]
        %v421 = vld [vmem:[%s1 + $0x90] sm:$0xff]
        %v422 = vld [vmem:[%s1 + $0x98] sm:$0xff]
        %v423 = vld [vmem:[%s1 + $0xa0] sm:$0xff]
        %v424 = vld [vmem:[%s1 + $0xa8] sm:$0xff]
        %v425 = vld [vmem:[%s1 + $0xb0] sm:$0xff]
        %v426 = vld [vmem:[%s1 + $0xb8] sm:$0xff]
        %v427 = vld [vmem:[%s1 + $0xc0] sm:$0xff]
        %v428 = vld [vmem:[%s1 + $0xc8] sm:$0xff]
        %v429 = vld [vmem:[%s1 + $0xd0] sm:$0xff]
        %v430 = vld [vmem:[%s1 + $0xd8] sm:$0xff]
        %v431 = vld [vmem:[%s1 + $0xe0] sm:$0xff]
        %v432 = vld [vmem:[%s1 + $0xe8] sm:$0xff]
        %v433 = vld [vmem:[%s1 + $0xf0] sm:$0xff]
        %v434 = vld [vmem:[%s1 + $0xf8] sm:$0xff]
        %v435 = vld [vmem:[%s2] sm:$0xf]
        %v437 = vlaneseq
        %v438 = vshrl.u32 %v437, 7
        %v439 = vsub.s32 0, %v438
        %v440 = vrot.slane %v435, %v439
        %v441 = vlaneseq
        %v442 = vshrl.u32 %v441, 7
        %v443 = vsub.s32 1, %v442
        %v444 = vrot.slane %v435, %v443
        %v445 = vlaneseq
        %v446 = vshrl.u32 %v445, 7
        %v447 = vsub.s32 2, %v446
        %v448 = vrot.slane %v435, %v447
        %v449 = vlaneseq
        %v450 = vshrl.u32 %v449, 7
        %v451 = vsub.s32 3, %v450
        %v452 = vrot.slane %v435, %v451
        %v473 = vunpack.c.l.b16 %v387
        %v474 = vunpack.c.l.b16 %v388
        %v475 = vunpack.c.l.b16 %v389
        %v476 = vunpack.c.l.b16 %v390
        %v477 = vunpack.c.l.b16 %v391
        %v478 = vunpack.c.l.b16 %v392
        %v479 = vunpack.c.l.b16 %v393
        %v480 = vunpack.c.l.b16 %v394
        %v481 = vunpack.c.l.b16 %v395
        %v482 = vunpack.c.l.b16 %v396
        %v483 = vunpack.c.l.b16 %v397
        %v484 = vunpack.c.l.b16 %v398
        %v485 = vunpack.c.l.b16 %v399
        %v486 = vunpack.c.l.b16 %v400
        %v487 = vunpack.c.l.b16 %v401
        %v488 = vunpack.c.l.b16 %v402
        %v489 = vpack.c.b16 %v474, %v473
        %v490 = vpack.c.b16 %v476, %v475
        %v491 = vpack.c.b16 %v478, %v477
        %v492 = vpack.c.b16 %v480, %v479
        %v493 = vpack.c.b16 %v482, %v481
        %v494 = vpack.c.b16 %v484, %v483
        %v495 = vpack.c.b16 %v486, %v485
        %v496 = vpack.c.b16 %v488, %v487
        %v537 = vunpack.c.l.b16 %v403
        %v538 = vunpack.c.h.b16 %v403
        %v539 = vunpack.c.l.b16 %v404
        %v540 = vunpack.c.h.b16 %v404
        %v541 = vunpack.c.l.b16 %v405
        %v542 = vunpack.c.h.b16 %v405
        %v543 = vunpack.c.l.b16 %v406
        %v544 = vunpack.c.h.b16 %v406
        %v545 = vunpack.c.l.b16 %v407
        %v546 = vunpack.c.h.b16 %v407
        %v547 = vunpack.c.l.b16 %v408
        %v548 = vunpack.c.h.b16 %v408
        %v549 = vunpack.c.l.b16 %v409
        %v550 = vunpack.c.h.b16 %v409
        %v551 = vunpack.c.l.b16 %v410
        %v552 = vunpack.c.h.b16 %v410
        %v553 = vunpack.c.l.b16 %v411
        %v554 = vunpack.c.h.b16 %v411
        %v555 = vunpack.c.l.b16 %v412
        %v556 = vunpack.c.h.b16 %v412
        %v557 = vunpack.c.l.b16 %v413
        %v558 = vunpack.c.h.b16 %v413
        %v559 = vunpack.c.l.b16 %v414
        %v560 = vunpack.c.h.b16 %v414
        %v561 = vunpack.c.l.b16 %v415
        %v562 = vunpack.c.h.b16 %v415
        %v563 = vunpack.c.l.b16 %v416
        %v564 = vunpack.c.h.b16 %v416
        %v565 = vunpack.c.l.b16 %v417
        %v566 = vunpack.c.h.b16 %v417
        %v567 = vunpack.c.l.b16 %v418
        %v568 = vunpack.c.h.b16 %v418
        %v569 = vunpack.c.l.b16 %v419
        %v570 = vunpack.c.h.b16 %v419
        %v571 = vunpack.c.l.b16 %v420
        %v572 = vunpack.c.h.b16 %v420
        %v573 = vunpack.c.l.b16 %v421
        %v574 = vunpack.c.h.b16 %v421
        %v575 = vunpack.c.l.b16 %v422
        %v576 = vunpack.c.h.b16 %v422
        %v577 = vunpack.c.l.b16 %v423
        %v578 = vunpack.c.h.b16 %v423
        %v579 = vunpack.c.l.b16 %v424
        %v580 = vunpack.c.h.b16 %v424
        %v581 = vunpack.c.l.b16 %v425
        %v582 = vunpack.c.h.b16 %v425
        %v583 = vunpack.c.l.b16 %v426
        %v584 = vunpack.c.h.b16 %v426
        %v585 = vunpack.c.l.b16 %v427
        %v586 = vunpack.c.h.b16 %v427
        %v587 = vunpack.c.l.b16 %v428
        %v588 = vunpack.c.h.b16 %v428
        %v589 = vunpack.c.l.b16 %v429
        %v590 = vunpack.c.h.b16 %v429
        %v591 = vunpack.c.l.b16 %v430
        %v592 = vunpack.c.h.b16 %v430
        %v593 = vunpack.c.l.b16 %v431
        %v594 = vunpack.c.h.b16 %v431
        %v595 = vunpack.c.l.b16 %v432
        %v596 = vunpack.c.h.b16 %v432
        %v597 = vunpack.c.l.b16 %v433
        %v598 = vunpack.c.h.b16 %v433
        %v599 = vunpack.c.l.b16 %v434
        %v600 = vunpack.c.h.b16 %v434
        %v601 = vpack.c.b16 %v541, %v537
        %v602 = vpack.c.b16 %v542, %v538
        %v603 = vpack.c.b16 %v543, %v539
        %v604 = vpack.c.b16 %v544, %v540
        %v605 = vpack.c.b16 %v549, %v545
        %v606 = vpack.c.b16 %v550, %v546
        %v607 = vpack.c.b16 %v551, %v547
        %v608 = vpack.c.b16 %v552, %v548
        %v609 = vpack.c.b16 %v557, %v553
        %v610 = vpack.c.b16 %v558, %v554
        %v611 = vpack.c.b16 %v559, %v555
        %v612 = vpack.c.b16 %v560, %v556
        %v613 = vpack.c.b16 %v565, %v561
        %v614 = vpack.c.b16 %v566, %v562
        %v615 = vpack.c.b16 %v567, %v563
        %v616 = vpack.c.b16 %v568, %v564
        %v617 = vpack.c.b16 %v573, %v569
        %v618 = vpack.c.b16 %v574, %v570
        %v619 = vpack.c.b16 %v575, %v571
        %v620 = vpack.c.b16 %v576, %v572
        %v621 = vpack.c.b16 %v581, %v577
        %v622 = vpack.c.b16 %v582, %v578
        %v623 = vpack.c.b16 %v583, %v579
        %v624 = vpack.c.b16 %v584, %v580
        %v625 = vpack.c.b16 %v589, %v585
        %v626 = vpack.c.b16 %v590, %v586
        %v627 = vpack.c.b16 %v591, %v587
        %v628 = vpack.c.b16 %v592, %v588
        %v629 = vpack.c.b16 %v597, %v593
        %v630 = vpack.c.b16 %v598, %v594
        %v631 = vpack.c.b16 %v599, %v595
        %v632 = vpack.c.b16 %v600, %v596
        %665 = vmatprep.subr.bf16.mxu0 %v630
        %666 = vmatpush1.bf16.msra.mxu0 %v629
        %667 = vmatprep.subr.bf16.mxu0 %v626
        %668 = vmatpush1.bf16.msra.mxu0 %v625
        %669 = vmatprep.subr.bf16.mxu0 %v622
        %670 = vmatpush1.bf16.msra.mxu0 %v621
        %671 = vmatprep.subr.bf16.mxu0 %v618
        %672 = vmatpush1.bf16.msra.mxu0 %v617
        %673 = vmatprep.subr.bf16.mxu0 %v614
        %674 = vmatpush1.bf16.msra.mxu0 %v613
        %675 = vmatprep.subr.bf16.mxu0 %v610
        %676 = vmatpush1.bf16.msra.mxu0 %v609
        %677 = vmatprep.subr.bf16.mxu0 %v606
        %678 = vmatpush1.bf16.msra.mxu0 %v605
        %679 = vmatprep.subr.bf16.mxu0 %v602
        %680 = vmatpush1.bf16.msra.mxu0 %v601
        %681 = vmatprep.subr.bf16.mxu0 0
        %682 = vmatpush2.bf16.msra.mxu0 0
        %683 = vmatprep.subr.bf16.mxu0 0
        %684 = vmatpush2.bf16.msra.mxu0 0
        %685 = vmatprep.subr.bf16.mxu0 0
        %686 = vmatpush2.bf16.msra.mxu0 0
        %687 = vmatprep.subr.bf16.mxu0 0
        %688 = vmatpush2.bf16.msra.mxu0 0
        %689 = vmatprep.subr.bf16.mxu0 0
        %690 = vmatpush2.bf16.msra.mxu0 0
        %691 = vmatprep.subr.bf16.mxu0 0
        %692 = vmatpush2.bf16.msra.mxu0 0
        %693 = vmatprep.subr.bf16.mxu0 0
        %694 = vmatpush2.bf16.msra.mxu0 0
        %695 = vmatprep.subr.bf16.mxu0 0
        %696 = vmatpush2.bf16.msra.mxu0 0
        %697 = vmatprep.mubr.bf16.mxu0 0
        %698 = vmatmul.mubr.bf16.gmra.mxu0 %v489
        %v699 = vpop.f32.mrf.mxu0
        %v700 = vadd.f32 %v440, %v699
        %v701 = vpop.f32.mrf.mxu0
        %v702 = vadd.f32 %v444, %v701
        %v703 = vpop.f32.mrf.mxu0
        %v704 = vadd.f32 %v440, %v703
        %v705 = vpop.f32.mrf.mxu0
        %v706 = vadd.f32 %v444, %v705
        %707 = vmatprep.mubr.bf16.mxu0 0
        %708 = vmatmul.mubr.bf16.gmra.mxu0 %v490
        %v709 = vpop.f32.mrf.mxu0
        %v710 = vadd.f32 %v440, %v709
        %v711 = vpop.f32.mrf.mxu0
        %v712 = vadd.f32 %v444, %v711
        %v713 = vpop.f32.mrf.mxu0
        %v714 = vadd.f32 %v440, %v713
        %v715 = vpop.f32.mrf.mxu0
        %v716 = vadd.f32 %v444, %v715
        %717 = vmatprep.mubr.bf16.mxu0 0
        %718 = vmatmul.mubr.bf16.gmra.mxu0 %v491
        %v719 = vpop.f32.mrf.mxu0
        %v720 = vadd.f32 %v440, %v719
        %v721 = vpop.f32.mrf.mxu0
        %v722 = vadd.f32 %v444, %v721
        %v723 = vpop.f32.mrf.mxu0
        %v724 = vadd.f32 %v440, %v723
        %v725 = vpop.f32.mrf.mxu0
        %v726 = vadd.f32 %v444, %v725
        %727 = vmatprep.mubr.bf16.mxu0 0
        %728 = vmatmul.mubr.bf16.gmra.mxu0 %v492
        %v729 = vpop.f32.mrf.mxu0
        %v730 = vadd.f32 %v440, %v729
        %v731 = vpop.f32.mrf.mxu0
        %v732 = vadd.f32 %v444, %v731
        %v733 = vpop.f32.mrf.mxu0
        %v734 = vadd.f32 %v440, %v733
        %v735 = vpop.f32.mrf.mxu0
        %v736 = vadd.f32 %v444, %v735
        %737 = vmatprep.mubr.bf16.mxu0 0
        %738 = vmatmul.mubr.bf16.gmra.mxu0 %v493
        %v739 = vpop.f32.mrf.mxu0
        %v740 = vadd.f32 %v440, %v739
        %v741 = vpop.f32.mrf.mxu0
        %v742 = vadd.f32 %v444, %v741
        %v743 = vpop.f32.mrf.mxu0
        %v744 = vadd.f32 %v440, %v743
        %v745 = vpop.f32.mrf.mxu0
        %v746 = vadd.f32 %v444, %v745
        %747 = vmatprep.mubr.bf16.mxu0 0
        %748 = vmatmul.mubr.bf16.gmra.mxu0 %v494
        %v749 = vpop.f32.mrf.mxu0
        %v750 = vadd.f32 %v440, %v749
        %v751 = vpop.f32.mrf.mxu0
        %v752 = vadd.f32 %v444, %v751
        %v753 = vpop.f32.mrf.mxu0
        %v754 = vadd.f32 %v440, %v753
        %v755 = vpop.f32.mrf.mxu0
        %v756 = vadd.f32 %v444, %v755
        %757 = vmatprep.mubr.bf16.mxu0 0
        %758 = vmatmul.mubr.bf16.gmra.mxu0 %v495
        %v759 = vpop.f32.mrf.mxu0
        %v760 = vadd.f32 %v440, %v759
        %v761 = vpop.f32.mrf.mxu0
        %v762 = vadd.f32 %v444, %v761
        %v763 = vpop.f32.mrf.mxu0
        %v764 = vadd.f32 %v440, %v763
        %v765 = vpop.f32.mrf.mxu0
        %v766 = vadd.f32 %v444, %v765
        %767 = vmatprep.mubr.bf16.mxu0 0
        %768 = vmatmul.mubr.bf16.gmra.mxu0 %v496
        %v769 = vpop.f32.mrf.mxu0
        %v770 = vadd.f32 %v440, %v769
        %v771 = vpop.f32.mrf.mxu0
        %v772 = vadd.f32 %v444, %v771
        %v773 = vpop.f32.mrf.mxu0
        %v774 = vadd.f32 %v440, %v773
        %v775 = vpop.f32.mrf.mxu0
        %v776 = vadd.f32 %v444, %v775
        %777 = vdwg.mxu0
        %778 = vmatprep.subr.bf16.mxu0 %v632
        %779 = vmatpush1.bf16.msra.mxu0 %v631
        %780 = vmatprep.subr.bf16.mxu0 %v628
        %781 = vmatpush1.bf16.msra.mxu0 %v627
        %782 = vmatprep.subr.bf16.mxu0 %v624
        %783 = vmatpush1.bf16.msra.mxu0 %v623
        %784 = vmatprep.subr.bf16.mxu0 %v620
        %785 = vmatpush1.bf16.msra.mxu0 %v619
        %786 = vmatprep.subr.bf16.mxu0 %v616
        %787 = vmatpush1.bf16.msra.mxu0 %v615
        %788 = vmatprep.subr.bf16.mxu0 %v612
        %789 = vmatpush1.bf16.msra.mxu0 %v611
        %790 = vmatprep.subr.bf16.mxu0 %v608
        %791 = vmatpush1.bf16.msra.mxu0 %v607
        %792 = vmatprep.subr.bf16.mxu0 %v604
        %793 = vmatpush1.bf16.msra.mxu0 %v603
        %794 = vmatprep.subr.bf16.mxu0 0
        %795 = vmatpush2.bf16.msra.mxu0 0
        %796 = vmatprep.subr.bf16.mxu0 0
        %797 = vmatpush2.bf16.msra.mxu0 0
        %798 = vmatprep.subr.bf16.mxu0 0
        %799 = vmatpush2.bf16.msra.mxu0 0
        %800 = vmatprep.subr.bf16.mxu0 0
        %801 = vmatpush2.bf16.msra.mxu0 0
        %802 = vmatprep.subr.bf16.mxu0 0
        %803 = vmatpush2.bf16.msra.mxu0 0
        %804 = vmatprep.subr.bf16.mxu0 0
        %805 = vmatpush2.bf16.msra.mxu0 0
        %806 = vmatprep.subr.bf16.mxu0 0
        %807 = vmatpush2.bf16.msra.mxu0 0
        %808 = vmatprep.subr.bf16.mxu0 0
        %809 = vmatpush2.bf16.msra.mxu0 0
        %810 = vmatprep.mubr.bf16.mxu0 0
        %811 = vmatmul.mubr.bf16.gmra.mxu0 %v489
        %v812 = vpop.f32.mrf.mxu0
        %v813 = vadd.f32 %v448, %v812
        %v814 = vpop.f32.mrf.mxu0
        %v815 = vadd.f32 %v452, %v814
        %v816 = vpop.f32.mrf.mxu0
        %v817 = vadd.f32 %v448, %v816
        %v818 = vpop.f32.mrf.mxu0
        %v819 = vadd.f32 %v452, %v818
        %820 = vmatprep.mubr.bf16.mxu0 0
        %821 = vmatmul.mubr.bf16.gmra.mxu0 %v490
        %v822 = vpop.f32.mrf.mxu0
        %v823 = vadd.f32 %v448, %v822
        %v824 = vpop.f32.mrf.mxu0
        %v825 = vadd.f32 %v452, %v824
        %v826 = vpop.f32.mrf.mxu0
        %v827 = vadd.f32 %v448, %v826
        %v828 = vpop.f32.mrf.mxu0
        %v829 = vadd.f32 %v452, %v828
        %830 = vmatprep.mubr.bf16.mxu0 0
        %831 = vmatmul.mubr.bf16.gmra.mxu0 %v491
        %v832 = vpop.f32.mrf.mxu0
        %v833 = vadd.f32 %v448, %v832
        %v834 = vpop.f32.mrf.mxu0
        %v835 = vadd.f32 %v452, %v834
        %v836 = vpop.f32.mrf.mxu0
        %v837 = vadd.f32 %v448, %v836
        %v838 = vpop.f32.mrf.mxu0
        %v839 = vadd.f32 %v452, %v838
        %840 = vmatprep.mubr.bf16.mxu0 0
        %841 = vmatmul.mubr.bf16.gmra.mxu0 %v492
        %v842 = vpop.f32.mrf.mxu0
        %v843 = vadd.f32 %v448, %v842
        %v844 = vpop.f32.mrf.mxu0
        %v845 = vadd.f32 %v452, %v844
        %v846 = vpop.f32.mrf.mxu0
        %v847 = vadd.f32 %v448, %v846
        %v848 = vpop.f32.mrf.mxu0
        %v849 = vadd.f32 %v452, %v848
        %850 = vmatprep.mubr.bf16.mxu0 0
        %851 = vmatmul.mubr.bf16.gmra.mxu0 %v493
        %v852 = vpop.f32.mrf.mxu0
        %v853 = vadd.f32 %v448, %v852
        %v854 = vpop.f32.mrf.mxu0
        %v855 = vadd.f32 %v452, %v854
        %v856 = vpop.f32.mrf.mxu0
        %v857 = vadd.f32 %v448, %v856
        %v858 = vpop.f32.mrf.mxu0
        %v859 = vadd.f32 %v452, %v858
        %860 = vmatprep.mubr.bf16.mxu0 0
        %861 = vmatmul.mubr.bf16.gmra.mxu0 %v494
        %v862 = vpop.f32.mrf.mxu0
        %v863 = vadd.f32 %v448, %v862
        %v864 = vpop.f32.mrf.mxu0
        %v865 = vadd.f32 %v452, %v864
        %v866 = vpop.f32.mrf.mxu0
        %v867 = vadd.f32 %v448, %v866
        %v868 = vpop.f32.mrf.mxu0
        %v869 = vadd.f32 %v452, %v868
        %870 = vmatprep.mubr.bf16.mxu0 0
        %871 = vmatmul.mubr.bf16.gmra.mxu0 %v495
        %v872 = vpop.f32.mrf.mxu0
        %v873 = vadd.f32 %v448, %v872
        %v874 = vpop.f32.mrf.mxu0
        %v875 = vadd.f32 %v452, %v874
        %v876 = vpop.f32.mrf.mxu0
        %v877 = vadd.f32 %v448, %v876
        %v878 = vpop.f32.mrf.mxu0
        %v879 = vadd.f32 %v452, %v878
        %880 = vmatprep.mubr.bf16.mxu0 0
        %881 = vmatmul.mubr.bf16.gmra.mxu0 %v496
        %v882 = vpop.f32.mrf.mxu0
        %v883 = vadd.f32 %v448, %v882
        %v884 = vpop.f32.mrf.mxu0
        %v885 = vadd.f32 %v452, %v884
        %v886 = vpop.f32.mrf.mxu0
        %v887 = vadd.f32 %v448, %v886
        %v888 = vpop.f32.mrf.mxu0
        %v889 = vadd.f32 %v452, %v888
        %890 = vdwg.mxu0
        %v891 = vmax.f32 %v700, 0.0
        %v892 = vmax.f32 %v702, 0.0
        %v893 = vmax.f32 %v813, 0.0
        %v894 = vmax.f32 %v815, 0.0
        %v895 = vmax.f32 %v704, 0.0
        %v896 = vmax.f32 %v706, 0.0
        %v897 = vmax.f32 %v817, 0.0
        %v898 = vmax.f32 %v819, 0.0
        %v899 = vmax.f32 %v710, 0.0
        %v900 = vmax.f32 %v712, 0.0
        %v901 = vmax.f32 %v823, 0.0
        %v902 = vmax.f32 %v825, 0.0
        %v903 = vmax.f32 %v714, 0.0
        %v904 = vmax.f32 %v716, 0.0
        %v905 = vmax.f32 %v827, 0.0
        %v906 = vmax.f32 %v829, 0.0
        %v907 = vmax.f32 %v720, 0.0
        %v908 = vmax.f32 %v722, 0.0
        %v909 = vmax.f32 %v833, 0.0
        %v910 = vmax.f32 %v835, 0.0
        %v911 = vmax.f32 %v724, 0.0
        %v912 = vmax.f32 %v726, 0.0
        %v913 = vmax.f32 %v837, 0.0
        %v914 = vmax.f32 %v839, 0.0
        %v915 = vmax.f32 %v730, 0.0
        %v916 = vmax.f32 %v732, 0.0
        %v917 = vmax.f32 %v843, 0.0
        %v918 = vmax.f32 %v845, 0.0
        %v919 = vmax.f32 %v734, 0.0
        %v920 = vmax.f32 %v736, 0.0
        %v921 = vmax.f32 %v847, 0.0
        %v922 = vmax.f32 %v849, 0.0
        %v923 = vmax.f32 %v740, 0.0
        %v924 = vmax.f32 %v742, 0.0
        %v925 = vmax.f32 %v853, 0.0
        %v926 = vmax.f32 %v855, 0.0
        %v927 = vmax.f32 %v744, 0.0
        %v928 = vmax.f32 %v746, 0.0
        %v929 = vmax.f32 %v857, 0.0
        %v930 = vmax.f32 %v859, 0.0
        %v931 = vmax.f32 %v750, 0.0
        %v932 = vmax.f32 %v752, 0.0
        %v933 = vmax.f32 %v863, 0.0
        %v934 = vmax.f32 %v865, 0.0
        %v935 = vmax.f32 %v754, 0.0
        %v936 = vmax.f32 %v756, 0.0
        %v937 = vmax.f32 %v867, 0.0
        %v938 = vmax.f32 %v869, 0.0
        %v939 = vmax.f32 %v760, 0.0
        %v940 = vmax.f32 %v762, 0.0
        %v941 = vmax.f32 %v873, 0.0
        %v942 = vmax.f32 %v875, 0.0
        %v943 = vmax.f32 %v764, 0.0
        %v944 = vmax.f32 %v766, 0.0
        %v945 = vmax.f32 %v877, 0.0
        %v946 = vmax.f32 %v879, 0.0
        %v947 = vmax.f32 %v770, 0.0
        %v948 = vmax.f32 %v772, 0.0
        %v949 = vmax.f32 %v883, 0.0
        %v950 = vmax.f32 %v885, 0.0
        %v951 = vmax.f32 %v774, 0.0
        %v952 = vmax.f32 %v776, 0.0
        %v953 = vmax.f32 %v887, 0.0
        %v954 = vmax.f32 %v889, 0.0
        %v955 = vpack.c.bf16 %v895, %v891
        %v956 = vpack.c.bf16 %v896, %v892
        %v957 = vpack.c.bf16 %v897, %v893
        %v958 = vpack.c.bf16 %v898, %v894
        %v959 = vpack.c.bf16 %v903, %v899
        %v960 = vpack.c.bf16 %v904, %v900
        %v961 = vpack.c.bf16 %v905, %v901
        %v962 = vpack.c.bf16 %v906, %v902
        %v963 = vpack.c.bf16 %v911, %v907
        %v964 = vpack.c.bf16 %v912, %v908
        %v965 = vpack.c.bf16 %v913, %v909
        %v966 = vpack.c.bf16 %v914, %v910
        %v967 = vpack.c.bf16 %v919, %v915
        %v968 = vpack.c.bf16 %v920, %v916
        %v969 = vpack.c.bf16 %v921, %v917
        %v970 = vpack.c.bf16 %v922, %v918
        %v971 = vpack.c.bf16 %v927, %v923
        %v972 = vpack.c.bf16 %v928, %v924
        %v973 = vpack.c.bf16 %v929, %v925
        %v974 = vpack.c.bf16 %v930, %v926
        %v975 = vpack.c.bf16 %v935, %v931
        %v976 = vpack.c.bf16 %v936, %v932
        %v977 = vpack.c.bf16 %v937, %v933
        %v978 = vpack.c.bf16 %v938, %v934
        %v979 = vpack.c.bf16 %v943, %v939
        %v980 = vpack.c.bf16 %v944, %v940
        %v981 = vpack.c.bf16 %v945, %v941
        %v982 = vpack.c.bf16 %v946, %v942
        %v983 = vpack.c.bf16 %v951, %v947
        %v984 = vpack.c.bf16 %v952, %v948
        %v985 = vpack.c.bf16 %v953, %v949
        %v986 = vpack.c.bf16 %v954, %v950
        %v987 = vld [vmem:[#allocation5] sm:$0xff]
        %v988 = vld [vmem:[#allocation5 + $0x8] sm:$0xff]
        %v989 = vld [vmem:[#allocation5 + $0x10] sm:$0xff]
        %v990 = vld [vmem:[#allocation5 + $0x18] sm:$0xff]
        %v991 = vld [vmem:[#allocation5 + $0x20] sm:$0xff]
        %v992 = vld [vmem:[#allocation5 + $0x28] sm:$0xff]
        %v993 = vld [vmem:[#allocation5 + $0x30] sm:$0xff]
        %v994 = vld [vmem:[#allocation5 + $0x38] sm:$0xff]
        %v995 = vld [vmem:[#allocation5 + $0x40] sm:$0xff]
        %v996 = vld [vmem:[#allocation5 + $0x48] sm:$0xff]
        %v997 = vld [vmem:[#allocation5 + $0x50] sm:$0xff]
        %v998 = vld [vmem:[#allocation5 + $0x58] sm:$0xff]
        %v999 = vld [vmem:[#allocation5 + $0x60] sm:$0xff]
        %v1000 = vld [vmem:[#allocation5 + $0x68] sm:$0xff]
        %v1001 = vld [vmem:[#allocation5 + $0x70] sm:$0xff]
        %v1002 = vld [vmem:[#allocation5 + $0x78] sm:$0xff]
        %v1003 = vld [vmem:[#allocation5 + $0x80] sm:$0xff]
        %v1004 = vld [vmem:[#allocation5 + $0x88] sm:$0xff]
        %v1005 = vld [vmem:[#allocation5 + $0x90] sm:$0xff]
        %v1006 = vld [vmem:[#allocation5 + $0x98] sm:$0xff]
        %v1007 = vld [vmem:[#allocation5 + $0xa0] sm:$0xff]
        %v1008 = vld [vmem:[#allocation5 + $0xa8] sm:$0xff]
        %v1009 = vld [vmem:[#allocation5 + $0xb0] sm:$0xff]
        %v1010 = vld [vmem:[#allocation5 + $0xb8] sm:$0xff]
        %v1011 = vld [vmem:[#allocation5 + $0xc0] sm:$0xff]
        %v1012 = vld [vmem:[#allocation5 + $0xc8] sm:$0xff]
        %v1013 = vld [vmem:[#allocation5 + $0xd0] sm:$0xff]
        %v1014 = vld [vmem:[#allocation5 + $0xd8] sm:$0xff]
        %v1015 = vld [vmem:[#allocation5 + $0xe0] sm:$0xff]
        %v1016 = vld [vmem:[#allocation5 + $0xe8] sm:$0xff]
        %v1017 = vld [vmem:[#allocation5 + $0xf0] sm:$0xff]
        %v1018 = vld [vmem:[#allocation5 + $0xf8] sm:$0xff]
        %v1019 = vld [vmem:[#allocation5 + $0x100] sm:$0xff]
        %v1020 = vld [vmem:[#allocation5 + $0x108] sm:$0xff]
        %v1021 = vld [vmem:[#allocation5 + $0x110] sm:$0xff]
        %v1022 = vld [vmem:[#allocation5 + $0x118] sm:$0xff]
        %v1023 = vld [vmem:[#allocation5 + $0x120] sm:$0xff]
        %v1024 = vld [vmem:[#allocation5 + $0x128] sm:$0xff]
        %v1025 = vld [vmem:[#allocation5 + $0x130] sm:$0xff]
        %v1026 = vld [vmem:[#allocation5 + $0x138] sm:$0xff]
        %v1027 = vld [vmem:[#allocation5 + $0x140] sm:$0xff]
        %v1028 = vld [vmem:[#allocation5 + $0x148] sm:$0xff]
        %v1029 = vld [vmem:[#allocation5 + $0x150] sm:$0xff]
        %v1030 = vld [vmem:[#allocation5 + $0x158] sm:$0xff]
        %v1031 = vld [vmem:[#allocation5 + $0x160] sm:$0xff]
        %v1032 = vld [vmem:[#allocation5 + $0x168] sm:$0xff]
        %v1033 = vld [vmem:[#allocation5 + $0x170] sm:$0xff]
        %v1034 = vld [vmem:[#allocation5 + $0x178] sm:$0xff]
        %v1035 = vld [vmem:[#allocation5 + $0x180] sm:$0xff]
        %v1036 = vld [vmem:[#allocation5 + $0x188] sm:$0xff]
        %v1037 = vld [vmem:[#allocation5 + $0x190] sm:$0xff]
        %v1038 = vld [vmem:[#allocation5 + $0x198] sm:$0xff]
        %v1039 = vld [vmem:[#allocation5 + $0x1a0] sm:$0xff]
        %v1040 = vld [vmem:[#allocation5 + $0x1a8] sm:$0xff]
        %v1041 = vld [vmem:[#allocation5 + $0x1b0] sm:$0xff]
        %v1042 = vld [vmem:[#allocation5 + $0x1b8] sm:$0xff]
        %v1043 = vld [vmem:[#allocation5 + $0x1c0] sm:$0xff]
        %v1044 = vld [vmem:[#allocation5 + $0x1c8] sm:$0xff]
        %v1045 = vld [vmem:[#allocation5 + $0x1d0] sm:$0xff]
        %v1046 = vld [vmem:[#allocation5 + $0x1d8] sm:$0xff]
        %v1047 = vld [vmem:[#allocation5 + $0x1e0] sm:$0xff]
        %v1048 = vld [vmem:[#allocation5 + $0x1e8] sm:$0xff]
        %v1049 = vld [vmem:[#allocation5 + $0x1f0] sm:$0xff]
        %v1050 = vld [vmem:[#allocation5 + $0x1f8] sm:$0xff]
        %v1051 = vld [vmem:[#allocation5 + $0x200] sm:$0xff]
        %v1052 = vld [vmem:[#allocation5 + $0x208] sm:$0xff]
        %v1053 = vld [vmem:[#allocation5 + $0x210] sm:$0xff]
        %v1054 = vld [vmem:[#allocation5 + $0x218] sm:$0xff]
        %v1055 = vld [vmem:[#allocation5 + $0x220] sm:$0xff]
        %v1056 = vld [vmem:[#allocation5 + $0x228] sm:$0xff]
        %v1057 = vld [vmem:[#allocation5 + $0x230] sm:$0xff]
        %v1058 = vld [vmem:[#allocation5 + $0x238] sm:$0xff]
        %v1059 = vld [vmem:[#allocation5 + $0x240] sm:$0xff]
        %v1060 = vld [vmem:[#allocation5 + $0x248] sm:$0xff]
        %v1061 = vld [vmem:[#allocation5 + $0x250] sm:$0xff]
        %v1062 = vld [vmem:[#allocation5 + $0x258] sm:$0xff]
        %v1063 = vld [vmem:[#allocation5 + $0x260] sm:$0xff]
        %v1064 = vld [vmem:[#allocation5 + $0x268] sm:$0xff]
        %v1065 = vld [vmem:[#allocation5 + $0x270] sm:$0xff]
        %v1066 = vld [vmem:[#allocation5 + $0x278] sm:$0xff]
        %v1067 = vld [vmem:[#allocation5 + $0x280] sm:$0xff]
        %v1068 = vld [vmem:[#allocation5 + $0x288] sm:$0xff]
        %v1069 = vld [vmem:[#allocation5 + $0x290] sm:$0xff]
        %v1070 = vld [vmem:[#allocation5 + $0x298] sm:$0xff]
        %v1071 = vld [vmem:[#allocation5 + $0x2a0] sm:$0xff]
        %v1072 = vld [vmem:[#allocation5 + $0x2a8] sm:$0xff]
        %v1073 = vld [vmem:[#allocation5 + $0x2b0] sm:$0xff]
        %v1074 = vld [vmem:[#allocation5 + $0x2b8] sm:$0xff]
        %v1075 = vld [vmem:[#allocation5 + $0x2c0] sm:$0xff]
        %v1076 = vld [vmem:[#allocation5 + $0x2c8] sm:$0xff]
        %v1077 = vld [vmem:[#allocation5 + $0x2d0] sm:$0xff]
        %v1078 = vld [vmem:[#allocation5 + $0x2d8] sm:$0xff]
        %v1079 = vld [vmem:[#allocation5 + $0x2e0] sm:$0xff]
        %v1080 = vld [vmem:[#allocation5 + $0x2e8] sm:$0xff]
        %v1081 = vld [vmem:[#allocation5 + $0x2f0] sm:$0xff]
        %v1082 = vld [vmem:[#allocation5 + $0x2f8] sm:$0xff]
        %v1083 = vld [vmem:[#allocation5 + $0x300] sm:$0xff]
        %v1084 = vld [vmem:[#allocation5 + $0x308] sm:$0xff]
        %v1085 = vld [vmem:[#allocation5 + $0x310] sm:$0xff]
        %v1086 = vld [vmem:[#allocation5 + $0x318] sm:$0xff]
        %v1087 = vld [vmem:[#allocation5 + $0x320] sm:$0xff]
        %v1088 = vld [vmem:[#allocation5 + $0x328] sm:$0xff]
        %v1089 = vld [vmem:[#allocation5 + $0x330] sm:$0xff]
        %v1090 = vld [vmem:[#allocation5 + $0x338] sm:$0xff]
        %v1091 = vld [vmem:[#allocation5 + $0x340] sm:$0xff]
        %v1092 = vld [vmem:[#allocation5 + $0x348] sm:$0xff]
        %v1093 = vld [vmem:[#allocation5 + $0x350] sm:$0xff]
        %v1094 = vld [vmem:[#allocation5 + $0x358] sm:$0xff]
        %v1095 = vld [vmem:[#allocation5 + $0x360] sm:$0xff]
        %v1096 = vld [vmem:[#allocation5 + $0x368] sm:$0xff]
        %v1097 = vld [vmem:[#allocation5 + $0x370] sm:$0xff]
        %v1098 = vld [vmem:[#allocation5 + $0x378] sm:$0xff]
        %v1099 = vld [vmem:[#allocation5 + $0x380] sm:$0xff]
        %v1100 = vld [vmem:[#allocation5 + $0x388] sm:$0xff]
        %v1101 = vld [vmem:[#allocation5 + $0x390] sm:$0xff]
        %v1102 = vld [vmem:[#allocation5 + $0x398] sm:$0xff]
        %v1103 = vld [vmem:[#allocation5 + $0x3a0] sm:$0xff]
        %v1104 = vld [vmem:[#allocation5 + $0x3a8] sm:$0xff]
        %v1105 = vld [vmem:[#allocation5 + $0x3b0] sm:$0xff]
        %v1106 = vld [vmem:[#allocation5 + $0x3b8] sm:$0xff]
        %v1107 = vld [vmem:[#allocation5 + $0x3c0] sm:$0xff]
        %v1108 = vld [vmem:[#allocation5 + $0x3c8] sm:$0xff]
        %v1109 = vld [vmem:[#allocation5 + $0x3d0] sm:$0xff]
        %v1110 = vld [vmem:[#allocation5 + $0x3d8] sm:$0xff]
        %v1111 = vld [vmem:[#allocation5 + $0x3e0] sm:$0xff]
        %v1112 = vld [vmem:[#allocation5 + $0x3e8] sm:$0xff]
        %v1113 = vld [vmem:[#allocation5 + $0x3f0] sm:$0xff]
        %v1114 = vld [vmem:[#allocation5 + $0x3f8] sm:$0xff]
        %v1115 = vld [vmem:[%s4] sm:$0xf]
        %v1117 = vlaneseq
        %v1118 = vshrl.u32 %v1117, 7
        %v1119 = vsub.s32 0, %v1118
        %v1120 = vrot.slane %v1115, %v1119
        %v1121 = vlaneseq
        %v1122 = vshrl.u32 %v1121, 7
        %v1123 = vsub.s32 1, %v1122
        %v1124 = vrot.slane %v1115, %v1123
        %v1125 = vlaneseq
        %v1126 = vshrl.u32 %v1125, 7
        %v1127 = vsub.s32 2, %v1126
        %v1128 = vrot.slane %v1115, %v1127
        %v1129 = vlaneseq
        %v1130 = vshrl.u32 %v1129, 7
        %v1131 = vsub.s32 3, %v1130
        %v1132 = vrot.slane %v1115, %v1131
        %v1265 = vunpack.c.l.b16 %v987
        %v1266 = vunpack.c.h.b16 %v987
        %v1267 = vunpack.c.l.b16 %v988
        %v1268 = vunpack.c.h.b16 %v988
        %v1269 = vunpack.c.l.b16 %v989
        %v1270 = vunpack.c.h.b16 %v989
        %v1271 = vunpack.c.l.b16 %v990
        %v1272 = vunpack.c.h.b16 %v990
        %v1273 = vunpack.c.l.b16 %v991
        %v1274 = vunpack.c.h.b16 %v991
        %v1275 = vunpack.c.l.b16 %v992
        %v1276 = vunpack.c.h.b16 %v992
        %v1277 = vunpack.c.l.b16 %v993
        %v1278 = vunpack.c.h.b16 %v993
        %v1279 = vunpack.c.l.b16 %v994
        %v1280 = vunpack.c.h.b16 %v994
        %v1281 = vunpack.c.l.b16 %v995
        %v1282 = vunpack.c.h.b16 %v995
        %v1283 = vunpack.c.l.b16 %v996
        %v1284 = vunpack.c.h.b16 %v996
        %v1285 = vunpack.c.l.b16 %v997
        %v1286 = vunpack.c.h.b16 %v997
        %v1287 = vunpack.c.l.b16 %v998
        %v1288 = vunpack.c.h.b16 %v998
        %v1289 = vunpack.c.l.b16 %v999
        %v1290 = vunpack.c.h.b16 %v999
        %v1291 = vunpack.c.l.b16 %v1000
        %v1292 = vunpack.c.h.b16 %v1000
        %v1293 = vunpack.c.l.b16 %v1001
        %v1294 = vunpack.c.h.b16 %v1001
        %v1295 = vunpack.c.l.b16 %v1002
        %v1296 = vunpack.c.h.b16 %v1002
        %v1297 = vunpack.c.l.b16 %v1003
        %v1298 = vunpack.c.h.b16 %v1003
        %v1299 = vunpack.c.l.b16 %v1004
        %v1300 = vunpack.c.h.b16 %v1004
        %v1301 = vunpack.c.l.b16 %v1005
        %v1302 = vunpack.c.h.b16 %v1005
        %v1303 = vunpack.c.l.b16 %v1006
        %v1304 = vunpack.c.h.b16 %v1006
        %v1305 = vunpack.c.l.b16 %v1007
        %v1306 = vunpack.c.h.b16 %v1007
        %v1307 = vunpack.c.l.b16 %v1008
        %v1308 = vunpack.c.h.b16 %v1008
        %v1309 = vunpack.c.l.b16 %v1009
        %v1310 = vunpack.c.h.b16 %v1009
        %v1311 = vunpack.c.l.b16 %v1010
        %v1312 = vunpack.c.h.b16 %v1010
        %v1313 = vunpack.c.l.b16 %v1011
        %v1314 = vunpack.c.h.b16 %v1011
        %v1315 = vunpack.c.l.b16 %v1012
        %v1316 = vunpack.c.h.b16 %v1012
        %v1317 = vunpack.c.l.b16 %v1013
        %v1318 = vunpack.c.h.b16 %v1013
        %v1319 = vunpack.c.l.b16 %v1014
        %v1320 = vunpack.c.h.b16 %v1014
        %v1321 = vunpack.c.l.b16 %v1015
        %v1322 = vunpack.c.h.b16 %v1015
        %v1323 = vunpack.c.l.b16 %v1016
        %v1324 = vunpack.c.h.b16 %v1016
        %v1325 = vunpack.c.l.b16 %v1017
        %v1326 = vunpack.c.h.b16 %v1017
        %v1327 = vunpack.c.l.b16 %v1018
        %v1328 = vunpack.c.h.b16 %v1018
        %v1329 = vunpack.c.l.b16 %v1019
        %v1330 = vunpack.c.h.b16 %v1019
        %v1331 = vunpack.c.l.b16 %v1020
        %v1332 = vunpack.c.h.b16 %v1020
        %v1333 = vunpack.c.l.b16 %v1021
        %v1334 = vunpack.c.h.b16 %v1021
        %v1335 = vunpack.c.l.b16 %v1022
        %v1336 = vunpack.c.h.b16 %v1022
        %v1337 = vunpack.c.l.b16 %v1023
        %v1338 = vunpack.c.h.b16 %v1023
        %v1339 = vunpack.c.l.b16 %v1024
        %v1340 = vunpack.c.h.b16 %v1024
        %v1341 = vunpack.c.l.b16 %v1025
        %v1342 = vunpack.c.h.b16 %v1025
        %v1343 = vunpack.c.l.b16 %v1026
        %v1344 = vunpack.c.h.b16 %v1026
        %v1345 = vunpack.c.l.b16 %v1027
        %v1346 = vunpack.c.h.b16 %v1027
        %v1347 = vunpack.c.l.b16 %v1028
        %v1348 = vunpack.c.h.b16 %v1028
        %v1349 = vunpack.c.l.b16 %v1029
        %v1350 = vunpack.c.h.b16 %v1029
        %v1351 = vunpack.c.l.b16 %v1030
        %v1352 = vunpack.c.h.b16 %v1030
        %v1353 = vunpack.c.l.b16 %v1031
        %v1354 = vunpack.c.h.b16 %v1031
        %v1355 = vunpack.c.l.b16 %v1032
        %v1356 = vunpack.c.h.b16 %v1032
        %v1357 = vunpack.c.l.b16 %v1033
        %v1358 = vunpack.c.h.b16 %v1033
        %v1359 = vunpack.c.l.b16 %v1034
        %v1360 = vunpack.c.h.b16 %v1034
        %v1361 = vunpack.c.l.b16 %v1035
        %v1362 = vunpack.c.h.b16 %v1035
        %v1363 = vunpack.c.l.b16 %v1036
        %v1364 = vunpack.c.h.b16 %v1036
        %v1365 = vunpack.c.l.b16 %v1037
        %v1366 = vunpack.c.h.b16 %v1037
        %v1367 = vunpack.c.l.b16 %v1038
        %v1368 = vunpack.c.h.b16 %v1038
        %v1369 = vunpack.c.l.b16 %v1039
        %v1370 = vunpack.c.h.b16 %v1039
        %v1371 = vunpack.c.l.b16 %v1040
        %v1372 = vunpack.c.h.b16 %v1040
        %v1373 = vunpack.c.l.b16 %v1041
        %v1374 = vunpack.c.h.b16 %v1041
        %v1375 = vunpack.c.l.b16 %v1042
        %v1376 = vunpack.c.h.b16 %v1042
        %v1377 = vunpack.c.l.b16 %v1043
        %v1378 = vunpack.c.h.b16 %v1043
        %v1379 = vunpack.c.l.b16 %v1044
        %v1380 = vunpack.c.h.b16 %v1044
        %v1381 = vunpack.c.l.b16 %v1045
        %v1382 = vunpack.c.h.b16 %v1045
        %v1383 = vunpack.c.l.b16 %v1046
        %v1384 = vunpack.c.h.b16 %v1046
        %v1385 = vunpack.c.l.b16 %v1047
        %v1386 = vunpack.c.h.b16 %v1047
        %v1387 = vunpack.c.l.b16 %v1048
        %v1388 = vunpack.c.h.b16 %v1048
        %v1389 = vunpack.c.l.b16 %v1049
        %v1390 = vunpack.c.h.b16 %v1049
        %v1391 = vunpack.c.l.b16 %v1050
        %v1392 = vunpack.c.h.b16 %v1050
        %v1393 = vunpack.c.l.b16 %v1051
        %v1394 = vunpack.c.h.b16 %v1051
        %v1395 = vunpack.c.l.b16 %v1052
        %v1396 = vunpack.c.h.b16 %v1052
        %v1397 = vunpack.c.l.b16 %v1053
        %v1398 = vunpack.c.h.b16 %v1053
        %v1399 = vunpack.c.l.b16 %v1054
        %v1400 = vunpack.c.h.b16 %v1054
        %v1401 = vunpack.c.l.b16 %v1055
        %v1402 = vunpack.c.h.b16 %v1055
        %v1403 = vunpack.c.l.b16 %v1056
        %v1404 = vunpack.c.h.b16 %v1056
        %v1405 = vunpack.c.l.b16 %v1057
        %v1406 = vunpack.c.h.b16 %v1057
        %v1407 = vunpack.c.l.b16 %v1058
        %v1408 = vunpack.c.h.b16 %v1058
        %v1409 = vunpack.c.l.b16 %v1059
        %v1410 = vunpack.c.h.b16 %v1059
        %v1411 = vunpack.c.l.b16 %v1060
        %v1412 = vunpack.c.h.b16 %v1060
        %v1413 = vunpack.c.l.b16 %v1061
        %v1414 = vunpack.c.h.b16 %v1061
        %v1415 = vunpack.c.l.b16 %v1062
        %v1416 = vunpack.c.h.b16 %v1062
        %v1417 = vunpack.c.l.b16 %v1063
        %v1418 = vunpack.c.h.b16 %v1063
        %v1419 = vunpack.c.l.b16 %v1064
        %v1420 = vunpack.c.h.b16 %v1064
        %v1421 = vunpack.c.l.b16 %v1065
        %v1422 = vunpack.c.h.b16 %v1065
        %v1423 = vunpack.c.l.b16 %v1066
        %v1424 = vunpack.c.h.b16 %v1066
        %v1425 = vunpack.c.l.b16 %v1067
        %v1426 = vunpack.c.h.b16 %v1067
        %v1427 = vunpack.c.l.b16 %v1068
        %v1428 = vunpack.c.h.b16 %v1068
        %v1429 = vunpack.c.l.b16 %v1069
        %v1430 = vunpack.c.h.b16 %v1069
        %v1431 = vunpack.c.l.b16 %v1070
        %v1432 = vunpack.c.h.b16 %v1070
        %v1433 = vunpack.c.l.b16 %v1071
        %v1434 = vunpack.c.h.b16 %v1071
        %v1435 = vunpack.c.l.b16 %v1072
        %v1436 = vunpack.c.h.b16 %v1072
        %v1437 = vunpack.c.l.b16 %v1073
        %v1438 = vunpack.c.h.b16 %v1073
        %v1439 = vunpack.c.l.b16 %v1074
        %v1440 = vunpack.c.h.b16 %v1074
        %v1441 = vunpack.c.l.b16 %v1075
        %v1442 = vunpack.c.h.b16 %v1075
        %v1443 = vunpack.c.l.b16 %v1076
        %v1444 = vunpack.c.h.b16 %v1076
        %v1445 = vunpack.c.l.b16 %v1077
        %v1446 = vunpack.c.h.b16 %v1077
        %v1447 = vunpack.c.l.b16 %v1078
        %v1448 = vunpack.c.h.b16 %v1078
        %v1449 = vunpack.c.l.b16 %v1079
        %v1450 = vunpack.c.h.b16 %v1079
        %v1451 = vunpack.c.l.b16 %v1080
        %v1452 = vunpack.c.h.b16 %v1080
        %v1453 = vunpack.c.l.b16 %v1081
        %v1454 = vunpack.c.h.b16 %v1081
        %v1455 = vunpack.c.l.b16 %v1082
        %v1456 = vunpack.c.h.b16 %v1082
        %v1457 = vunpack.c.l.b16 %v1083
        %v1458 = vunpack.c.h.b16 %v1083
        %v1459 = vunpack.c.l.b16 %v1084
        %v1460 = vunpack.c.h.b16 %v1084
        %v1461 = vunpack.c.l.b16 %v1085
        %v1462 = vunpack.c.h.b16 %v1085
        %v1463 = vunpack.c.l.b16 %v1086
        %v1464 = vunpack.c.h.b16 %v1086
        %v1465 = vunpack.c.l.b16 %v1087
        %v1466 = vunpack.c.h.b16 %v1087
        %v1467 = vunpack.c.l.b16 %v1088
        %v1468 = vunpack.c.h.b16 %v1088
        %v1469 = vunpack.c.l.b16 %v1089
        %v1470 = vunpack.c.h.b16 %v1089
        %v1471 = vunpack.c.l.b16 %v1090
        %v1472 = vunpack.c.h.b16 %v1090
        %v1473 = vunpack.c.l.b16 %v1091
        %v1474 = vunpack.c.h.b16 %v1091
        %v1475 = vunpack.c.l.b16 %v1092
        %v1476 = vunpack.c.h.b16 %v1092
        %v1477 = vunpack.c.l.b16 %v1093
        %v1478 = vunpack.c.h.b16 %v1093
        %v1479 = vunpack.c.l.b16 %v1094
        %v1480 = vunpack.c.h.b16 %v1094
        %v1481 = vunpack.c.l.b16 %v1095
        %v1482 = vunpack.c.h.b16 %v1095
        %v1483 = vunpack.c.l.b16 %v1096
        %v1484 = vunpack.c.h.b16 %v1096
        %v1485 = vunpack.c.l.b16 %v1097
        %v1486 = vunpack.c.h.b16 %v1097
        %v1487 = vunpack.c.l.b16 %v1098
        %v1488 = vunpack.c.h.b16 %v1098
        %v1489 = vunpack.c.l.b16 %v1099
        %v1490 = vunpack.c.h.b16 %v1099
        %v1491 = vunpack.c.l.b16 %v1100
        %v1492 = vunpack.c.h.b16 %v1100
        %v1493 = vunpack.c.l.b16 %v1101
        %v1494 = vunpack.c.h.b16 %v1101
        %v1495 = vunpack.c.l.b16 %v1102
        %v1496 = vunpack.c.h.b16 %v1102
        %v1497 = vunpack.c.l.b16 %v1103
        %v1498 = vunpack.c.h.b16 %v1103
        %v1499 = vunpack.c.l.b16 %v1104
        %v1500 = vunpack.c.h.b16 %v1104
        %v1501 = vunpack.c.l.b16 %v1105
        %v1502 = vunpack.c.h.b16 %v1105
        %v1503 = vunpack.c.l.b16 %v1106
        %v1504 = vunpack.c.h.b16 %v1106
        %v1505 = vunpack.c.l.b16 %v1107
        %v1506 = vunpack.c.h.b16 %v1107
        %v1507 = vunpack.c.l.b16 %v1108
        %v1508 = vunpack.c.h.b16 %v1108
        %v1509 = vunpack.c.l.b16 %v1109
        %v1510 = vunpack.c.h.b16 %v1109
        %v1511 = vunpack.c.l.b16 %v1110
        %v1512 = vunpack.c.h.b16 %v1110
        %v1513 = vunpack.c.l.b16 %v1111
        %v1514 = vunpack.c.h.b16 %v1111
        %v1515 = vunpack.c.l.b16 %v1112
        %v1516 = vunpack.c.h.b16 %v1112
        %v1517 = vunpack.c.l.b16 %v1113
        %v1518 = vunpack.c.h.b16 %v1113
        %v1519 = vunpack.c.l.b16 %v1114
        %v1520 = vunpack.c.h.b16 %v1114
        %v1521 = vpack.c.b16 %v1269, %v1265
        %v1522 = vpack.c.b16 %v1270, %v1266
        %v1523 = vpack.c.b16 %v1271, %v1267
        %v1524 = vpack.c.b16 %v1272, %v1268
        %v1525 = vpack.c.b16 %v1277, %v1273
        %v1526 = vpack.c.b16 %v1278, %v1274
        %v1527 = vpack.c.b16 %v1279, %v1275
        %v1528 = vpack.c.b16 %v1280, %v1276
        %v1529 = vpack.c.b16 %v1285, %v1281
        %v1530 = vpack.c.b16 %v1286, %v1282
        %v1531 = vpack.c.b16 %v1287, %v1283
        %v1532 = vpack.c.b16 %v1288, %v1284
        %v1533 = vpack.c.b16 %v1293, %v1289
        %v1534 = vpack.c.b16 %v1294, %v1290
        %v1535 = vpack.c.b16 %v1295, %v1291
        %v1536 = vpack.c.b16 %v1296, %v1292
        %v1537 = vpack.c.b16 %v1301, %v1297
        %v1538 = vpack.c.b16 %v1302, %v1298
        %v1539 = vpack.c.b16 %v1303, %v1299
        %v1540 = vpack.c.b16 %v1304, %v1300
        %v1541 = vpack.c.b16 %v1309, %v1305
        %v1542 = vpack.c.b16 %v1310, %v1306
        %v1543 = vpack.c.b16 %v1311, %v1307
        %v1544 = vpack.c.b16 %v1312, %v1308
        %v1545 = vpack.c.b16 %v1317, %v1313
        %v1546 = vpack.c.b16 %v1318, %v1314
        %v1547 = vpack.c.b16 %v1319, %v1315
        %v1548 = vpack.c.b16 %v1320, %v1316
        %v1549 = vpack.c.b16 %v1325, %v1321
        %v1550 = vpack.c.b16 %v1326, %v1322
        %v1551 = vpack.c.b16 %v1327, %v1323
        %v1552 = vpack.c.b16 %v1328, %v1324
        %v1553 = vpack.c.b16 %v1333, %v1329
        %v1554 = vpack.c.b16 %v1334, %v1330
        %v1555 = vpack.c.b16 %v1335, %v1331
        %v1556 = vpack.c.b16 %v1336, %v1332
        %v1557 = vpack.c.b16 %v1341, %v1337
        %v1558 = vpack.c.b16 %v1342, %v1338
        %v1559 = vpack.c.b16 %v1343, %v1339
        %v1560 = vpack.c.b16 %v1344, %v1340
        %v1561 = vpack.c.b16 %v1349, %v1345
        %v1562 = vpack.c.b16 %v1350, %v1346
        %v1563 = vpack.c.b16 %v1351, %v1347
        %v1564 = vpack.c.b16 %v1352, %v1348
        %v1565 = vpack.c.b16 %v1357, %v1353
        %v1566 = vpack.c.b16 %v1358, %v1354
        %v1567 = vpack.c.b16 %v1359, %v1355
        %v1568 = vpack.c.b16 %v1360, %v1356
        %v1569 = vpack.c.b16 %v1365, %v1361
        %v1570 = vpack.c.b16 %v1366, %v1362
        %v1571 = vpack.c.b16 %v1367, %v1363
        %v1572 = vpack.c.b16 %v1368, %v1364
        %v1573 = vpack.c.b16 %v1373, %v1369
        %v1574 = vpack.c.b16 %v1374, %v1370
        %v1575 = vpack.c.b16 %v1375, %v1371
        %v1576 = vpack.c.b16 %v1376, %v1372
        %v1577 = vpack.c.b16 %v1381, %v1377
        %v1578 = vpack.c.b16 %v1382, %v1378
        %v1579 = vpack.c.b16 %v1383, %v1379
        %v1580 = vpack.c.b16 %v1384, %v1380
        %v1581 = vpack.c.b16 %v1389, %v1385
        %v1582 = vpack.c.b16 %v1390, %v1386
        %v1583 = vpack.c.b16 %v1391, %v1387
        %v1584 = vpack.c.b16 %v1392, %v1388
        %v1585 = vpack.c.b16 %v1397, %v1393
        %v1586 = vpack.c.b16 %v1398, %v1394
        %v1587 = vpack.c.b16 %v1399, %v1395
        %v1588 = vpack.c.b16 %v1400, %v1396
        %v1589 = vpack.c.b16 %v1405, %v1401
        %v1590 = vpack.c.b16 %v1406, %v1402
        %v1591 = vpack.c.b16 %v1407, %v1403
        %v1592 = vpack.c.b16 %v1408, %v1404
        %v1593 = vpack.c.b16 %v1413, %v1409
        %v1594 = vpack.c.b16 %v1414, %v1410
        %v1595 = vpack.c.b16 %v1415, %v1411
        %v1596 = vpack.c.b16 %v1416, %v1412
        %v1597 = vpack.c.b16 %v1421, %v1417
        %v1598 = vpack.c.b16 %v1422, %v1418
        %v1599 = vpack.c.b16 %v1423, %v1419
        %v1600 = vpack.c.b16 %v1424, %v1420
        %v1601 = vpack.c.b16 %v1429, %v1425
        %v1602 = vpack.c.b16 %v1430, %v1426
        %v1603 = vpack.c.b16 %v1431, %v1427
        %v1604 = vpack.c.b16 %v1432, %v1428
        %v1605 = vpack.c.b16 %v1437, %v1433
        %v1606 = vpack.c.b16 %v1438, %v1434
        %v1607 = vpack.c.b16 %v1439, %v1435
        %v1608 = vpack.c.b16 %v1440, %v1436
        %v1609 = vpack.c.b16 %v1445, %v1441
        %v1610 = vpack.c.b16 %v1446, %v1442
        %v1611 = vpack.c.b16 %v1447, %v1443
        %v1612 = vpack.c.b16 %v1448, %v1444
        %v1613 = vpack.c.b16 %v1453, %v1449
        %v1614 = vpack.c.b16 %v1454, %v1450
        %v1615 = vpack.c.b16 %v1455, %v1451
        %v1616 = vpack.c.b16 %v1456, %v1452
        %v1617 = vpack.c.b16 %v1461, %v1457
        %v1618 = vpack.c.b16 %v1462, %v1458
        %v1619 = vpack.c.b16 %v1463, %v1459
        %v1620 = vpack.c.b16 %v1464, %v1460
        %v1621 = vpack.c.b16 %v1469, %v1465
        %v1622 = vpack.c.b16 %v1470, %v1466
        %v1623 = vpack.c.b16 %v1471, %v1467
        %v1624 = vpack.c.b16 %v1472, %v1468
        %v1625 = vpack.c.b16 %v1477, %v1473
        %v1626 = vpack.c.b16 %v1478, %v1474
        %v1627 = vpack.c.b16 %v1479, %v1475
        %v1628 = vpack.c.b16 %v1480, %v1476
        %v1629 = vpack.c.b16 %v1485, %v1481
        %v1630 = vpack.c.b16 %v1486, %v1482
        %v1631 = vpack.c.b16 %v1487, %v1483
        %v1632 = vpack.c.b16 %v1488, %v1484
        %v1633 = vpack.c.b16 %v1493, %v1489
        %v1634 = vpack.c.b16 %v1494, %v1490
        %v1635 = vpack.c.b16 %v1495, %v1491
        %v1636 = vpack.c.b16 %v1496, %v1492
        %v1637 = vpack.c.b16 %v1501, %v1497
        %v1638 = vpack.c.b16 %v1502, %v1498
        %v1639 = vpack.c.b16 %v1503, %v1499
        %v1640 = vpack.c.b16 %v1504, %v1500
        %v1641 = vpack.c.b16 %v1509, %v1505
        %v1642 = vpack.c.b16 %v1510, %v1506
        %v1643 = vpack.c.b16 %v1511, %v1507
        %v1644 = vpack.c.b16 %v1512, %v1508
        %v1645 = vpack.c.b16 %v1517, %v1513
        %v1646 = vpack.c.b16 %v1518, %v1514
        %v1647 = vpack.c.b16 %v1519, %v1515
        %v1648 = vpack.c.b16 %v1520, %v1516
        %1777 = vmatprep.subr.bf16.mxu0 %v1550
        %1778 = vmatpush1.bf16.msra.mxu0 %v1549
        %1779 = vmatprep.subr.bf16.mxu0 %v1546
        %1780 = vmatpush1.bf16.msra.mxu0 %v1545
        %1781 = vmatprep.subr.bf16.mxu0 %v1542
        %1782 = vmatpush1.bf16.msra.mxu0 %v1541
        %1783 = vmatprep.subr.bf16.mxu0 %v1538
        %1784 = vmatpush1.bf16.msra.mxu0 %v1537
        %1785 = vmatprep.subr.bf16.mxu0 %v1534
        %1786 = vmatpush1.bf16.msra.mxu0 %v1533
        %1787 = vmatprep.subr.bf16.mxu0 %v1530
        %1788 = vmatpush1.bf16.msra.mxu0 %v1529
        %1789 = vmatprep.subr.bf16.mxu0 %v1526
        %1790 = vmatpush1.bf16.msra.mxu0 %v1525
        %1791 = vmatprep.subr.bf16.mxu0 %v1522
        %1792 = vmatpush1.bf16.msra.mxu0 %v1521
        %1793 = vmatprep.subr.bf16.mxu0 %v1582
        %1794 = vmatpush2.bf16.msra.mxu0 %v1581
        %1795 = vmatprep.subr.bf16.mxu0 %v1578
        %1796 = vmatpush2.bf16.msra.mxu0 %v1577
        %1797 = vmatprep.subr.bf16.mxu0 %v1574
        %1798 = vmatpush2.bf16.msra.mxu0 %v1573
        %1799 = vmatprep.subr.bf16.mxu0 %v1570
        %1800 = vmatpush2.bf16.msra.mxu0 %v1569
        %1801 = vmatprep.subr.bf16.mxu0 %v1566
        %1802 = vmatpush2.bf16.msra.mxu0 %v1565
        %1803 = vmatprep.subr.bf16.mxu0 %v1562
        %1804 = vmatpush2.bf16.msra.mxu0 %v1561
        %1805 = vmatprep.subr.bf16.mxu0 %v1558
        %1806 = vmatpush2.bf16.msra.mxu0 %v1557
        %1807 = vmatprep.subr.bf16.mxu0 %v1554
        %1808 = vmatpush2.bf16.msra.mxu0 %v1553
        %1809 = vmatprep.mubr.bf16.mxu0 %v956
        %1810 = vmatmul.mubr.bf16.gmra.mxu0 %v955
        %v1811 = vpop.f32.mrf.mxu0
        %v1812 = vadd.f32 %v1120, %v1811
        %v1813 = vpop.f32.mrf.mxu0
        %v1814 = vadd.f32 %v1124, %v1813
        %v1815 = vpop.f32.mrf.mxu0
        %v1816 = vadd.f32 %v1120, %v1815
        %v1817 = vpop.f32.mrf.mxu0
        %v1818 = vadd.f32 %v1124, %v1817
        %1819 = vmatprep.mubr.bf16.mxu0 %v960
        %1820 = vmatmul.mubr.bf16.gmra.mxu0 %v959
        %v1821 = vpop.f32.mrf.mxu0
        %v1822 = vadd.f32 %v1120, %v1821
        %v1823 = vpop.f32.mrf.mxu0
        %v1824 = vadd.f32 %v1124, %v1823
        %v1825 = vpop.f32.mrf.mxu0
        %v1826 = vadd.f32 %v1120, %v1825
        %v1827 = vpop.f32.mrf.mxu0
        %v1828 = vadd.f32 %v1124, %v1827
        %1829 = vmatprep.mubr.bf16.mxu0 %v964
        %1830 = vmatmul.mubr.bf16.gmra.mxu0 %v963
        %v1831 = vpop.f32.mrf.mxu0
        %v1832 = vadd.f32 %v1120, %v1831
        %v1833 = vpop.f32.mrf.mxu0
        %v1834 = vadd.f32 %v1124, %v1833
        %v1835 = vpop.f32.mrf.mxu0
        %v1836 = vadd.f32 %v1120, %v1835
        %v1837 = vpop.f32.mrf.mxu0
        %v1838 = vadd.f32 %v1124, %v1837
        %1839 = vmatprep.mubr.bf16.mxu0 %v968
        %1840 = vmatmul.mubr.bf16.gmra.mxu0 %v967
        %v1841 = vpop.f32.mrf.mxu0
        %v1842 = vadd.f32 %v1120, %v1841
        %v1843 = vpop.f32.mrf.mxu0
        %v1844 = vadd.f32 %v1124, %v1843
        %v1845 = vpop.f32.mrf.mxu0
        %v1846 = vadd.f32 %v1120, %v1845
        %v1847 = vpop.f32.mrf.mxu0
        %v1848 = vadd.f32 %v1124, %v1847
        %1849 = vmatprep.mubr.bf16.mxu0 %v972
        %1850 = vmatmul.mubr.bf16.gmra.mxu0 %v971
        %v1851 = vpop.f32.mrf.mxu0
        %v1852 = vadd.f32 %v1120, %v1851
        %v1853 = vpop.f32.mrf.mxu0
        %v1854 = vadd.f32 %v1124, %v1853
        %v1855 = vpop.f32.mrf.mxu0
        %v1856 = vadd.f32 %v1120, %v1855
        %v1857 = vpop.f32.mrf.mxu0
        %v1858 = vadd.f32 %v1124, %v1857
        %1859 = vmatprep.mubr.bf16.mxu0 %v976
        %1860 = vmatmul.mubr.bf16.gmra.mxu0 %v975
        %v1861 = vpop.f32.mrf.mxu0
        %v1862 = vadd.f32 %v1120, %v1861
        %v1863 = vpop.f32.mrf.mxu0
        %v1864 = vadd.f32 %v1124, %v1863
        %v1865 = vpop.f32.mrf.mxu0
        %v1866 = vadd.f32 %v1120, %v1865
        %v1867 = vpop.f32.mrf.mxu0
        %v1868 = vadd.f32 %v1124, %v1867
        %1869 = vmatprep.mubr.bf16.mxu0 %v980
        %1870 = vmatmul.mubr.bf16.gmra.mxu0 %v979
        %v1871 = vpop.f32.mrf.mxu0
        %v1872 = vadd.f32 %v1120, %v1871
        %v1873 = vpop.f32.mrf.mxu0
        %v1874 = vadd.f32 %v1124, %v1873
        %v1875 = vpop.f32.mrf.mxu0
        %v1876 = vadd.f32 %v1120, %v1875
        %v1877 = vpop.f32.mrf.mxu0
        %v1878 = vadd.f32 %v1124, %v1877
        %1879 = vmatprep.mubr.bf16.mxu0 %v984
        %1880 = vmatmul.mubr.bf16.gmra.mxu0 %v983
        %v1881 = vpop.f32.mrf.mxu0
        %v1882 = vadd.f32 %v1120, %v1881
        %v1883 = vpop.f32.mrf.mxu0
        %v1884 = vadd.f32 %v1124, %v1883
        %v1885 = vpop.f32.mrf.mxu0
        %v1886 = vadd.f32 %v1120, %v1885
        %v1887 = vpop.f32.mrf.mxu0
        %v1888 = vadd.f32 %v1124, %v1887
        %1889 = vdwg.mxu0
        %1890 = vmatprep.subr.bf16.mxu0 %v1614
        %1891 = vmatpush1.bf16.msra.mxu0 %v1613
        %1892 = vmatprep.subr.bf16.mxu0 %v1610
        %1893 = vmatpush1.bf16.msra.mxu0 %v1609
        %1894 = vmatprep.subr.bf16.mxu0 %v1606
        %1895 = vmatpush1.bf16.msra.mxu0 %v1605
        %1896 = vmatprep.subr.bf16.mxu0 %v1602
        %1897 = vmatpush1.bf16.msra.mxu0 %v1601
        %1898 = vmatprep.subr.bf16.mxu0 %v1598
        %1899 = vmatpush1.bf16.msra.mxu0 %v1597
        %1900 = vmatprep.subr.bf16.mxu0 %v1594
        %1901 = vmatpush1.bf16.msra.mxu0 %v1593
        %1902 = vmatprep.subr.bf16.mxu0 %v1590
        %1903 = vmatpush1.bf16.msra.mxu0 %v1589
        %1904 = vmatprep.subr.bf16.mxu0 %v1586
        %1905 = vmatpush1.bf16.msra.mxu0 %v1585
        %1906 = vmatprep.subr.bf16.mxu0 %v1646
        %1907 = vmatpush2.bf16.msra.mxu0 %v1645
        %1908 = vmatprep.subr.bf16.mxu0 %v1642
        %1909 = vmatpush2.bf16.msra.mxu0 %v1641
        %1910 = vmatprep.subr.bf16.mxu0 %v1638
        %1911 = vmatpush2.bf16.msra.mxu0 %v1637
        %1912 = vmatprep.subr.bf16.mxu0 %v1634
        %1913 = vmatpush2.bf16.msra.mxu0 %v1633
        %1914 = vmatprep.subr.bf16.mxu0 %v1630
        %1915 = vmatpush2.bf16.msra.mxu0 %v1629
        %1916 = vmatprep.subr.bf16.mxu0 %v1626
        %1917 = vmatpush2.bf16.msra.mxu0 %v1625
        %1918 = vmatprep.subr.bf16.mxu0 %v1622
        %1919 = vmatpush2.bf16.msra.mxu0 %v1621
        %1920 = vmatprep.subr.bf16.mxu0 %v1618
        %1921 = vmatpush2.bf16.msra.mxu0 %v1617
        %1922 = vmatprep.mubr.bf16.mxu0 %v958
        %1923 = vmatmul.mubr.bf16.gmra.mxu0 %v957
        %v1924 = vpop.f32.mrf.mxu0
        %v1925 = vadd.f32 %v1812, %v1924
        %v1926 = vpop.f32.mrf.mxu0
        %v1927 = vadd.f32 %v1814, %v1926
        %v1928 = vpop.f32.mrf.mxu0
        %v1929 = vadd.f32 %v1816, %v1928
        %v1930 = vpop.f32.mrf.mxu0
        %v1931 = vadd.f32 %v1818, %v1930
        %1932 = vmatprep.mubr.bf16.mxu0 %v962
        %1933 = vmatmul.mubr.bf16.gmra.mxu0 %v961
        %v1934 = vpop.f32.mrf.mxu0
        %v1935 = vadd.f32 %v1822, %v1934
        %v1936 = vpop.f32.mrf.mxu0
        %v1937 = vadd.f32 %v1824, %v1936
        %v1938 = vpop.f32.mrf.mxu0
        %v1939 = vadd.f32 %v1826, %v1938
        %v1940 = vpop.f32.mrf.mxu0
        %v1941 = vadd.f32 %v1828, %v1940
        %1942 = vmatprep.mubr.bf16.mxu0 %v966
        %1943 = vmatmul.mubr.bf16.gmra.mxu0 %v965
        %v1944 = vpop.f32.mrf.mxu0
        %v1945 = vadd.f32 %v1832, %v1944
        %v1946 = vpop.f32.mrf.mxu0
        %v1947 = vadd.f32 %v1834, %v1946
        %v1948 = vpop.f32.mrf.mxu0
        %v1949 = vadd.f32 %v1836, %v1948
        %v1950 = vpop.f32.mrf.mxu0
        %v1951 = vadd.f32 %v1838, %v1950
        %1952 = vmatprep.mubr.bf16.mxu0 %v970
        %1953 = vmatmul.mubr.bf16.gmra.mxu0 %v969
        %v1954 = vpop.f32.mrf.mxu0
        %v1955 = vadd.f32 %v1842, %v1954
        %v1956 = vpop.f32.mrf.mxu0
        %v1957 = vadd.f32 %v1844, %v1956
        %v1958 = vpop.f32.mrf.mxu0
        %v1959 = vadd.f32 %v1846, %v1958
        %v1960 = vpop.f32.mrf.mxu0
        %v1961 = vadd.f32 %v1848, %v1960
        %1962 = vmatprep.mubr.bf16.mxu0 %v974
        %1963 = vmatmul.mubr.bf16.gmra.mxu0 %v973
        %v1964 = vpop.f32.mrf.mxu0
        %v1965 = vadd.f32 %v1852, %v1964
        %v1966 = vpop.f32.mrf.mxu0
        %v1967 = vadd.f32 %v1854, %v1966
        %v1968 = vpop.f32.mrf.mxu0
        %v1969 = vadd.f32 %v1856, %v1968
        %v1970 = vpop.f32.mrf.mxu0
        %v1971 = vadd.f32 %v1858, %v1970
        %1972 = vmatprep.mubr.bf16.mxu0 %v978
        %1973 = vmatmul.mubr.bf16.gmra.mxu0 %v977
        %v1974 = vpop.f32.mrf.mxu0
        %v1975 = vadd.f32 %v1862, %v1974
        %v1976 = vpop.f32.mrf.mxu0
        %v1977 = vadd.f32 %v1864, %v1976
        %v1978 = vpop.f32.mrf.mxu0
        %v1979 = vadd.f32 %v1866, %v1978
        %v1980 = vpop.f32.mrf.mxu0
        %v1981 = vadd.f32 %v1868, %v1980
        %1982 = vmatprep.mubr.bf16.mxu0 %v982
        %1983 = vmatmul.mubr.bf16.gmra.mxu0 %v981
        %v1984 = vpop.f32.mrf.mxu0
        %v1985 = vadd.f32 %v1872, %v1984
        %v1986 = vpop.f32.mrf.mxu0
        %v1987 = vadd.f32 %v1874, %v1986
        %v1988 = vpop.f32.mrf.mxu0
        %v1989 = vadd.f32 %v1876, %v1988
        %v1990 = vpop.f32.mrf.mxu0
        %v1991 = vadd.f32 %v1878, %v1990
        %1992 = vmatprep.mubr.bf16.mxu0 %v986
        %1993 = vmatmul.mubr.bf16.gmra.mxu0 %v985
        %v1994 = vpop.f32.mrf.mxu0
        %v1995 = vadd.f32 %v1882, %v1994
        %v1996 = vpop.f32.mrf.mxu0
        %v1997 = vadd.f32 %v1884, %v1996
        %v1998 = vpop.f32.mrf.mxu0
        %v1999 = vadd.f32 %v1886, %v1998
        %v2000 = vpop.f32.mrf.mxu0
        %v2001 = vadd.f32 %v1888, %v2000
        %2002 = vdwg.mxu0
        %2003 = vmatprep.subr.bf16.mxu0 %v1552
        %2004 = vmatpush1.bf16.msra.mxu0 %v1551
        %2005 = vmatprep.subr.bf16.mxu0 %v1548
        %2006 = vmatpush1.bf16.msra.mxu0 %v1547
        %2007 = vmatprep.subr.bf16.mxu0 %v1544
        %2008 = vmatpush1.bf16.msra.mxu0 %v1543
        %2009 = vmatprep.subr.bf16.mxu0 %v1540
        %2010 = vmatpush1.bf16.msra.mxu0 %v1539
        %2011 = vmatprep.subr.bf16.mxu0 %v1536
        %2012 = vmatpush1.bf16.msra.mxu0 %v1535
        %2013 = vmatprep.subr.bf16.mxu0 %v1532
        %2014 = vmatpush1.bf16.msra.mxu0 %v1531
        %2015 = vmatprep.subr.bf16.mxu0 %v1528
        %2016 = vmatpush1.bf16.msra.mxu0 %v1527
        %2017 = vmatprep.subr.bf16.mxu0 %v1524
        %2018 = vmatpush1.bf16.msra.mxu0 %v1523
        %2019 = vmatprep.subr.bf16.mxu0 %v1584
        %2020 = vmatpush2.bf16.msra.mxu0 %v1583
        %2021 = vmatprep.subr.bf16.mxu0 %v1580
        %2022 = vmatpush2.bf16.msra.mxu0 %v1579
        %2023 = vmatprep.subr.bf16.mxu0 %v1576
        %2024 = vmatpush2.bf16.msra.mxu0 %v1575
        %2025 = vmatprep.subr.bf16.mxu0 %v1572
        %2026 = vmatpush2.bf16.msra.mxu0 %v1571
        %2027 = vmatprep.subr.bf16.mxu0 %v1568
        %2028 = vmatpush2.bf16.msra.mxu0 %v1567
        %2029 = vmatprep.subr.bf16.mxu0 %v1564
        %2030 = vmatpush2.bf16.msra.mxu0 %v1563
        %2031 = vmatprep.subr.bf16.mxu0 %v1560
        %2032 = vmatpush2.bf16.msra.mxu0 %v1559
        %2033 = vmatprep.subr.bf16.mxu0 %v1556
        %2034 = vmatpush2.bf16.msra.mxu0 %v1555
        %2035 = vmatprep.mubr.bf16.mxu0 %v956
        %2036 = vmatmul.mubr.bf16.gmra.mxu0 %v955
        %v2037 = vpop.f32.mrf.mxu0
        %v2038 = vadd.f32 %v1128, %v2037
        %v2039 = vpop.f32.mrf.mxu0
        %v2040 = vadd.f32 %v1132, %v2039
        %v2041 = vpop.f32.mrf.mxu0
        %v2042 = vadd.f32 %v1128, %v2041
        %v2043 = vpop.f32.mrf.mxu0
        %v2044 = vadd.f32 %v1132, %v2043
        %2045 = vmatprep.mubr.bf16.mxu0 %v960
        %2046 = vmatmul.mubr.bf16.gmra.mxu0 %v959
        %v2047 = vpop.f32.mrf.mxu0
        %v2048 = vadd.f32 %v1128, %v2047
        %v2049 = vpop.f32.mrf.mxu0
        %v2050 = vadd.f32 %v1132, %v2049
        %v2051 = vpop.f32.mrf.mxu0
        %v2052 = vadd.f32 %v1128, %v2051
        %v2053 = vpop.f32.mrf.mxu0
        %v2054 = vadd.f32 %v1132, %v2053
        %2055 = vmatprep.mubr.bf16.mxu0 %v964
        %2056 = vmatmul.mubr.bf16.gmra.mxu0 %v963
        %v2057 = vpop.f32.mrf.mxu0
        %v2058 = vadd.f32 %v1128, %v2057
        %v2059 = vpop.f32.mrf.mxu0
        %v2060 = vadd.f32 %v1132, %v2059
        %v2061 = vpop.f32.mrf.mxu0
        %v2062 = vadd.f32 %v1128, %v2061
        %v2063 = vpop.f32.mrf.mxu0
        %v2064 = vadd.f32 %v1132, %v2063
        %2065 = vmatprep.mubr.bf16.mxu0 %v968
        %2066 = vmatmul.mubr.bf16.gmra.mxu0 %v967
        %v2067 = vpop.f32.mrf.mxu0
        %v2068 = vadd.f32 %v1128, %v2067
        %v2069 = vpop.f32.mrf.mxu0
        %v2070 = vadd.f32 %v1132, %v2069
        %v2071 = vpop.f32.mrf.mxu0
        %v2072 = vadd.f32 %v1128, %v2071
        %v2073 = vpop.f32.mrf.mxu0
        %v2074 = vadd.f32 %v1132, %v2073
        %2075 = vmatprep.mubr.bf16.mxu0 %v972
        %2076 = vmatmul.mubr.bf16.gmra.mxu0 %v971
        %v2077 = vpop.f32.mrf.mxu0
        %v2078 = vadd.f32 %v1128, %v2077
        %v2079 = vpop.f32.mrf.mxu0
        %v2080 = vadd.f32 %v1132, %v2079
        %v2081 = vpop.f32.mrf.mxu0
        %v2082 = vadd.f32 %v1128, %v2081
        %v2083 = vpop.f32.mrf.mxu0
        %v2084 = vadd.f32 %v1132, %v2083
        %2085 = vmatprep.mubr.bf16.mxu0 %v976
        %2086 = vmatmul.mubr.bf16.gmra.mxu0 %v975
        %v2087 = vpop.f32.mrf.mxu0
        %v2088 = vadd.f32 %v1128, %v2087
        %v2089 = vpop.f32.mrf.mxu0
        %v2090 = vadd.f32 %v1132, %v2089
        %v2091 = vpop.f32.mrf.mxu0
        %v2092 = vadd.f32 %v1128, %v2091
        %v2093 = vpop.f32.mrf.mxu0
        %v2094 = vadd.f32 %v1132, %v2093
        %2095 = vmatprep.mubr.bf16.mxu0 %v980
        %2096 = vmatmul.mubr.bf16.gmra.mxu0 %v979
        %v2097 = vpop.f32.mrf.mxu0
        %v2098 = vadd.f32 %v1128, %v2097
        %v2099 = vpop.f32.mrf.mxu0
        %v2100 = vadd.f32 %v1132, %v2099
        %v2101 = vpop.f32.mrf.mxu0
        %v2102 = vadd.f32 %v1128, %v2101
        %v2103 = vpop.f32.mrf.mxu0
        %v2104 = vadd.f32 %v1132, %v2103
        %2105 = vmatprep.mubr.bf16.mxu0 %v984
        %2106 = vmatmul.mubr.bf16.gmra.mxu0 %v983
        %v2107 = vpop.f32.mrf.mxu0
        %v2108 = vadd.f32 %v1128, %v2107
        %v2109 = vpop.f32.mrf.mxu0
        %v2110 = vadd.f32 %v1132, %v2109
        %v2111 = vpop.f32.mrf.mxu0
        %v2112 = vadd.f32 %v1128, %v2111
        %v2113 = vpop.f32.mrf.mxu0
        %v2114 = vadd.f32 %v1132, %v2113
        %2115 = vdwg.mxu0
        %2116 = vmatprep.subr.bf16.mxu0 %v1616
        %2117 = vmatpush1.bf16.msra.mxu0 %v1615
        %2118 = vmatprep.subr.bf16.mxu0 %v1612
        %2119 = vmatpush1.bf16.msra.mxu0 %v1611
        %2120 = vmatprep.subr.bf16.mxu0 %v1608
        %2121 = vmatpush1.bf16.msra.mxu0 %v1607
        %2122 = vmatprep.subr.bf16.mxu0 %v1604
        %2123 = vmatpush1.bf16.msra.mxu0 %v1603
        %2124 = vmatprep.subr.bf16.mxu0 %v1600
        %2125 = vmatpush1.bf16.msra.mxu0 %v1599
        %2126 = vmatprep.subr.bf16.mxu0 %v1596
        %2127 = vmatpush1.bf16.msra.mxu0 %v1595
        %2128 = vmatprep.subr.bf16.mxu0 %v1592
        %2129 = vmatpush1.bf16.msra.mxu0 %v1591
        %2130 = vmatprep.subr.bf16.mxu0 %v1588
        %2131 = vmatpush1.bf16.msra.mxu0 %v1587
        %2132 = vmatprep.subr.bf16.mxu0 %v1648
        %2133 = vmatpush2.bf16.msra.mxu0 %v1647
        %2134 = vmatprep.subr.bf16.mxu0 %v1644
        %2135 = vmatpush2.bf16.msra.mxu0 %v1643
        %2136 = vmatprep.subr.bf16.mxu0 %v1640
        %2137 = vmatpush2.bf16.msra.mxu0 %v1639
        %2138 = vmatprep.subr.bf16.mxu0 %v1636
        %2139 = vmatpush2.bf16.msra.mxu0 %v1635
        %2140 = vmatprep.subr.bf16.mxu0 %v1632
        %2141 = vmatpush2.bf16.msra.mxu0 %v1631
        %2142 = vmatprep.subr.bf16.mxu0 %v1628
        %2143 = vmatpush2.bf16.msra.mxu0 %v1627
        %2144 = vmatprep.subr.bf16.mxu0 %v1624
        %2145 = vmatpush2.bf16.msra.mxu0 %v1623
        %2146 = vmatprep.subr.bf16.mxu0 %v1620
        %2147 = vmatpush2.bf16.msra.mxu0 %v1619
        %2148 = vmatprep.mubr.bf16.mxu0 %v958
        %2149 = vmatmul.mubr.bf16.gmra.mxu0 %v957
        %v2150 = vpop.f32.mrf.mxu0
        %v2151 = vadd.f32 %v2038, %v2150
        %v2152 = vpop.f32.mrf.mxu0
        %v2153 = vadd.f32 %v2040, %v2152
        %v2154 = vpop.f32.mrf.mxu0
        %v2155 = vadd.f32 %v2042, %v2154
        %v2156 = vpop.f32.mrf.mxu0
        %v2157 = vadd.f32 %v2044, %v2156
        %2158 = vmatprep.mubr.bf16.mxu0 %v962
        %2159 = vmatmul.mubr.bf16.gmra.mxu0 %v961
        %v2160 = vpop.f32.mrf.mxu0
        %v2161 = vadd.f32 %v2048, %v2160
        %v2162 = vpop.f32.mrf.mxu0
        %v2163 = vadd.f32 %v2050, %v2162
        %v2164 = vpop.f32.mrf.mxu0
        %v2165 = vadd.f32 %v2052, %v2164
        %v2166 = vpop.f32.mrf.mxu0
        %v2167 = vadd.f32 %v2054, %v2166
        %2168 = vmatprep.mubr.bf16.mxu0 %v966
        %2169 = vmatmul.mubr.bf16.gmra.mxu0 %v965
        %v2170 = vpop.f32.mrf.mxu0
        %v2171 = vadd.f32 %v2058, %v2170
        %v2172 = vpop.f32.mrf.mxu0
        %v2173 = vadd.f32 %v2060, %v2172
        %v2174 = vpop.f32.mrf.mxu0
        %v2175 = vadd.f32 %v2062, %v2174
        %v2176 = vpop.f32.mrf.mxu0
        %v2177 = vadd.f32 %v2064, %v2176
        %2178 = vmatprep.mubr.bf16.mxu0 %v970
        %2179 = vmatmul.mubr.bf16.gmra.mxu0 %v969
        %v2180 = vpop.f32.mrf.mxu0
        %v2181 = vadd.f32 %v2068, %v2180
        %v2182 = vpop.f32.mrf.mxu0
        %v2183 = vadd.f32 %v2070, %v2182
        %v2184 = vpop.f32.mrf.mxu0
        %v2185 = vadd.f32 %v2072, %v2184
        %v2186 = vpop.f32.mrf.mxu0
        %v2187 = vadd.f32 %v2074, %v2186
        %2188 = vmatprep.mubr.bf16.mxu0 %v974
        %2189 = vmatmul.mubr.bf16.gmra.mxu0 %v973
        %v2190 = vpop.f32.mrf.mxu0
        %v2191 = vadd.f32 %v2078, %v2190
        %v2192 = vpop.f32.mrf.mxu0
        %v2193 = vadd.f32 %v2080, %v2192
        %v2194 = vpop.f32.mrf.mxu0
        %v2195 = vadd.f32 %v2082, %v2194
        %v2196 = vpop.f32.mrf.mxu0
        %v2197 = vadd.f32 %v2084, %v2196
        %2198 = vmatprep.mubr.bf16.mxu0 %v978
        %2199 = vmatmul.mubr.bf16.gmra.mxu0 %v977
        %v2200 = vpop.f32.mrf.mxu0
        %v2201 = vadd.f32 %v2088, %v2200
        %v2202 = vpop.f32.mrf.mxu0
        %v2203 = vadd.f32 %v2090, %v2202
        %v2204 = vpop.f32.mrf.mxu0
        %v2205 = vadd.f32 %v2092, %v2204
        %v2206 = vpop.f32.mrf.mxu0
        %v2207 = vadd.f32 %v2094, %v2206
        %2208 = vmatprep.mubr.bf16.mxu0 %v982
        %2209 = vmatmul.mubr.bf16.gmra.mxu0 %v981
        %v2210 = vpop.f32.mrf.mxu0
        %v2211 = vadd.f32 %v2098, %v2210
        %v2212 = vpop.f32.mrf.mxu0
        %v2213 = vadd.f32 %v2100, %v2212
        %v2214 = vpop.f32.mrf.mxu0
        %v2215 = vadd.f32 %v2102, %v2214
        %v2216 = vpop.f32.mrf.mxu0
        %v2217 = vadd.f32 %v2104, %v2216
        %2218 = vmatprep.mubr.bf16.mxu0 %v986
        %2219 = vmatmul.mubr.bf16.gmra.mxu0 %v985
        %v2220 = vpop.f32.mrf.mxu0
        %v2221 = vadd.f32 %v2108, %v2220
        %v2222 = vpop.f32.mrf.mxu0
        %v2223 = vadd.f32 %v2110, %v2222
        %v2224 = vpop.f32.mrf.mxu0
        %v2225 = vadd.f32 %v2112, %v2224
        %v2226 = vpop.f32.mrf.mxu0
        %v2227 = vadd.f32 %v2114, %v2226
        %2228 = vdwg.mxu0
        %v2229 = vmax.f32 %v1925, 0.0
        %v2230 = vmax.f32 %v1927, 0.0
        %v2231 = vmax.f32 %v2151, 0.0
        %v2232 = vmax.f32 %v2153, 0.0
        %v2233 = vmax.f32 %v1929, 0.0
        %v2234 = vmax.f32 %v1931, 0.0
        %v2235 = vmax.f32 %v2155, 0.0
        %v2236 = vmax.f32 %v2157, 0.0
        %v2237 = vmax.f32 %v1935, 0.0
        %v2238 = vmax.f32 %v1937, 0.0
        %v2239 = vmax.f32 %v2161, 0.0
        %v2240 = vmax.f32 %v2163, 0.0
        %v2241 = vmax.f32 %v1939, 0.0
        %v2242 = vmax.f32 %v1941, 0.0
        %v2243 = vmax.f32 %v2165, 0.0
        %v2244 = vmax.f32 %v2167, 0.0
        %v2245 = vmax.f32 %v1945, 0.0
        %v2246 = vmax.f32 %v1947, 0.0
        %v2247 = vmax.f32 %v2171, 0.0
        %v2248 = vmax.f32 %v2173, 0.0
        %v2249 = vmax.f32 %v1949, 0.0
        %v2250 = vmax.f32 %v1951, 0.0
        %v2251 = vmax.f32 %v2175, 0.0
        %v2252 = vmax.f32 %v2177, 0.0
        %v2253 = vmax.f32 %v1955, 0.0
        %v2254 = vmax.f32 %v1957, 0.0
        %v2255 = vmax.f32 %v2181, 0.0
        %v2256 = vmax.f32 %v2183, 0.0
        %v2257 = vmax.f32 %v1959, 0.0
        %v2258 = vmax.f32 %v1961, 0.0
        %v2259 = vmax.f32 %v2185, 0.0
        %v2260 = vmax.f32 %v2187, 0.0
        %v2261 = vmax.f32 %v1965, 0.0
        %v2262 = vmax.f32 %v1967, 0.0
        %v2263 = vmax.f32 %v2191, 0.0
        %v2264 = vmax.f32 %v2193, 0.0
        %v2265 = vmax.f32 %v1969, 0.0
        %v2266 = vmax.f32 %v1971, 0.0
        %v2267 = vmax.f32 %v2195, 0.0
        %v2268 = vmax.f32 %v2197, 0.0
        %v2269 = vmax.f32 %v1975, 0.0
        %v2270 = vmax.f32 %v1977, 0.0
        %v2271 = vmax.f32 %v2201, 0.0
        %v2272 = vmax.f32 %v2203, 0.0
        %v2273 = vmax.f32 %v1979, 0.0
        %v2274 = vmax.f32 %v1981, 0.0
        %v2275 = vmax.f32 %v2205, 0.0
        %v2276 = vmax.f32 %v2207, 0.0
        %v2277 = vmax.f32 %v1985, 0.0
        %v2278 = vmax.f32 %v1987, 0.0
        %v2279 = vmax.f32 %v2211, 0.0
        %v2280 = vmax.f32 %v2213, 0.0
        %v2281 = vmax.f32 %v1989, 0.0
        %v2282 = vmax.f32 %v1991, 0.0
        %v2283 = vmax.f32 %v2215, 0.0
        %v2284 = vmax.f32 %v2217, 0.0
        %v2285 = vmax.f32 %v1995, 0.0
        %v2286 = vmax.f32 %v1997, 0.0
        %v2287 = vmax.f32 %v2221, 0.0
        %v2288 = vmax.f32 %v2223, 0.0
        %v2289 = vmax.f32 %v1999, 0.0
        %v2290 = vmax.f32 %v2001, 0.0
        %v2291 = vmax.f32 %v2225, 0.0
        %v2292 = vmax.f32 %v2227, 0.0
        %v2293 = vpack.c.bf16 %v2233, %v2229
        %v2294 = vpack.c.bf16 %v2234, %v2230
        %v2295 = vpack.c.bf16 %v2235, %v2231
        %v2296 = vpack.c.bf16 %v2236, %v2232
        %v2297 = vpack.c.bf16 %v2241, %v2237
        %v2298 = vpack.c.bf16 %v2242, %v2238
        %v2299 = vpack.c.bf16 %v2243, %v2239
        %v2300 = vpack.c.bf16 %v2244, %v2240
        %v2301 = vpack.c.bf16 %v2249, %v2245
        %v2302 = vpack.c.bf16 %v2250, %v2246
        %v2303 = vpack.c.bf16 %v2251, %v2247
        %v2304 = vpack.c.bf16 %v2252, %v2248
        %v2305 = vpack.c.bf16 %v2257, %v2253
        %v2306 = vpack.c.bf16 %v2258, %v2254
        %v2307 = vpack.c.bf16 %v2259, %v2255
        %v2308 = vpack.c.bf16 %v2260, %v2256
        %v2309 = vpack.c.bf16 %v2265, %v2261
        %v2310 = vpack.c.bf16 %v2266, %v2262
        %v2311 = vpack.c.bf16 %v2267, %v2263
        %v2312 = vpack.c.bf16 %v2268, %v2264
        %v2313 = vpack.c.bf16 %v2273, %v2269
        %v2314 = vpack.c.bf16 %v2274, %v2270
        %v2315 = vpack.c.bf16 %v2275, %v2271
        %v2316 = vpack.c.bf16 %v2276, %v2272
        %v2317 = vpack.c.bf16 %v2281, %v2277
        %v2318 = vpack.c.bf16 %v2282, %v2278
        %v2319 = vpack.c.bf16 %v2283, %v2279
        %v2320 = vpack.c.bf16 %v2284, %v2280
        %v2321 = vpack.c.bf16 %v2289, %v2285
        %v2322 = vpack.c.bf16 %v2290, %v2286
        %v2323 = vpack.c.bf16 %v2291, %v2287
        %v2324 = vpack.c.bf16 %v2292, %v2288
        %v2325 = vld [vmem:[#allocation7] sm:$0xff]
        %v2326 = vld [vmem:[#allocation7 + $0x8] sm:$0xff]
        %v2327 = vld [vmem:[#allocation7 + $0x10] sm:$0xff]
        %v2328 = vld [vmem:[#allocation7 + $0x18] sm:$0xff]
        %v2329 = vld [vmem:[#allocation7 + $0x20] sm:$0xff]
        %v2330 = vld [vmem:[#allocation7 + $0x28] sm:$0xff]
        %v2331 = vld [vmem:[#allocation7 + $0x30] sm:$0xff]
        %v2332 = vld [vmem:[#allocation7 + $0x38] sm:$0xff]
        %v2333 = vld [vmem:[#allocation7 + $0x40] sm:$0xff]
        %v2334 = vld [vmem:[#allocation7 + $0x48] sm:$0xff]
        %v2335 = vld [vmem:[#allocation7 + $0x50] sm:$0xff]
        %v2336 = vld [vmem:[#allocation7 + $0x58] sm:$0xff]
        %v2337 = vld [vmem:[#allocation7 + $0x60] sm:$0xff]
        %v2338 = vld [vmem:[#allocation7 + $0x68] sm:$0xff]
        %v2339 = vld [vmem:[#allocation7 + $0x70] sm:$0xff]
        %v2340 = vld [vmem:[#allocation7 + $0x78] sm:$0xff]
        %v2341 = vld [vmem:[#allocation7 + $0x80] sm:$0xff]
        %v2342 = vld [vmem:[#allocation7 + $0x88] sm:$0xff]
        %v2343 = vld [vmem:[#allocation7 + $0x90] sm:$0xff]
        %v2344 = vld [vmem:[#allocation7 + $0x98] sm:$0xff]
        %v2345 = vld [vmem:[#allocation7 + $0xa0] sm:$0xff]
        %v2346 = vld [vmem:[#allocation7 + $0xa8] sm:$0xff]
        %v2347 = vld [vmem:[#allocation7 + $0xb0] sm:$0xff]
        %v2348 = vld [vmem:[#allocation7 + $0xb8] sm:$0xff]
        %v2349 = vld [vmem:[#allocation7 + $0xc0] sm:$0xff]
        %v2350 = vld [vmem:[#allocation7 + $0xc8] sm:$0xff]
        %v2351 = vld [vmem:[#allocation7 + $0xd0] sm:$0xff]
        %v2352 = vld [vmem:[#allocation7 + $0xd8] sm:$0xff]
        %v2353 = vld [vmem:[#allocation7 + $0xe0] sm:$0xff]
        %v2354 = vld [vmem:[#allocation7 + $0xe8] sm:$0xff]
        %v2355 = vld [vmem:[#allocation7 + $0xf0] sm:$0xff]
        %v2356 = vld [vmem:[#allocation7 + $0xf8] sm:$0xff]
        %v2357 = vld [vmem:[#allocation7 + $0x100] sm:$0xff]
        %v2358 = vld [vmem:[#allocation7 + $0x108] sm:$0xff]
        %v2359 = vld [vmem:[#allocation7 + $0x110] sm:$0xff]
        %v2360 = vld [vmem:[#allocation7 + $0x118] sm:$0xff]
        %v2361 = vld [vmem:[#allocation7 + $0x120] sm:$0xff]
        %v2362 = vld [vmem:[#allocation7 + $0x128] sm:$0xff]
        %v2363 = vld [vmem:[#allocation7 + $0x130] sm:$0xff]
        %v2364 = vld [vmem:[#allocation7 + $0x138] sm:$0xff]
        %v2365 = vld [vmem:[#allocation7 + $0x140] sm:$0xff]
        %v2366 = vld [vmem:[#allocation7 + $0x148] sm:$0xff]
        %v2367 = vld [vmem:[#allocation7 + $0x150] sm:$0xff]
        %v2368 = vld [vmem:[#allocation7 + $0x158] sm:$0xff]
        %v2369 = vld [vmem:[#allocation7 + $0x160] sm:$0xff]
        %v2370 = vld [vmem:[#allocation7 + $0x168] sm:$0xff]
        %v2371 = vld [vmem:[#allocation7 + $0x170] sm:$0xff]
        %v2372 = vld [vmem:[#allocation7 + $0x178] sm:$0xff]
        %v2373 = vld [vmem:[#allocation7 + $0x180] sm:$0xff]
        %v2374 = vld [vmem:[#allocation7 + $0x188] sm:$0xff]
        %v2375 = vld [vmem:[#allocation7 + $0x190] sm:$0xff]
        %v2376 = vld [vmem:[#allocation7 + $0x198] sm:$0xff]
        %v2377 = vld [vmem:[#allocation7 + $0x1a0] sm:$0xff]
        %v2378 = vld [vmem:[#allocation7 + $0x1a8] sm:$0xff]
        %v2379 = vld [vmem:[#allocation7 + $0x1b0] sm:$0xff]
        %v2380 = vld [vmem:[#allocation7 + $0x1b8] sm:$0xff]
        %v2381 = vld [vmem:[#allocation7 + $0x1c0] sm:$0xff]
        %v2382 = vld [vmem:[#allocation7 + $0x1c8] sm:$0xff]
        %v2383 = vld [vmem:[#allocation7 + $0x1d0] sm:$0xff]
        %v2384 = vld [vmem:[#allocation7 + $0x1d8] sm:$0xff]
        %v2385 = vld [vmem:[#allocation7 + $0x1e0] sm:$0xff]
        %v2386 = vld [vmem:[#allocation7 + $0x1e8] sm:$0xff]
        %v2387 = vld [vmem:[#allocation7 + $0x1f0] sm:$0xff]
        %v2388 = vld [vmem:[#allocation7 + $0x1f8] sm:$0xff]
        %v2389 = vld [vmem:[#allocation7 + $0x200] sm:$0xff]
        %v2390 = vld [vmem:[#allocation7 + $0x208] sm:$0xff]
        %v2391 = vld [vmem:[#allocation7 + $0x210] sm:$0xff]
        %v2392 = vld [vmem:[#allocation7 + $0x218] sm:$0xff]
        %v2393 = vld [vmem:[#allocation7 + $0x220] sm:$0xff]
        %v2394 = vld [vmem:[#allocation7 + $0x228] sm:$0xff]
        %v2395 = vld [vmem:[#allocation7 + $0x230] sm:$0xff]
        %v2396 = vld [vmem:[#allocation7 + $0x238] sm:$0xff]
        %v2397 = vld [vmem:[#allocation7 + $0x240] sm:$0xff]
        %v2398 = vld [vmem:[#allocation7 + $0x248] sm:$0xff]
        %v2399 = vld [vmem:[#allocation7 + $0x250] sm:$0xff]
        %v2400 = vld [vmem:[#allocation7 + $0x258] sm:$0xff]
        %v2401 = vld [vmem:[#allocation7 + $0x260] sm:$0xff]
        %v2402 = vld [vmem:[#allocation7 + $0x268] sm:$0xff]
        %v2403 = vld [vmem:[#allocation7 + $0x270] sm:$0xff]
        %v2404 = vld [vmem:[#allocation7 + $0x278] sm:$0xff]
        %v2405 = vld [vmem:[#allocation7 + $0x280] sm:$0xff]
        %v2406 = vld [vmem:[#allocation7 + $0x288] sm:$0xff]
        %v2407 = vld [vmem:[#allocation7 + $0x290] sm:$0xff]
        %v2408 = vld [vmem:[#allocation7 + $0x298] sm:$0xff]
        %v2409 = vld [vmem:[#allocation7 + $0x2a0] sm:$0xff]
        %v2410 = vld [vmem:[#allocation7 + $0x2a8] sm:$0xff]
        %v2411 = vld [vmem:[#allocation7 + $0x2b0] sm:$0xff]
        %v2412 = vld [vmem:[#allocation7 + $0x2b8] sm:$0xff]
        %v2413 = vld [vmem:[#allocation7 + $0x2c0] sm:$0xff]
        %v2414 = vld [vmem:[#allocation7 + $0x2c8] sm:$0xff]
        %v2415 = vld [vmem:[#allocation7 + $0x2d0] sm:$0xff]
        %v2416 = vld [vmem:[#allocation7 + $0x2d8] sm:$0xff]
        %v2417 = vld [vmem:[#allocation7 + $0x2e0] sm:$0xff]
        %v2418 = vld [vmem:[#allocation7 + $0x2e8] sm:$0xff]
        %v2419 = vld [vmem:[#allocation7 + $0x2f0] sm:$0xff]
        %v2420 = vld [vmem:[#allocation7 + $0x2f8] sm:$0xff]
        %v2421 = vld [vmem:[#allocation7 + $0x300] sm:$0xff]
        %v2422 = vld [vmem:[#allocation7 + $0x308] sm:$0xff]
        %v2423 = vld [vmem:[#allocation7 + $0x310] sm:$0xff]
        %v2424 = vld [vmem:[#allocation7 + $0x318] sm:$0xff]
        %v2425 = vld [vmem:[#allocation7 + $0x320] sm:$0xff]
        %v2426 = vld [vmem:[#allocation7 + $0x328] sm:$0xff]
        %v2427 = vld [vmem:[#allocation7 + $0x330] sm:$0xff]
        %v2428 = vld [vmem:[#allocation7 + $0x338] sm:$0xff]
        %v2429 = vld [vmem:[#allocation7 + $0x340] sm:$0xff]
        %v2430 = vld [vmem:[#allocation7 + $0x348] sm:$0xff]
        %v2431 = vld [vmem:[#allocation7 + $0x350] sm:$0xff]
        %v2432 = vld [vmem:[#allocation7 + $0x358] sm:$0xff]
        %v2433 = vld [vmem:[#allocation7 + $0x360] sm:$0xff]
        %v2434 = vld [vmem:[#allocation7 + $0x368] sm:$0xff]
        %v2435 = vld [vmem:[#allocation7 + $0x370] sm:$0xff]
        %v2436 = vld [vmem:[#allocation7 + $0x378] sm:$0xff]
        %v2437 = vld [vmem:[#allocation7 + $0x380] sm:$0xff]
        %v2438 = vld [vmem:[#allocation7 + $0x388] sm:$0xff]
        %v2439 = vld [vmem:[#allocation7 + $0x390] sm:$0xff]
        %v2440 = vld [vmem:[#allocation7 + $0x398] sm:$0xff]
        %v2441 = vld [vmem:[#allocation7 + $0x3a0] sm:$0xff]
        %v2442 = vld [vmem:[#allocation7 + $0x3a8] sm:$0xff]
        %v2443 = vld [vmem:[#allocation7 + $0x3b0] sm:$0xff]
        %v2444 = vld [vmem:[#allocation7 + $0x3b8] sm:$0xff]
        %v2445 = vld [vmem:[#allocation7 + $0x3c0] sm:$0xff]
        %v2446 = vld [vmem:[#allocation7 + $0x3c8] sm:$0xff]
        %v2447 = vld [vmem:[#allocation7 + $0x3d0] sm:$0xff]
        %v2448 = vld [vmem:[#allocation7 + $0x3d8] sm:$0xff]
        %v2449 = vld [vmem:[#allocation7 + $0x3e0] sm:$0xff]
        %v2450 = vld [vmem:[#allocation7 + $0x3e8] sm:$0xff]
        %v2451 = vld [vmem:[#allocation7 + $0x3f0] sm:$0xff]
        %v2452 = vld [vmem:[#allocation7 + $0x3f8] sm:$0xff]
        %v2453 = vld [vmem:[%s6] sm:$0xf]
        %v2455 = vlaneseq
        %v2456 = vshrl.u32 %v2455, 7
        %v2457 = vsub.s32 0, %v2456
        %v2458 = vrot.slane %v2453, %v2457
        %v2459 = vlaneseq
        %v2460 = vshrl.u32 %v2459, 7
        %v2461 = vsub.s32 1, %v2460
        %v2462 = vrot.slane %v2453, %v2461
        %v2463 = vlaneseq
        %v2464 = vshrl.u32 %v2463, 7
        %v2465 = vsub.s32 2, %v2464
        %v2466 = vrot.slane %v2453, %v2465
        %v2467 = vlaneseq
        %v2468 = vshrl.u32 %v2467, 7
        %v2469 = vsub.s32 3, %v2468
        %v2470 = vrot.slane %v2453, %v2469
        %v2603 = vunpack.c.l.b16 %v2325
        %v2604 = vunpack.c.h.b16 %v2325
        %v2605 = vunpack.c.l.b16 %v2326
        %v2606 = vunpack.c.h.b16 %v2326
        %v2607 = vunpack.c.l.b16 %v2327
        %v2608 = vunpack.c.h.b16 %v2327
        %v2609 = vunpack.c.l.b16 %v2328
        %v2610 = vunpack.c.h.b16 %v2328
        %v2611 = vunpack.c.l.b16 %v2329
        %v2612 = vunpack.c.h.b16 %v2329
        %v2613 = vunpack.c.l.b16 %v2330
        %v2614 = vunpack.c.h.b16 %v2330
        %v2615 = vunpack.c.l.b16 %v2331
        %v2616 = vunpack.c.h.b16 %v2331
        %v2617 = vunpack.c.l.b16 %v2332
        %v2618 = vunpack.c.h.b16 %v2332
        %v2619 = vunpack.c.l.b16 %v2333
        %v2620 = vunpack.c.h.b16 %v2333
        %v2621 = vunpack.c.l.b16 %v2334
        %v2622 = vunpack.c.h.b16 %v2334
        %v2623 = vunpack.c.l.b16 %v2335
        %v2624 = vunpack.c.h.b16 %v2335
        %v2625 = vunpack.c.l.b16 %v2336
        %v2626 = vunpack.c.h.b16 %v2336
        %v2627 = vunpack.c.l.b16 %v2337
        %v2628 = vunpack.c.h.b16 %v2337
        %v2629 = vunpack.c.l.b16 %v2338
        %v2630 = vunpack.c.h.b16 %v2338
        %v2631 = vunpack.c.l.b16 %v2339
        %v2632 = vunpack.c.h.b16 %v2339
        %v2633 = vunpack.c.l.b16 %v2340
        %v2634 = vunpack.c.h.b16 %v2340
        %v2635 = vunpack.c.l.b16 %v2341
        %v2636 = vunpack.c.h.b16 %v2341
        %v2637 = vunpack.c.l.b16 %v2342
        %v2638 = vunpack.c.h.b16 %v2342
        %v2639 = vunpack.c.l.b16 %v2343
        %v2640 = vunpack.c.h.b16 %v2343
        %v2641 = vunpack.c.l.b16 %v2344
        %v2642 = vunpack.c.h.b16 %v2344
        %v2643 = vunpack.c.l.b16 %v2345
        %v2644 = vunpack.c.h.b16 %v2345
        %v2645 = vunpack.c.l.b16 %v2346
        %v2646 = vunpack.c.h.b16 %v2346
        %v2647 = vunpack.c.l.b16 %v2347
        %v2648 = vunpack.c.h.b16 %v2347
        %v2649 = vunpack.c.l.b16 %v2348
        %v2650 = vunpack.c.h.b16 %v2348
        %v2651 = vunpack.c.l.b16 %v2349
        %v2652 = vunpack.c.h.b16 %v2349
        %v2653 = vunpack.c.l.b16 %v2350
        %v2654 = vunpack.c.h.b16 %v2350
        %v2655 = vunpack.c.l.b16 %v2351
        %v2656 = vunpack.c.h.b16 %v2351
        %v2657 = vunpack.c.l.b16 %v2352
        %v2658 = vunpack.c.h.b16 %v2352
        %v2659 = vunpack.c.l.b16 %v2353
        %v2660 = vunpack.c.h.b16 %v2353
        %v2661 = vunpack.c.l.b16 %v2354
        %v2662 = vunpack.c.h.b16 %v2354
        %v2663 = vunpack.c.l.b16 %v2355
        %v2664 = vunpack.c.h.b16 %v2355
        %v2665 = vunpack.c.l.b16 %v2356
        %v2666 = vunpack.c.h.b16 %v2356
        %v2667 = vunpack.c.l.b16 %v2357
        %v2668 = vunpack.c.h.b16 %v2357
        %v2669 = vunpack.c.l.b16 %v2358
        %v2670 = vunpack.c.h.b16 %v2358
        %v2671 = vunpack.c.l.b16 %v2359
        %v2672 = vunpack.c.h.b16 %v2359
        %v2673 = vunpack.c.l.b16 %v2360
        %v2674 = vunpack.c.h.b16 %v2360
        %v2675 = vunpack.c.l.b16 %v2361
        %v2676 = vunpack.c.h.b16 %v2361
        %v2677 = vunpack.c.l.b16 %v2362
        %v2678 = vunpack.c.h.b16 %v2362
        %v2679 = vunpack.c.l.b16 %v2363
        %v2680 = vunpack.c.h.b16 %v2363
        %v2681 = vunpack.c.l.b16 %v2364
        %v2682 = vunpack.c.h.b16 %v2364
        %v2683 = vunpack.c.l.b16 %v2365
        %v2684 = vunpack.c.h.b16 %v2365
        %v2685 = vunpack.c.l.b16 %v2366
        %v2686 = vunpack.c.h.b16 %v2366
        %v2687 = vunpack.c.l.b16 %v2367
        %v2688 = vunpack.c.h.b16 %v2367
        %v2689 = vunpack.c.l.b16 %v2368
        %v2690 = vunpack.c.h.b16 %v2368
        %v2691 = vunpack.c.l.b16 %v2369
        %v2692 = vunpack.c.h.b16 %v2369
        %v2693 = vunpack.c.l.b16 %v2370
        %v2694 = vunpack.c.h.b16 %v2370
        %v2695 = vunpack.c.l.b16 %v2371
        %v2696 = vunpack.c.h.b16 %v2371
        %v2697 = vunpack.c.l.b16 %v2372
        %v2698 = vunpack.c.h.b16 %v2372
        %v2699 = vunpack.c.l.b16 %v2373
        %v2700 = vunpack.c.h.b16 %v2373
        %v2701 = vunpack.c.l.b16 %v2374
        %v2702 = vunpack.c.h.b16 %v2374
        %v2703 = vunpack.c.l.b16 %v2375
        %v2704 = vunpack.c.h.b16 %v2375
        %v2705 = vunpack.c.l.b16 %v2376
        %v2706 = vunpack.c.h.b16 %v2376
        %v2707 = vunpack.c.l.b16 %v2377
        %v2708 = vunpack.c.h.b16 %v2377
        %v2709 = vunpack.c.l.b16 %v2378
        %v2710 = vunpack.c.h.b16 %v2378
        %v2711 = vunpack.c.l.b16 %v2379
        %v2712 = vunpack.c.h.b16 %v2379
        %v2713 = vunpack.c.l.b16 %v2380
        %v2714 = vunpack.c.h.b16 %v2380
        %v2715 = vunpack.c.l.b16 %v2381
        %v2716 = vunpack.c.h.b16 %v2381
        %v2717 = vunpack.c.l.b16 %v2382
        %v2718 = vunpack.c.h.b16 %v2382
        %v2719 = vunpack.c.l.b16 %v2383
        %v2720 = vunpack.c.h.b16 %v2383
        %v2721 = vunpack.c.l.b16 %v2384
        %v2722 = vunpack.c.h.b16 %v2384
        %v2723 = vunpack.c.l.b16 %v2385
        %v2724 = vunpack.c.h.b16 %v2385
        %v2725 = vunpack.c.l.b16 %v2386
        %v2726 = vunpack.c.h.b16 %v2386
        %v2727 = vunpack.c.l.b16 %v2387
        %v2728 = vunpack.c.h.b16 %v2387
        %v2729 = vunpack.c.l.b16 %v2388
        %v2730 = vunpack.c.h.b16 %v2388
        %v2731 = vunpack.c.l.b16 %v2389
        %v2732 = vunpack.c.h.b16 %v2389
        %v2733 = vunpack.c.l.b16 %v2390
        %v2734 = vunpack.c.h.b16 %v2390
        %v2735 = vunpack.c.l.b16 %v2391
        %v2736 = vunpack.c.h.b16 %v2391
        %v2737 = vunpack.c.l.b16 %v2392
        %v2738 = vunpack.c.h.b16 %v2392
        %v2739 = vunpack.c.l.b16 %v2393
        %v2740 = vunpack.c.h.b16 %v2393
        %v2741 = vunpack.c.l.b16 %v2394
        %v2742 = vunpack.c.h.b16 %v2394
        %v2743 = vunpack.c.l.b16 %v2395
        %v2744 = vunpack.c.h.b16 %v2395
        %v2745 = vunpack.c.l.b16 %v2396
        %v2746 = vunpack.c.h.b16 %v2396
        %v2747 = vunpack.c.l.b16 %v2397
        %v2748 = vunpack.c.h.b16 %v2397
        %v2749 = vunpack.c.l.b16 %v2398
        %v2750 = vunpack.c.h.b16 %v2398
        %v2751 = vunpack.c.l.b16 %v2399
        %v2752 = vunpack.c.h.b16 %v2399
        %v2753 = vunpack.c.l.b16 %v2400
        %v2754 = vunpack.c.h.b16 %v2400
        %v2755 = vunpack.c.l.b16 %v2401
        %v2756 = vunpack.c.h.b16 %v2401
        %v2757 = vunpack.c.l.b16 %v2402
        %v2758 = vunpack.c.h.b16 %v2402
        %v2759 = vunpack.c.l.b16 %v2403
        %v2760 = vunpack.c.h.b16 %v2403
        %v2761 = vunpack.c.l.b16 %v2404
        %v2762 = vunpack.c.h.b16 %v2404
        %v2763 = vunpack.c.l.b16 %v2405
        %v2764 = vunpack.c.h.b16 %v2405
        %v2765 = vunpack.c.l.b16 %v2406
        %v2766 = vunpack.c.h.b16 %v2406
        %v2767 = vunpack.c.l.b16 %v2407
        %v2768 = vunpack.c.h.b16 %v2407
        %v2769 = vunpack.c.l.b16 %v2408
        %v2770 = vunpack.c.h.b16 %v2408
        %v2771 = vunpack.c.l.b16 %v2409
        %v2772 = vunpack.c.h.b16 %v2409
        %v2773 = vunpack.c.l.b16 %v2410
        %v2774 = vunpack.c.h.b16 %v2410
        %v2775 = vunpack.c.l.b16 %v2411
        %v2776 = vunpack.c.h.b16 %v2411
        %v2777 = vunpack.c.l.b16 %v2412
        %v2778 = vunpack.c.h.b16 %v2412
        %v2779 = vunpack.c.l.b16 %v2413
        %v2780 = vunpack.c.h.b16 %v2413
        %v2781 = vunpack.c.l.b16 %v2414
        %v2782 = vunpack.c.h.b16 %v2414
        %v2783 = vunpack.c.l.b16 %v2415
        %v2784 = vunpack.c.h.b16 %v2415
        %v2785 = vunpack.c.l.b16 %v2416
        %v2786 = vunpack.c.h.b16 %v2416
        %v2787 = vunpack.c.l.b16 %v2417
        %v2788 = vunpack.c.h.b16 %v2417
        %v2789 = vunpack.c.l.b16 %v2418
        %v2790 = vunpack.c.h.b16 %v2418
        %v2791 = vunpack.c.l.b16 %v2419
        %v2792 = vunpack.c.h.b16 %v2419
        %v2793 = vunpack.c.l.b16 %v2420
        %v2794 = vunpack.c.h.b16 %v2420
        %v2795 = vunpack.c.l.b16 %v2421
        %v2796 = vunpack.c.h.b16 %v2421
        %v2797 = vunpack.c.l.b16 %v2422
        %v2798 = vunpack.c.h.b16 %v2422
        %v2799 = vunpack.c.l.b16 %v2423
        %v2800 = vunpack.c.h.b16 %v2423
        %v2801 = vunpack.c.l.b16 %v2424
        %v2802 = vunpack.c.h.b16 %v2424
        %v2803 = vunpack.c.l.b16 %v2425
        %v2804 = vunpack.c.h.b16 %v2425
        %v2805 = vunpack.c.l.b16 %v2426
        %v2806 = vunpack.c.h.b16 %v2426
        %v2807 = vunpack.c.l.b16 %v2427
        %v2808 = vunpack.c.h.b16 %v2427
        %v2809 = vunpack.c.l.b16 %v2428
        %v2810 = vunpack.c.h.b16 %v2428
        %v2811 = vunpack.c.l.b16 %v2429
        %v2812 = vunpack.c.h.b16 %v2429
        %v2813 = vunpack.c.l.b16 %v2430
        %v2814 = vunpack.c.h.b16 %v2430
        %v2815 = vunpack.c.l.b16 %v2431
        %v2816 = vunpack.c.h.b16 %v2431
        %v2817 = vunpack.c.l.b16 %v2432
        %v2818 = vunpack.c.h.b16 %v2432
        %v2819 = vunpack.c.l.b16 %v2433
        %v2820 = vunpack.c.h.b16 %v2433
        %v2821 = vunpack.c.l.b16 %v2434
        %v2822 = vunpack.c.h.b16 %v2434
        %v2823 = vunpack.c.l.b16 %v2435
        %v2824 = vunpack.c.h.b16 %v2435
        %v2825 = vunpack.c.l.b16 %v2436
        %v2826 = vunpack.c.h.b16 %v2436
        %v2827 = vunpack.c.l.b16 %v2437
        %v2828 = vunpack.c.h.b16 %v2437
        %v2829 = vunpack.c.l.b16 %v2438
        %v2830 = vunpack.c.h.b16 %v2438
        %v2831 = vunpack.c.l.b16 %v2439
        %v2832 = vunpack.c.h.b16 %v2439
        %v2833 = vunpack.c.l.b16 %v2440
        %v2834 = vunpack.c.h.b16 %v2440
        %v2835 = vunpack.c.l.b16 %v2441
        %v2836 = vunpack.c.h.b16 %v2441
        %v2837 = vunpack.c.l.b16 %v2442
        %v2838 = vunpack.c.h.b16 %v2442
        %v2839 = vunpack.c.l.b16 %v2443
        %v2840 = vunpack.c.h.b16 %v2443
        %v2841 = vunpack.c.l.b16 %v2444
        %v2842 = vunpack.c.h.b16 %v2444
        %v2843 = vunpack.c.l.b16 %v2445
        %v2844 = vunpack.c.h.b16 %v2445
        %v2845 = vunpack.c.l.b16 %v2446
        %v2846 = vunpack.c.h.b16 %v2446
        %v2847 = vunpack.c.l.b16 %v2447
        %v2848 = vunpack.c.h.b16 %v2447
        %v2849 = vunpack.c.l.b16 %v2448
        %v2850 = vunpack.c.h.b16 %v2448
        %v2851 = vunpack.c.l.b16 %v2449
        %v2852 = vunpack.c.h.b16 %v2449
        %v2853 = vunpack.c.l.b16 %v2450
        %v2854 = vunpack.c.h.b16 %v2450
        %v2855 = vunpack.c.l.b16 %v2451
        %v2856 = vunpack.c.h.b16 %v2451
        %v2857 = vunpack.c.l.b16 %v2452
        %v2858 = vunpack.c.h.b16 %v2452
        %v2859 = vpack.c.b16 %v2607, %v2603
        %v2860 = vpack.c.b16 %v2608, %v2604
        %v2861 = vpack.c.b16 %v2609, %v2605
        %v2862 = vpack.c.b16 %v2610, %v2606
        %v2863 = vpack.c.b16 %v2615, %v2611
        %v2864 = vpack.c.b16 %v2616, %v2612
        %v2865 = vpack.c.b16 %v2617, %v2613
        %v2866 = vpack.c.b16 %v2618, %v2614
        %v2867 = vpack.c.b16 %v2623, %v2619
        %v2868 = vpack.c.b16 %v2624, %v2620
        %v2869 = vpack.c.b16 %v2625, %v2621
        %v2870 = vpack.c.b16 %v2626, %v2622
        %v2871 = vpack.c.b16 %v2631, %v2627
        %v2872 = vpack.c.b16 %v2632, %v2628
        %v2873 = vpack.c.b16 %v2633, %v2629
        %v2874 = vpack.c.b16 %v2634, %v2630
        %v2875 = vpack.c.b16 %v2639, %v2635
        %v2876 = vpack.c.b16 %v2640, %v2636
        %v2877 = vpack.c.b16 %v2641, %v2637
        %v2878 = vpack.c.b16 %v2642, %v2638
        %v2879 = vpack.c.b16 %v2647, %v2643
        %v2880 = vpack.c.b16 %v2648, %v2644
        %v2881 = vpack.c.b16 %v2649, %v2645
        %v2882 = vpack.c.b16 %v2650, %v2646
        %v2883 = vpack.c.b16 %v2655, %v2651
        %v2884 = vpack.c.b16 %v2656, %v2652
        %v2885 = vpack.c.b16 %v2657, %v2653
        %v2886 = vpack.c.b16 %v2658, %v2654
        %v2887 = vpack.c.b16 %v2663, %v2659
        %v2888 = vpack.c.b16 %v2664, %v2660
        %v2889 = vpack.c.b16 %v2665, %v2661
        %v2890 = vpack.c.b16 %v2666, %v2662
        %v2891 = vpack.c.b16 %v2671, %v2667
        %v2892 = vpack.c.b16 %v2672, %v2668
        %v2893 = vpack.c.b16 %v2673, %v2669
        %v2894 = vpack.c.b16 %v2674, %v2670
        %v2895 = vpack.c.b16 %v2679, %v2675
        %v2896 = vpack.c.b16 %v2680, %v2676
        %v2897 = vpack.c.b16 %v2681, %v2677
        %v2898 = vpack.c.b16 %v2682, %v2678
        %v2899 = vpack.c.b16 %v2687, %v2683
        %v2900 = vpack.c.b16 %v2688, %v2684
        %v2901 = vpack.c.b16 %v2689, %v2685
        %v2902 = vpack.c.b16 %v2690, %v2686
        %v2903 = vpack.c.b16 %v2695, %v2691
        %v2904 = vpack.c.b16 %v2696, %v2692
        %v2905 = vpack.c.b16 %v2697, %v2693
        %v2906 = vpack.c.b16 %v2698, %v2694
        %v2907 = vpack.c.b16 %v2703, %v2699
        %v2908 = vpack.c.b16 %v2704, %v2700
        %v2909 = vpack.c.b16 %v2705, %v2701
        %v2910 = vpack.c.b16 %v2706, %v2702
        %v2911 = vpack.c.b16 %v2711, %v2707
        %v2912 = vpack.c.b16 %v2712, %v2708
        %v2913 = vpack.c.b16 %v2713, %v2709
        %v2914 = vpack.c.b16 %v2714, %v2710
        %v2915 = vpack.c.b16 %v2719, %v2715
        %v2916 = vpack.c.b16 %v2720, %v2716
        %v2917 = vpack.c.b16 %v2721, %v2717
        %v2918 = vpack.c.b16 %v2722, %v2718
        %v2919 = vpack.c.b16 %v2727, %v2723
        %v2920 = vpack.c.b16 %v2728, %v2724
        %v2921 = vpack.c.b16 %v2729, %v2725
        %v2922 = vpack.c.b16 %v2730, %v2726
        %v2923 = vpack.c.b16 %v2735, %v2731
        %v2924 = vpack.c.b16 %v2736, %v2732
        %v2925 = vpack.c.b16 %v2737, %v2733
        %v2926 = vpack.c.b16 %v2738, %v2734
        %v2927 = vpack.c.b16 %v2743, %v2739
        %v2928 = vpack.c.b16 %v2744, %v2740
        %v2929 = vpack.c.b16 %v2745, %v2741
        %v2930 = vpack.c.b16 %v2746, %v2742
        %v2931 = vpack.c.b16 %v2751, %v2747
        %v2932 = vpack.c.b16 %v2752, %v2748
        %v2933 = vpack.c.b16 %v2753, %v2749
        %v2934 = vpack.c.b16 %v2754, %v2750
        %v2935 = vpack.c.b16 %v2759, %v2755
        %v2936 = vpack.c.b16 %v2760, %v2756
        %v2937 = vpack.c.b16 %v2761, %v2757
        %v2938 = vpack.c.b16 %v2762, %v2758
        %v2939 = vpack.c.b16 %v2767, %v2763
        %v2940 = vpack.c.b16 %v2768, %v2764
        %v2941 = vpack.c.b16 %v2769, %v2765
        %v2942 = vpack.c.b16 %v2770, %v2766
        %v2943 = vpack.c.b16 %v2775, %v2771
        %v2944 = vpack.c.b16 %v2776, %v2772
        %v2945 = vpack.c.b16 %v2777, %v2773
        %v2946 = vpack.c.b16 %v2778, %v2774
        %v2947 = vpack.c.b16 %v2783, %v2779
        %v2948 = vpack.c.b16 %v2784, %v2780
        %v2949 = vpack.c.b16 %v2785, %v2781
        %v2950 = vpack.c.b16 %v2786, %v2782
        %v2951 = vpack.c.b16 %v2791, %v2787
        %v2952 = vpack.c.b16 %v2792, %v2788
        %v2953 = vpack.c.b16 %v2793, %v2789
        %v2954 = vpack.c.b16 %v2794, %v2790
        %v2955 = vpack.c.b16 %v2799, %v2795
        %v2956 = vpack.c.b16 %v2800, %v2796
        %v2957 = vpack.c.b16 %v2801, %v2797
        %v2958 = vpack.c.b16 %v2802, %v2798
        %v2959 = vpack.c.b16 %v2807, %v2803
        %v2960 = vpack.c.b16 %v2808, %v2804
        %v2961 = vpack.c.b16 %v2809, %v2805
        %v2962 = vpack.c.b16 %v2810, %v2806
        %v2963 = vpack.c.b16 %v2815, %v2811
        %v2964 = vpack.c.b16 %v2816, %v2812
        %v2965 = vpack.c.b16 %v2817, %v2813
        %v2966 = vpack.c.b16 %v2818, %v2814
        %v2967 = vpack.c.b16 %v2823, %v2819
        %v2968 = vpack.c.b16 %v2824, %v2820
        %v2969 = vpack.c.b16 %v2825, %v2821
        %v2970 = vpack.c.b16 %v2826, %v2822
        %v2971 = vpack.c.b16 %v2831, %v2827
        %v2972 = vpack.c.b16 %v2832, %v2828
        %v2973 = vpack.c.b16 %v2833, %v2829
        %v2974 = vpack.c.b16 %v2834, %v2830
        %v2975 = vpack.c.b16 %v2839, %v2835
        %v2976 = vpack.c.b16 %v2840, %v2836
        %v2977 = vpack.c.b16 %v2841, %v2837
        %v2978 = vpack.c.b16 %v2842, %v2838
        %v2979 = vpack.c.b16 %v2847, %v2843
        %v2980 = vpack.c.b16 %v2848, %v2844
        %v2981 = vpack.c.b16 %v2849, %v2845
        %v2982 = vpack.c.b16 %v2850, %v2846
        %v2983 = vpack.c.b16 %v2855, %v2851
        %v2984 = vpack.c.b16 %v2856, %v2852
        %v2985 = vpack.c.b16 %v2857, %v2853
        %v2986 = vpack.c.b16 %v2858, %v2854
        %3115 = vmatprep.subr.bf16.mxu0 %v2888
        %3116 = vmatpush1.bf16.msra.mxu0 %v2887
        %3117 = vmatprep.subr.bf16.mxu0 %v2884
        %3118 = vmatpush1.bf16.msra.mxu0 %v2883
        %3119 = vmatprep.subr.bf16.mxu0 %v2880
        %3120 = vmatpush1.bf16.msra.mxu0 %v2879
        %3121 = vmatprep.subr.bf16.mxu0 %v2876
        %3122 = vmatpush1.bf16.msra.mxu0 %v2875
        %3123 = vmatprep.subr.bf16.mxu0 %v2872
        %3124 = vmatpush1.bf16.msra.mxu0 %v2871
        %3125 = vmatprep.subr.bf16.mxu0 %v2868
        %3126 = vmatpush1.bf16.msra.mxu0 %v2867
        %3127 = vmatprep.subr.bf16.mxu0 %v2864
        %3128 = vmatpush1.bf16.msra.mxu0 %v2863
        %3129 = vmatprep.subr.bf16.mxu0 %v2860
        %3130 = vmatpush1.bf16.msra.mxu0 %v2859
        %3131 = vmatprep.subr.bf16.mxu0 %v2920
        %3132 = vmatpush2.bf16.msra.mxu0 %v2919
        %3133 = vmatprep.subr.bf16.mxu0 %v2916
        %3134 = vmatpush2.bf16.msra.mxu0 %v2915
        %3135 = vmatprep.subr.bf16.mxu0 %v2912
        %3136 = vmatpush2.bf16.msra.mxu0 %v2911
        %3137 = vmatprep.subr.bf16.mxu0 %v2908
        %3138 = vmatpush2.bf16.msra.mxu0 %v2907
        %3139 = vmatprep.subr.bf16.mxu0 %v2904
        %3140 = vmatpush2.bf16.msra.mxu0 %v2903
        %3141 = vmatprep.subr.bf16.mxu0 %v2900
        %3142 = vmatpush2.bf16.msra.mxu0 %v2899
        %3143 = vmatprep.subr.bf16.mxu0 %v2896
        %3144 = vmatpush2.bf16.msra.mxu0 %v2895
        %3145 = vmatprep.subr.bf16.mxu0 %v2892
        %3146 = vmatpush2.bf16.msra.mxu0 %v2891
        %3147 = vmatprep.mubr.bf16.mxu0 %v2294
        %3148 = vmatmul.mubr.bf16.gmra.mxu0 %v2293
        %v3149 = vpop.f32.mrf.mxu0
        %v3150 = vadd.f32 %v2458, %v3149
        %v3151 = vpop.f32.mrf.mxu0
        %v3152 = vadd.f32 %v2462, %v3151
        %v3153 = vpop.f32.mrf.mxu0
        %v3154 = vadd.f32 %v2458, %v3153
        %v3155 = vpop.f32.mrf.mxu0
        %v3156 = vadd.f32 %v2462, %v3155
        %3157 = vmatprep.mubr.bf16.mxu0 %v2298
        %3158 = vmatmul.mubr.bf16.gmra.mxu0 %v2297
        %v3159 = vpop.f32.mrf.mxu0
        %v3160 = vadd.f32 %v2458, %v3159
        %v3161 = vpop.f32.mrf.mxu0
        %v3162 = vadd.f32 %v2462, %v3161
        %v3163 = vpop.f32.mrf.mxu0
        %v3164 = vadd.f32 %v2458, %v3163
        %v3165 = vpop.f32.mrf.mxu0
        %v3166 = vadd.f32 %v2462, %v3165
        %3167 = vmatprep.mubr.bf16.mxu0 %v2302
        %3168 = vmatmul.mubr.bf16.gmra.mxu0 %v2301
        %v3169 = vpop.f32.mrf.mxu0
        %v3170 = vadd.f32 %v2458, %v3169
        %v3171 = vpop.f32.mrf.mxu0
        %v3172 = vadd.f32 %v2462, %v3171
        %v3173 = vpop.f32.mrf.mxu0
        %v3174 = vadd.f32 %v2458, %v3173
        %v3175 = vpop.f32.mrf.mxu0
        %v3176 = vadd.f32 %v2462, %v3175
        %3177 = vmatprep.mubr.bf16.mxu0 %v2306
        %3178 = vmatmul.mubr.bf16.gmra.mxu0 %v2305
        %v3179 = vpop.f32.mrf.mxu0
        %v3180 = vadd.f32 %v2458, %v3179
        %v3181 = vpop.f32.mrf.mxu0
        %v3182 = vadd.f32 %v2462, %v3181
        %v3183 = vpop.f32.mrf.mxu0
        %v3184 = vadd.f32 %v2458, %v3183
        %v3185 = vpop.f32.mrf.mxu0
        %v3186 = vadd.f32 %v2462, %v3185
        %3187 = vmatprep.mubr.bf16.mxu0 %v2310
        %3188 = vmatmul.mubr.bf16.gmra.mxu0 %v2309
        %v3189 = vpop.f32.mrf.mxu0
        %v3190 = vadd.f32 %v2458, %v3189
        %v3191 = vpop.f32.mrf.mxu0
        %v3192 = vadd.f32 %v2462, %v3191
        %v3193 = vpop.f32.mrf.mxu0
        %v3194 = vadd.f32 %v2458, %v3193
        %v3195 = vpop.f32.mrf.mxu0
        %v3196 = vadd.f32 %v2462, %v3195
        %3197 = vmatprep.mubr.bf16.mxu0 %v2314
        %3198 = vmatmul.mubr.bf16.gmra.mxu0 %v2313
        %v3199 = vpop.f32.mrf.mxu0
        %v3200 = vadd.f32 %v2458, %v3199
        %v3201 = vpop.f32.mrf.mxu0
        %v3202 = vadd.f32 %v2462, %v3201
        %v3203 = vpop.f32.mrf.mxu0
        %v3204 = vadd.f32 %v2458, %v3203
        %v3205 = vpop.f32.mrf.mxu0
        %v3206 = vadd.f32 %v2462, %v3205
        %3207 = vmatprep.mubr.bf16.mxu0 %v2318
        %3208 = vmatmul.mubr.bf16.gmra.mxu0 %v2317
        %v3209 = vpop.f32.mrf.mxu0
        %v3210 = vadd.f32 %v2458, %v3209
        %v3211 = vpop.f32.mrf.mxu0
        %v3212 = vadd.f32 %v2462, %v3211
        %v3213 = vpop.f32.mrf.mxu0
        %v3214 = vadd.f32 %v2458, %v3213
        %v3215 = vpop.f32.mrf.mxu0
        %v3216 = vadd.f32 %v2462, %v3215
        %3217 = vmatprep.mubr.bf16.mxu0 %v2322
        %3218 = vmatmul.mubr.bf16.gmra.mxu0 %v2321
        %v3219 = vpop.f32.mrf.mxu0
        %v3220 = vadd.f32 %v2458, %v3219
        %v3221 = vpop.f32.mrf.mxu0
        %v3222 = vadd.f32 %v2462, %v3221
        %v3223 = vpop.f32.mrf.mxu0
        %v3224 = vadd.f32 %v2458, %v3223
        %v3225 = vpop.f32.mrf.mxu0
        %v3226 = vadd.f32 %v2462, %v3225
        %3227 = vdwg.mxu0
        %3228 = vmatprep.subr.bf16.mxu0 %v2952
        %3229 = vmatpush1.bf16.msra.mxu0 %v2951
        %3230 = vmatprep.subr.bf16.mxu0 %v2948
        %3231 = vmatpush1.bf16.msra.mxu0 %v2947
        %3232 = vmatprep.subr.bf16.mxu0 %v2944
        %3233 = vmatpush1.bf16.msra.mxu0 %v2943
        %3234 = vmatprep.subr.bf16.mxu0 %v2940
        %3235 = vmatpush1.bf16.msra.mxu0 %v2939
        %3236 = vmatprep.subr.bf16.mxu0 %v2936
        %3237 = vmatpush1.bf16.msra.mxu0 %v2935
        %3238 = vmatprep.subr.bf16.mxu0 %v2932
        %3239 = vmatpush1.bf16.msra.mxu0 %v2931
        %3240 = vmatprep.subr.bf16.mxu0 %v2928
        %3241 = vmatpush1.bf16.msra.mxu0 %v2927
        %3242 = vmatprep.subr.bf16.mxu0 %v2924
        %3243 = vmatpush1.bf16.msra.mxu0 %v2923
        %3244 = vmatprep.subr.bf16.mxu0 %v2984
        %3245 = vmatpush2.bf16.msra.mxu0 %v2983
        %3246 = vmatprep.subr.bf16.mxu0 %v2980
        %3247 = vmatpush2.bf16.msra.mxu0 %v2979
        %3248 = vmatprep.subr.bf16.mxu0 %v2976
        %3249 = vmatpush2.bf16.msra.mxu0 %v2975
        %3250 = vmatprep.subr.bf16.mxu0 %v2972
        %3251 = vmatpush2.bf16.msra.mxu0 %v2971
        %3252 = vmatprep.subr.bf16.mxu0 %v2968
        %3253 = vmatpush2.bf16.msra.mxu0 %v2967
        %3254 = vmatprep.subr.bf16.mxu0 %v2964
        %3255 = vmatpush2.bf16.msra.mxu0 %v2963
        %3256 = vmatprep.subr.bf16.mxu0 %v2960
        %3257 = vmatpush2.bf16.msra.mxu0 %v2959
        %3258 = vmatprep.subr.bf16.mxu0 %v2956
        %3259 = vmatpush2.bf16.msra.mxu0 %v2955
        %3260 = vmatprep.mubr.bf16.mxu0 %v2296
        %3261 = vmatmul.mubr.bf16.gmra.mxu0 %v2295
        %v3262 = vpop.f32.mrf.mxu0
        %v3263 = vadd.f32 %v3150, %v3262
        %v3264 = vpop.f32.mrf.mxu0
        %v3265 = vadd.f32 %v3152, %v3264
        %v3266 = vpop.f32.mrf.mxu0
        %v3267 = vadd.f32 %v3154, %v3266
        %v3268 = vpop.f32.mrf.mxu0
        %v3269 = vadd.f32 %v3156, %v3268
        %3270 = vmatprep.mubr.bf16.mxu0 %v2300
        %3271 = vmatmul.mubr.bf16.gmra.mxu0 %v2299
        %v3272 = vpop.f32.mrf.mxu0
        %v3273 = vadd.f32 %v3160, %v3272
        %v3274 = vpop.f32.mrf.mxu0
        %v3275 = vadd.f32 %v3162, %v3274
        %v3276 = vpop.f32.mrf.mxu0
        %v3277 = vadd.f32 %v3164, %v3276
        %v3278 = vpop.f32.mrf.mxu0
        %v3279 = vadd.f32 %v3166, %v3278
        %3280 = vmatprep.mubr.bf16.mxu0 %v2304
        %3281 = vmatmul.mubr.bf16.gmra.mxu0 %v2303
        %v3282 = vpop.f32.mrf.mxu0
        %v3283 = vadd.f32 %v3170, %v3282
        %v3284 = vpop.f32.mrf.mxu0
        %v3285 = vadd.f32 %v3172, %v3284
        %v3286 = vpop.f32.mrf.mxu0
        %v3287 = vadd.f32 %v3174, %v3286
        %v3288 = vpop.f32.mrf.mxu0
        %v3289 = vadd.f32 %v3176, %v3288
        %3290 = vmatprep.mubr.bf16.mxu0 %v2308
        %3291 = vmatmul.mubr.bf16.gmra.mxu0 %v2307
        %v3292 = vpop.f32.mrf.mxu0
        %v3293 = vadd.f32 %v3180, %v3292
        %v3294 = vpop.f32.mrf.mxu0
        %v3295 = vadd.f32 %v3182, %v3294
        %v3296 = vpop.f32.mrf.mxu0
        %v3297 = vadd.f32 %v3184, %v3296
        %v3298 = vpop.f32.mrf.mxu0
        %v3299 = vadd.f32 %v3186, %v3298
        %3300 = vmatprep.mubr.bf16.mxu0 %v2312
        %3301 = vmatmul.mubr.bf16.gmra.mxu0 %v2311
        %v3302 = vpop.f32.mrf.mxu0
        %v3303 = vadd.f32 %v3190, %v3302
        %v3304 = vpop.f32.mrf.mxu0
        %v3305 = vadd.f32 %v3192, %v3304
        %v3306 = vpop.f32.mrf.mxu0
        %v3307 = vadd.f32 %v3194, %v3306
        %v3308 = vpop.f32.mrf.mxu0
        %v3309 = vadd.f32 %v3196, %v3308
        %3310 = vmatprep.mubr.bf16.mxu0 %v2316
        %3311 = vmatmul.mubr.bf16.gmra.mxu0 %v2315
        %v3312 = vpop.f32.mrf.mxu0
        %v3313 = vadd.f32 %v3200, %v3312
        %v3314 = vpop.f32.mrf.mxu0
        %v3315 = vadd.f32 %v3202, %v3314
        %v3316 = vpop.f32.mrf.mxu0
        %v3317 = vadd.f32 %v3204, %v3316
        %v3318 = vpop.f32.mrf.mxu0
        %v3319 = vadd.f32 %v3206, %v3318
        %3320 = vmatprep.mubr.bf16.mxu0 %v2320
        %3321 = vmatmul.mubr.bf16.gmra.mxu0 %v2319
        %v3322 = vpop.f32.mrf.mxu0
        %v3323 = vadd.f32 %v3210, %v3322
        %v3324 = vpop.f32.mrf.mxu0
        %v3325 = vadd.f32 %v3212, %v3324
        %v3326 = vpop.f32.mrf.mxu0
        %v3327 = vadd.f32 %v3214, %v3326
        %v3328 = vpop.f32.mrf.mxu0
        %v3329 = vadd.f32 %v3216, %v3328
        %3330 = vmatprep.mubr.bf16.mxu0 %v2324
        %3331 = vmatmul.mubr.bf16.gmra.mxu0 %v2323
        %v3332 = vpop.f32.mrf.mxu0
        %v3333 = vadd.f32 %v3220, %v3332
        %v3334 = vpop.f32.mrf.mxu0
        %v3335 = vadd.f32 %v3222, %v3334
        %v3336 = vpop.f32.mrf.mxu0
        %v3337 = vadd.f32 %v3224, %v3336
        %v3338 = vpop.f32.mrf.mxu0
        %v3339 = vadd.f32 %v3226, %v3338
        %3340 = vdwg.mxu0
        %3341 = vmatprep.subr.bf16.mxu0 %v2890
        %3342 = vmatpush1.bf16.msra.mxu0 %v2889
        %3343 = vmatprep.subr.bf16.mxu0 %v2886
        %3344 = vmatpush1.bf16.msra.mxu0 %v2885
        %3345 = vmatprep.subr.bf16.mxu0 %v2882
        %3346 = vmatpush1.bf16.msra.mxu0 %v2881
        %3347 = vmatprep.subr.bf16.mxu0 %v2878
        %3348 = vmatpush1.bf16.msra.mxu0 %v2877
        %3349 = vmatprep.subr.bf16.mxu0 %v2874
        %3350 = vmatpush1.bf16.msra.mxu0 %v2873
        %3351 = vmatprep.subr.bf16.mxu0 %v2870
        %3352 = vmatpush1.bf16.msra.mxu0 %v2869
        %3353 = vmatprep.subr.bf16.mxu0 %v2866
        %3354 = vmatpush1.bf16.msra.mxu0 %v2865
        %3355 = vmatprep.subr.bf16.mxu0 %v2862
        %3356 = vmatpush1.bf16.msra.mxu0 %v2861
        %3357 = vmatprep.subr.bf16.mxu0 %v2922
        %3358 = vmatpush2.bf16.msra.mxu0 %v2921
        %3359 = vmatprep.subr.bf16.mxu0 %v2918
        %3360 = vmatpush2.bf16.msra.mxu0 %v2917
        %3361 = vmatprep.subr.bf16.mxu0 %v2914
        %3362 = vmatpush2.bf16.msra.mxu0 %v2913
        %3363 = vmatprep.subr.bf16.mxu0 %v2910
        %3364 = vmatpush2.bf16.msra.mxu0 %v2909
        %3365 = vmatprep.subr.bf16.mxu0 %v2906
        %3366 = vmatpush2.bf16.msra.mxu0 %v2905
        %3367 = vmatprep.subr.bf16.mxu0 %v2902
        %3368 = vmatpush2.bf16.msra.mxu0 %v2901
        %3369 = vmatprep.subr.bf16.mxu0 %v2898
        %3370 = vmatpush2.bf16.msra.mxu0 %v2897
        %3371 = vmatprep.subr.bf16.mxu0 %v2894
        %3372 = vmatpush2.bf16.msra.mxu0 %v2893
        %3373 = vmatprep.mubr.bf16.mxu0 %v2294
        %3374 = vmatmul.mubr.bf16.gmra.mxu0 %v2293
        %v3375 = vpop.f32.mrf.mxu0
        %v3376 = vadd.f32 %v2466, %v3375
        %v3377 = vpop.f32.mrf.mxu0
        %v3378 = vadd.f32 %v2470, %v3377
        %v3379 = vpop.f32.mrf.mxu0
        %v3380 = vadd.f32 %v2466, %v3379
        %v3381 = vpop.f32.mrf.mxu0
        %v3382 = vadd.f32 %v2470, %v3381
        %3383 = vmatprep.mubr.bf16.mxu0 %v2298
        %3384 = vmatmul.mubr.bf16.gmra.mxu0 %v2297
        %v3385 = vpop.f32.mrf.mxu0
        %v3386 = vadd.f32 %v2466, %v3385
        %v3387 = vpop.f32.mrf.mxu0
        %v3388 = vadd.f32 %v2470, %v3387
        %v3389 = vpop.f32.mrf.mxu0
        %v3390 = vadd.f32 %v2466, %v3389
        %v3391 = vpop.f32.mrf.mxu0
        %v3392 = vadd.f32 %v2470, %v3391
        %3393 = vmatprep.mubr.bf16.mxu0 %v2302
        %3394 = vmatmul.mubr.bf16.gmra.mxu0 %v2301
        %v3395 = vpop.f32.mrf.mxu0
        %v3396 = vadd.f32 %v2466, %v3395
        %v3397 = vpop.f32.mrf.mxu0
        %v3398 = vadd.f32 %v2470, %v3397
        %v3399 = vpop.f32.mrf.mxu0
        %v3400 = vadd.f32 %v2466, %v3399
        %v3401 = vpop.f32.mrf.mxu0
        %v3402 = vadd.f32 %v2470, %v3401
        %3403 = vmatprep.mubr.bf16.mxu0 %v2306
        %3404 = vmatmul.mubr.bf16.gmra.mxu0 %v2305
        %v3405 = vpop.f32.mrf.mxu0
        %v3406 = vadd.f32 %v2466, %v3405
        %v3407 = vpop.f32.mrf.mxu0
        %v3408 = vadd.f32 %v2470, %v3407
        %v3409 = vpop.f32.mrf.mxu0
        %v3410 = vadd.f32 %v2466, %v3409
        %v3411 = vpop.f32.mrf.mxu0
        %v3412 = vadd.f32 %v2470, %v3411
        %3413 = vmatprep.mubr.bf16.mxu0 %v2310
        %3414 = vmatmul.mubr.bf16.gmra.mxu0 %v2309
        %v3415 = vpop.f32.mrf.mxu0
        %v3416 = vadd.f32 %v2466, %v3415
        %v3417 = vpop.f32.mrf.mxu0
        %v3418 = vadd.f32 %v2470, %v3417
        %v3419 = vpop.f32.mrf.mxu0
        %v3420 = vadd.f32 %v2466, %v3419
        %v3421 = vpop.f32.mrf.mxu0
        %v3422 = vadd.f32 %v2470, %v3421
        %3423 = vmatprep.mubr.bf16.mxu0 %v2314
        %3424 = vmatmul.mubr.bf16.gmra.mxu0 %v2313
        %v3425 = vpop.f32.mrf.mxu0
        %v3426 = vadd.f32 %v2466, %v3425
        %v3427 = vpop.f32.mrf.mxu0
        %v3428 = vadd.f32 %v2470, %v3427
        %v3429 = vpop.f32.mrf.mxu0
        %v3430 = vadd.f32 %v2466, %v3429
        %v3431 = vpop.f32.mrf.mxu0
        %v3432 = vadd.f32 %v2470, %v3431
        %3433 = vmatprep.mubr.bf16.mxu0 %v2318
        %3434 = vmatmul.mubr.bf16.gmra.mxu0 %v2317
        %v3435 = vpop.f32.mrf.mxu0
        %v3436 = vadd.f32 %v2466, %v3435
        %v3437 = vpop.f32.mrf.mxu0
        %v3438 = vadd.f32 %v2470, %v3437
        %v3439 = vpop.f32.mrf.mxu0
        %v3440 = vadd.f32 %v2466, %v3439
        %v3441 = vpop.f32.mrf.mxu0
        %v3442 = vadd.f32 %v2470, %v3441
        %3443 = vmatprep.mubr.bf16.mxu0 %v2322
        %3444 = vmatmul.mubr.bf16.gmra.mxu0 %v2321
        %v3445 = vpop.f32.mrf.mxu0
        %v3446 = vadd.f32 %v2466, %v3445
        %v3447 = vpop.f32.mrf.mxu0
        %v3448 = vadd.f32 %v2470, %v3447
        %v3449 = vpop.f32.mrf.mxu0
        %v3450 = vadd.f32 %v2466, %v3449
        %v3451 = vpop.f32.mrf.mxu0
        %v3452 = vadd.f32 %v2470, %v3451
        %3453 = vdwg.mxu0
        %3454 = vmatprep.subr.bf16.mxu0 %v2954
        %3455 = vmatpush1.bf16.msra.mxu0 %v2953
        %3456 = vmatprep.subr.bf16.mxu0 %v2950
        %3457 = vmatpush1.bf16.msra.mxu0 %v2949
        %3458 = vmatprep.subr.bf16.mxu0 %v2946
        %3459 = vmatpush1.bf16.msra.mxu0 %v2945
        %3460 = vmatprep.subr.bf16.mxu0 %v2942
        %3461 = vmatpush1.bf16.msra.mxu0 %v2941
        %3462 = vmatprep.subr.bf16.mxu0 %v2938
        %3463 = vmatpush1.bf16.msra.mxu0 %v2937
        %3464 = vmatprep.subr.bf16.mxu0 %v2934
        %3465 = vmatpush1.bf16.msra.mxu0 %v2933
        %3466 = vmatprep.subr.bf16.mxu0 %v2930
        %3467 = vmatpush1.bf16.msra.mxu0 %v2929
        %3468 = vmatprep.subr.bf16.mxu0 %v2926
        %3469 = vmatpush1.bf16.msra.mxu0 %v2925
        %3470 = vmatprep.subr.bf16.mxu0 %v2986
        %3471 = vmatpush2.bf16.msra.mxu0 %v2985
        %3472 = vmatprep.subr.bf16.mxu0 %v2982
        %3473 = vmatpush2.bf16.msra.mxu0 %v2981
        %3474 = vmatprep.subr.bf16.mxu0 %v2978
        %3475 = vmatpush2.bf16.msra.mxu0 %v2977
        %3476 = vmatprep.subr.bf16.mxu0 %v2974
        %3477 = vmatpush2.bf16.msra.mxu0 %v2973
        %3478 = vmatprep.subr.bf16.mxu0 %v2970
        %3479 = vmatpush2.bf16.msra.mxu0 %v2969
        %3480 = vmatprep.subr.bf16.mxu0 %v2966
        %3481 = vmatpush2.bf16.msra.mxu0 %v2965
        %3482 = vmatprep.subr.bf16.mxu0 %v2962
        %3483 = vmatpush2.bf16.msra.mxu0 %v2961
        %3484 = vmatprep.subr.bf16.mxu0 %v2958
        %3485 = vmatpush2.bf16.msra.mxu0 %v2957
        %3486 = vmatprep.mubr.bf16.mxu0 %v2296
        %3487 = vmatmul.mubr.bf16.gmra.mxu0 %v2295
        %v3488 = vpop.f32.mrf.mxu0
        %v3489 = vadd.f32 %v3376, %v3488
        %v3490 = vpop.f32.mrf.mxu0
        %v3491 = vadd.f32 %v3378, %v3490
        %v3492 = vpop.f32.mrf.mxu0
        %v3493 = vadd.f32 %v3380, %v3492
        %v3494 = vpop.f32.mrf.mxu0
        %v3495 = vadd.f32 %v3382, %v3494
        %3496 = vmatprep.mubr.bf16.mxu0 %v2300
        %3497 = vmatmul.mubr.bf16.gmra.mxu0 %v2299
        %v3498 = vpop.f32.mrf.mxu0
        %v3499 = vadd.f32 %v3386, %v3498
        %v3500 = vpop.f32.mrf.mxu0
        %v3501 = vadd.f32 %v3388, %v3500
        %v3502 = vpop.f32.mrf.mxu0
        %v3503 = vadd.f32 %v3390, %v3502
        %v3504 = vpop.f32.mrf.mxu0
        %v3505 = vadd.f32 %v3392, %v3504
        %3506 = vmatprep.mubr.bf16.mxu0 %v2304
        %3507 = vmatmul.mubr.bf16.gmra.mxu0 %v2303
        %v3508 = vpop.f32.mrf.mxu0
        %v3509 = vadd.f32 %v3396, %v3508
        %v3510 = vpop.f32.mrf.mxu0
        %v3511 = vadd.f32 %v3398, %v3510
        %v3512 = vpop.f32.mrf.mxu0
        %v3513 = vadd.f32 %v3400, %v3512
        %v3514 = vpop.f32.mrf.mxu0
        %v3515 = vadd.f32 %v3402, %v3514
        %3516 = vmatprep.mubr.bf16.mxu0 %v2308
        %3517 = vmatmul.mubr.bf16.gmra.mxu0 %v2307
        %v3518 = vpop.f32.mrf.mxu0
        %v3519 = vadd.f32 %v3406, %v3518
        %v3520 = vpop.f32.mrf.mxu0
        %v3521 = vadd.f32 %v3408, %v3520
        %v3522 = vpop.f32.mrf.mxu0
        %v3523 = vadd.f32 %v3410, %v3522
        %v3524 = vpop.f32.mrf.mxu0
        %v3525 = vadd.f32 %v3412, %v3524
        %3526 = vmatprep.mubr.bf16.mxu0 %v2312
        %3527 = vmatmul.mubr.bf16.gmra.mxu0 %v2311
        %v3528 = vpop.f32.mrf.mxu0
        %v3529 = vadd.f32 %v3416, %v3528
        %v3530 = vpop.f32.mrf.mxu0
        %v3531 = vadd.f32 %v3418, %v3530
        %v3532 = vpop.f32.mrf.mxu0
        %v3533 = vadd.f32 %v3420, %v3532
        %v3534 = vpop.f32.mrf.mxu0
        %v3535 = vadd.f32 %v3422, %v3534
        %3536 = vmatprep.mubr.bf16.mxu0 %v2316
        %3537 = vmatmul.mubr.bf16.gmra.mxu0 %v2315
        %v3538 = vpop.f32.mrf.mxu0
        %v3539 = vadd.f32 %v3426, %v3538
        %v3540 = vpop.f32.mrf.mxu0
        %v3541 = vadd.f32 %v3428, %v3540
        %v3542 = vpop.f32.mrf.mxu0
        %v3543 = vadd.f32 %v3430, %v3542
        %v3544 = vpop.f32.mrf.mxu0
        %v3545 = vadd.f32 %v3432, %v3544
        %3546 = vmatprep.mubr.bf16.mxu0 %v2320
        %3547 = vmatmul.mubr.bf16.gmra.mxu0 %v2319
        %v3548 = vpop.f32.mrf.mxu0
        %v3549 = vadd.f32 %v3436, %v3548
        %v3550 = vpop.f32.mrf.mxu0
        %v3551 = vadd.f32 %v3438, %v3550
        %v3552 = vpop.f32.mrf.mxu0
        %v3553 = vadd.f32 %v3440, %v3552
        %v3554 = vpop.f32.mrf.mxu0
        %v3555 = vadd.f32 %v3442, %v3554
        %3556 = vmatprep.mubr.bf16.mxu0 %v2324
        %3557 = vmatmul.mubr.bf16.gmra.mxu0 %v2323
        %v3558 = vpop.f32.mrf.mxu0
        %v3559 = vadd.f32 %v3446, %v3558
        %v3560 = vpop.f32.mrf.mxu0
        %v3561 = vadd.f32 %v3448, %v3560
        %v3562 = vpop.f32.mrf.mxu0
        %v3563 = vadd.f32 %v3450, %v3562
        %v3564 = vpop.f32.mrf.mxu0
        %v3565 = vadd.f32 %v3452, %v3564
        %3566 = vdwg.mxu0
        %v3567 = vmax.f32 %v3263, 0.0
        %v3568 = vmax.f32 %v3265, 0.0
        %v3569 = vmax.f32 %v3489, 0.0
        %v3570 = vmax.f32 %v3491, 0.0
        %v3571 = vmax.f32 %v3267, 0.0
        %v3572 = vmax.f32 %v3269, 0.0
        %v3573 = vmax.f32 %v3493, 0.0
        %v3574 = vmax.f32 %v3495, 0.0
        %v3575 = vmax.f32 %v3273, 0.0
        %v3576 = vmax.f32 %v3275, 0.0
        %v3577 = vmax.f32 %v3499, 0.0
        %v3578 = vmax.f32 %v3501, 0.0
        %v3579 = vmax.f32 %v3277, 0.0
        %v3580 = vmax.f32 %v3279, 0.0
        %v3581 = vmax.f32 %v3503, 0.0
        %v3582 = vmax.f32 %v3505, 0.0
        %v3583 = vmax.f32 %v3283, 0.0
        %v3584 = vmax.f32 %v3285, 0.0
        %v3585 = vmax.f32 %v3509, 0.0
        %v3586 = vmax.f32 %v3511, 0.0
        %v3587 = vmax.f32 %v3287, 0.0
        %v3588 = vmax.f32 %v3289, 0.0
        %v3589 = vmax.f32 %v3513, 0.0
        %v3590 = vmax.f32 %v3515, 0.0
        %v3591 = vmax.f32 %v3293, 0.0
        %v3592 = vmax.f32 %v3295, 0.0
        %v3593 = vmax.f32 %v3519, 0.0
        %v3594 = vmax.f32 %v3521, 0.0
        %v3595 = vmax.f32 %v3297, 0.0
        %v3596 = vmax.f32 %v3299, 0.0
        %v3597 = vmax.f32 %v3523, 0.0
        %v3598 = vmax.f32 %v3525, 0.0
        %v3599 = vmax.f32 %v3303, 0.0
        %v3600 = vmax.f32 %v3305, 0.0
        %v3601 = vmax.f32 %v3529, 0.0
        %v3602 = vmax.f32 %v3531, 0.0
        %v3603 = vmax.f32 %v3307, 0.0
        %v3604 = vmax.f32 %v3309, 0.0
        %v3605 = vmax.f32 %v3533, 0.0
        %v3606 = vmax.f32 %v3535, 0.0
        %v3607 = vmax.f32 %v3313, 0.0
        %v3608 = vmax.f32 %v3315, 0.0
        %v3609 = vmax.f32 %v3539, 0.0
        %v3610 = vmax.f32 %v3541, 0.0
        %v3611 = vmax.f32 %v3317, 0.0
        %v3612 = vmax.f32 %v3319, 0.0
        %v3613 = vmax.f32 %v3543, 0.0
        %v3614 = vmax.f32 %v3545, 0.0
        %v3615 = vmax.f32 %v3323, 0.0
        %v3616 = vmax.f32 %v3325, 0.0
        %v3617 = vmax.f32 %v3549, 0.0
        %v3618 = vmax.f32 %v3551, 0.0
        %v3619 = vmax.f32 %v3327, 0.0
        %v3620 = vmax.f32 %v3329, 0.0
        %v3621 = vmax.f32 %v3553, 0.0
        %v3622 = vmax.f32 %v3555, 0.0
        %v3623 = vmax.f32 %v3333, 0.0
        %v3624 = vmax.f32 %v3335, 0.0
        %v3625 = vmax.f32 %v3559, 0.0
        %v3626 = vmax.f32 %v3561, 0.0
        %v3627 = vmax.f32 %v3337, 0.0
        %v3628 = vmax.f32 %v3339, 0.0
        %v3629 = vmax.f32 %v3563, 0.0
        %v3630 = vmax.f32 %v3565, 0.0
        %v3631 = vpack.c.bf16 %v3571, %v3567
        %v3632 = vpack.c.bf16 %v3572, %v3568
        %v3633 = vpack.c.bf16 %v3573, %v3569
        %v3634 = vpack.c.bf16 %v3574, %v3570
        %v3635 = vpack.c.bf16 %v3579, %v3575
        %v3636 = vpack.c.bf16 %v3580, %v3576
        %v3637 = vpack.c.bf16 %v3581, %v3577
        %v3638 = vpack.c.bf16 %v3582, %v3578
        %v3639 = vpack.c.bf16 %v3587, %v3583
        %v3640 = vpack.c.bf16 %v3588, %v3584
        %v3641 = vpack.c.bf16 %v3589, %v3585
        %v3642 = vpack.c.bf16 %v3590, %v3586
        %v3643 = vpack.c.bf16 %v3595, %v3591
        %v3644 = vpack.c.bf16 %v3596, %v3592
        %v3645 = vpack.c.bf16 %v3597, %v3593
        %v3646 = vpack.c.bf16 %v3598, %v3594
        %v3647 = vpack.c.bf16 %v3603, %v3599
        %v3648 = vpack.c.bf16 %v3604, %v3600
        %v3649 = vpack.c.bf16 %v3605, %v3601
        %v3650 = vpack.c.bf16 %v3606, %v3602
        %v3651 = vpack.c.bf16 %v3611, %v3607
        %v3652 = vpack.c.bf16 %v3612, %v3608
        %v3653 = vpack.c.bf16 %v3613, %v3609
        %v3654 = vpack.c.bf16 %v3614, %v3610
        %v3655 = vpack.c.bf16 %v3619, %v3615
        %v3656 = vpack.c.bf16 %v3620, %v3616
        %v3657 = vpack.c.bf16 %v3621, %v3617
        %v3658 = vpack.c.bf16 %v3622, %v3618
        %v3659 = vpack.c.bf16 %v3627, %v3623
        %v3660 = vpack.c.bf16 %v3628, %v3624
        %v3661 = vpack.c.bf16 %v3629, %v3625
        %v3662 = vpack.c.bf16 %v3630, %v3626
        %v3663 = vld [vmem:[%s7] sm:$0xf]
        %v3664 = vld [vmem:[%s7 + $0x4] sm:$0xf]
        %v3665 = vld [vmem:[%s7 + $0x8] sm:$0xf]
        %v3666 = vld [vmem:[%s7 + $0xc] sm:$0xf]
        %v3667 = vld [vmem:[%s7 + $0x10] sm:$0xf]
        %v3668 = vld [vmem:[%s7 + $0x14] sm:$0xf]
        %v3669 = vld [vmem:[%s7 + $0x18] sm:$0xf]
        %v3670 = vld [vmem:[%s7 + $0x1c] sm:$0xf]
        %v3671 = vld [vmem:[%s7 + $0x20] sm:$0xf]
        %v3672 = vld [vmem:[%s7 + $0x24] sm:$0xf]
        %v3673 = vld [vmem:[%s7 + $0x28] sm:$0xf]
        %v3674 = vld [vmem:[%s7 + $0x2c] sm:$0xf]
        %v3675 = vld [vmem:[%s7 + $0x30] sm:$0xf]
        %v3676 = vld [vmem:[%s7 + $0x34] sm:$0xf]
        %v3677 = vld [vmem:[%s7 + $0x38] sm:$0xf]
        %v3678 = vld [vmem:[%s7 + $0x3c] sm:$0xf]
        %v3679 = vld [vmem:[%s7 + $0x40] sm:$0xf]
        %v3680 = vld [vmem:[%s7 + $0x44] sm:$0xf]
        %v3681 = vld [vmem:[%s7 + $0x48] sm:$0xf]
        %v3682 = vld [vmem:[%s7 + $0x4c] sm:$0xf]
        %v3683 = vld [vmem:[%s7 + $0x50] sm:$0xf]
        %v3684 = vld [vmem:[%s7 + $0x54] sm:$0xf]
        %v3685 = vld [vmem:[%s7 + $0x58] sm:$0xf]
        %v3686 = vld [vmem:[%s7 + $0x5c] sm:$0xf]
        %v3687 = vld [vmem:[%s7 + $0x60] sm:$0xf]
        %v3688 = vld [vmem:[%s7 + $0x64] sm:$0xf]
        %v3689 = vld [vmem:[%s7 + $0x68] sm:$0xf]
        %v3690 = vld [vmem:[%s7 + $0x6c] sm:$0xf]
        %v3691 = vld [vmem:[%s7 + $0x70] sm:$0xf]
        %v3692 = vld [vmem:[%s7 + $0x74] sm:$0xf]
        %v3693 = vld [vmem:[%s7 + $0x78] sm:$0xf]
        %v3694 = vld [vmem:[%s7 + $0x7c] sm:$0xf]
        %v3695 = vld [vmem:[%s7 + $0x80] sm:$0xf]
        %v3696 = vld [vmem:[%s7 + $0x84] sm:$0xf]
        %v3697 = vld [vmem:[%s7 + $0x88] sm:$0xf]
        %v3698 = vld [vmem:[%s7 + $0x8c] sm:$0xf]
        %v3699 = vld [vmem:[%s7 + $0x90] sm:$0xf]
        %v3700 = vld [vmem:[%s7 + $0x94] sm:$0xf]
        %v3701 = vld [vmem:[%s7 + $0x98] sm:$0xf]
        %v3702 = vld [vmem:[%s7 + $0x9c] sm:$0xf]
        %v3703 = vld [vmem:[%s7 + $0xa0] sm:$0xf]
        %v3704 = vld [vmem:[%s7 + $0xa4] sm:$0xf]
        %v3705 = vld [vmem:[%s7 + $0xa8] sm:$0xf]
        %v3706 = vld [vmem:[%s7 + $0xac] sm:$0xf]
        %v3707 = vld [vmem:[%s7 + $0xb0] sm:$0xf]
        %v3708 = vld [vmem:[%s7 + $0xb4] sm:$0xf]
        %v3709 = vld [vmem:[%s7 + $0xb8] sm:$0xf]
        %v3710 = vld [vmem:[%s7 + $0xbc] sm:$0xf]
        %v3711 = vld [vmem:[%s7 + $0xc0] sm:$0xf]
        %v3712 = vld [vmem:[%s7 + $0xc4] sm:$0xf]
        %v3713 = vld [vmem:[%s7 + $0xc8] sm:$0xf]
        %v3714 = vld [vmem:[%s7 + $0xcc] sm:$0xf]
        %v3715 = vld [vmem:[%s7 + $0xd0] sm:$0xf]
        %v3716 = vld [vmem:[%s7 + $0xd4] sm:$0xf]
        %v3717 = vld [vmem:[%s7 + $0xd8] sm:$0xf]
        %v3718 = vld [vmem:[%s7 + $0xdc] sm:$0xf]
        %v3719 = vld [vmem:[%s7 + $0xe0] sm:$0xf]
        %v3720 = vld [vmem:[%s7 + $0xe4] sm:$0xf]
        %v3721 = vld [vmem:[%s7 + $0xe8] sm:$0xf]
        %v3722 = vld [vmem:[%s7 + $0xec] sm:$0xf]
        %v3723 = vld [vmem:[%s7 + $0xf0] sm:$0xf]
        %v3724 = vld [vmem:[%s7 + $0xf4] sm:$0xf]
        %v3725 = vld [vmem:[%s7 + $0xf8] sm:$0xf]
        %v3726 = vld [vmem:[%s7 + $0xfc] sm:$0xf]
        %v3727 = vld [vmem:[#allocation2] sm:$0x1]
        %v3729 = vlaneseq
        %v3730 = vshrl.u32 %v3729, 7
        %v3731 = vsub.s32 0, %v3730
        %v3732 = vrot.slane %v3727, %v3731
        %v3798 = vunpack.c.l.b16 %v3663
        %v3799 = vunpack.c.l.b16 %v3664
        %v3800 = vunpack.c.l.b16 %v3665
        %v3801 = vunpack.c.l.b16 %v3666
        %v3802 = vunpack.c.l.b16 %v3667
        %v3803 = vunpack.c.l.b16 %v3668
        %v3804 = vunpack.c.l.b16 %v3669
        %v3805 = vunpack.c.l.b16 %v3670
        %v3806 = vunpack.c.l.b16 %v3671
        %v3807 = vunpack.c.l.b16 %v3672
        %v3808 = vunpack.c.l.b16 %v3673
        %v3809 = vunpack.c.l.b16 %v3674
        %v3810 = vunpack.c.l.b16 %v3675
        %v3811 = vunpack.c.l.b16 %v3676
        %v3812 = vunpack.c.l.b16 %v3677
        %v3813 = vunpack.c.l.b16 %v3678
        %v3814 = vunpack.c.l.b16 %v3679
        %v3815 = vunpack.c.l.b16 %v3680
        %v3816 = vunpack.c.l.b16 %v3681
        %v3817 = vunpack.c.l.b16 %v3682
        %v3818 = vunpack.c.l.b16 %v3683
        %v3819 = vunpack.c.l.b16 %v3684
        %v3820 = vunpack.c.l.b16 %v3685
        %v3821 = vunpack.c.l.b16 %v3686
        %v3822 = vunpack.c.l.b16 %v3687
        %v3823 = vunpack.c.l.b16 %v3688
        %v3824 = vunpack.c.l.b16 %v3689
        %v3825 = vunpack.c.l.b16 %v3690
        %v3826 = vunpack.c.l.b16 %v3691
        %v3827 = vunpack.c.l.b16 %v3692
        %v3828 = vunpack.c.l.b16 %v3693
        %v3829 = vunpack.c.l.b16 %v3694
        %v3830 = vunpack.c.l.b16 %v3695
        %v3831 = vunpack.c.l.b16 %v3696
        %v3832 = vunpack.c.l.b16 %v3697
        %v3833 = vunpack.c.l.b16 %v3698
        %v3834 = vunpack.c.l.b16 %v3699
        %v3835 = vunpack.c.l.b16 %v3700
        %v3836 = vunpack.c.l.b16 %v3701
        %v3837 = vunpack.c.l.b16 %v3702
        %v3838 = vunpack.c.l.b16 %v3703
        %v3839 = vunpack.c.l.b16 %v3704
        %v3840 = vunpack.c.l.b16 %v3705
        %v3841 = vunpack.c.l.b16 %v3706
        %v3842 = vunpack.c.l.b16 %v3707
        %v3843 = vunpack.c.l.b16 %v3708
        %v3844 = vunpack.c.l.b16 %v3709
        %v3845 = vunpack.c.l.b16 %v3710
        %v3846 = vunpack.c.l.b16 %v3711
        %v3847 = vunpack.c.l.b16 %v3712
        %v3848 = vunpack.c.l.b16 %v3713
        %v3849 = vunpack.c.l.b16 %v3714
        %v3850 = vunpack.c.l.b16 %v3715
        %v3851 = vunpack.c.l.b16 %v3716
        %v3852 = vunpack.c.l.b16 %v3717
        %v3853 = vunpack.c.l.b16 %v3718
        %v3854 = vunpack.c.l.b16 %v3719
        %v3855 = vunpack.c.l.b16 %v3720
        %v3856 = vunpack.c.l.b16 %v3721
        %v3857 = vunpack.c.l.b16 %v3722
        %v3858 = vunpack.c.l.b16 %v3723
        %v3859 = vunpack.c.l.b16 %v3724
        %v3860 = vunpack.c.l.b16 %v3725
        %v3861 = vunpack.c.l.b16 %v3726
        %v3862 = vpack.c.b16 %v3799, %v3798
        %v3863 = vpack.c.b16 %v3801, %v3800
        %v3864 = vpack.c.b16 %v3803, %v3802
        %v3865 = vpack.c.b16 %v3805, %v3804
        %v3866 = vpack.c.b16 %v3807, %v3806
        %v3867 = vpack.c.b16 %v3809, %v3808
        %v3868 = vpack.c.b16 %v3811, %v3810
        %v3869 = vpack.c.b16 %v3813, %v3812
        %v3870 = vpack.c.b16 %v3815, %v3814
        %v3871 = vpack.c.b16 %v3817, %v3816
        %v3872 = vpack.c.b16 %v3819, %v3818
        %v3873 = vpack.c.b16 %v3821, %v3820
        %v3874 = vpack.c.b16 %v3823, %v3822
        %v3875 = vpack.c.b16 %v3825, %v3824
        %v3876 = vpack.c.b16 %v3827, %v3826
        %v3877 = vpack.c.b16 %v3829, %v3828
        %v3878 = vpack.c.b16 %v3831, %v3830
        %v3879 = vpack.c.b16 %v3833, %v3832
        %v3880 = vpack.c.b16 %v3835, %v3834
        %v3881 = vpack.c.b16 %v3837, %v3836
        %v3882 = vpack.c.b16 %v3839, %v3838
        %v3883 = vpack.c.b16 %v3841, %v3840
        %v3884 = vpack.c.b16 %v3843, %v3842
        %v3885 = vpack.c.b16 %v3845, %v3844
        %v3886 = vpack.c.b16 %v3847, %v3846
        %v3887 = vpack.c.b16 %v3849, %v3848
        %v3888 = vpack.c.b16 %v3851, %v3850
        %v3889 = vpack.c.b16 %v3853, %v3852
        %v3890 = vpack.c.b16 %v3855, %v3854
        %v3891 = vpack.c.b16 %v3857, %v3856
        %v3892 = vpack.c.b16 %v3859, %v3858
        %v3893 = vpack.c.b16 %v3861, %v3860
        %3926 = vmatprep.subr.bf16.mxu0 0
        %3927 = vmatpush1.bf16.msra.mxu0 %v3869
        %3928 = vmatprep.subr.bf16.mxu0 0
        %3929 = vmatpush1.bf16.msra.mxu0 %v3868
        %3930 = vmatprep.subr.bf16.mxu0 0
        %3931 = vmatpush1.bf16.msra.mxu0 %v3867
        %3932 = vmatprep.subr.bf16.mxu0 0
        %3933 = vmatpush1.bf16.msra.mxu0 %v3866
        %3934 = vmatprep.subr.bf16.mxu0 0
        %3935 = vmatpush1.bf16.msra.mxu0 %v3865
        %3936 = vmatprep.subr.bf16.mxu0 0
        %3937 = vmatpush1.bf16.msra.mxu0 %v3864
        %3938 = vmatprep.subr.bf16.mxu0 0
        %3939 = vmatpush1.bf16.msra.mxu0 %v3863
        %3940 = vmatprep.subr.bf16.mxu0 0
        %3941 = vmatpush1.bf16.msra.mxu0 %v3862
        %3942 = vmatprep.subr.bf16.mxu0 0
        %3943 = vmatpush2.bf16.msra.mxu0 %v3877
        %3944 = vmatprep.subr.bf16.mxu0 0
        %3945 = vmatpush2.bf16.msra.mxu0 %v3876
        %3946 = vmatprep.subr.bf16.mxu0 0
        %3947 = vmatpush2.bf16.msra.mxu0 %v3875
        %3948 = vmatprep.subr.bf16.mxu0 0
        %3949 = vmatpush2.bf16.msra.mxu0 %v3874
        %3950 = vmatprep.subr.bf16.mxu0 0
        %3951 = vmatpush2.bf16.msra.mxu0 %v3873
        %3952 = vmatprep.subr.bf16.mxu0 0
        %3953 = vmatpush2.bf16.msra.mxu0 %v3872
        %3954 = vmatprep.subr.bf16.mxu0 0
        %3955 = vmatpush2.bf16.msra.mxu0 %v3871
        %3956 = vmatprep.subr.bf16.mxu0 0
        %3957 = vmatpush2.bf16.msra.mxu0 %v3870
        %3958 = vmatprep.mubr.bf16.mxu0 %v3632
        %3959 = vmatmul.mubr.bf16.gmra.mxu0 %v3631
        %v3960 = vpop.f32.mrf.mxu0
        %v3961 = vadd.f32 %v3732, %v3960
        %v3962 = vpop.f32.mrf.mxu0
        %v3963 = vpop.f32.mrf.mxu0
        %v3964 = vadd.f32 %v3732, %v3963
        %v3965 = vpop.f32.mrf.mxu0
        %3966 = vmatprep.mubr.bf16.mxu0 %v3636
        %3967 = vmatmul.mubr.bf16.gmra.mxu0 %v3635
        %v3968 = vpop.f32.mrf.mxu0
        %v3969 = vadd.f32 %v3732, %v3968
        %v3970 = vpop.f32.mrf.mxu0
        %v3971 = vpop.f32.mrf.mxu0
        %v3972 = vadd.f32 %v3732, %v3971
        %v3973 = vpop.f32.mrf.mxu0
        %3974 = vmatprep.mubr.bf16.mxu0 %v3640
        %3975 = vmatmul.mubr.bf16.gmra.mxu0 %v3639
        %v3976 = vpop.f32.mrf.mxu0
        %v3977 = vadd.f32 %v3732, %v3976
        %v3978 = vpop.f32.mrf.mxu0
        %v3979 = vpop.f32.mrf.mxu0
        %v3980 = vadd.f32 %v3732, %v3979
        %v3981 = vpop.f32.mrf.mxu0
        %3982 = vmatprep.mubr.bf16.mxu0 %v3644
        %3983 = vmatmul.mubr.bf16.gmra.mxu0 %v3643
        %v3984 = vpop.f32.mrf.mxu0
        %v3985 = vadd.f32 %v3732, %v3984
        %v3986 = vpop.f32.mrf.mxu0
        %v3987 = vpop.f32.mrf.mxu0
        %v3988 = vadd.f32 %v3732, %v3987
        %v3989 = vpop.f32.mrf.mxu0
        %3990 = vmatprep.mubr.bf16.mxu0 %v3648
        %3991 = vmatmul.mubr.bf16.gmra.mxu0 %v3647
        %v3992 = vpop.f32.mrf.mxu0
        %v3993 = vadd.f32 %v3732, %v3992
        %v3994 = vpop.f32.mrf.mxu0
        %v3995 = vpop.f32.mrf.mxu0
        %v3996 = vadd.f32 %v3732, %v3995
        %v3997 = vpop.f32.mrf.mxu0
        %3998 = vmatprep.mubr.bf16.mxu0 %v3652
        %3999 = vmatmul.mubr.bf16.gmra.mxu0 %v3651
        %v4000 = vpop.f32.mrf.mxu0
        %v4001 = vadd.f32 %v3732, %v4000
        %v4002 = vpop.f32.mrf.mxu0
        %v4003 = vpop.f32.mrf.mxu0
        %v4004 = vadd.f32 %v3732, %v4003
        %v4005 = vpop.f32.mrf.mxu0
        %4006 = vmatprep.mubr.bf16.mxu0 %v3656
        %4007 = vmatmul.mubr.bf16.gmra.mxu0 %v3655
        %v4008 = vpop.f32.mrf.mxu0
        %v4009 = vadd.f32 %v3732, %v4008
        %v4010 = vpop.f32.mrf.mxu0
        %v4011 = vpop.f32.mrf.mxu0
        %v4012 = vadd.f32 %v3732, %v4011
        %v4013 = vpop.f32.mrf.mxu0
        %4014 = vmatprep.mubr.bf16.mxu0 %v3660
        %4015 = vmatmul.mubr.bf16.gmra.mxu0 %v3659
        %v4016 = vpop.f32.mrf.mxu0
        %v4017 = vadd.f32 %v3732, %v4016
        %v4018 = vpop.f32.mrf.mxu0
        %v4019 = vpop.f32.mrf.mxu0
        %v4020 = vadd.f32 %v3732, %v4019
        %v4021 = vpop.f32.mrf.mxu0
        %4022 = vdwg.mxu0
        %4023 = vmatprep.subr.bf16.mxu0 0
        %4024 = vmatpush1.bf16.msra.mxu0 %v3885
        %4025 = vmatprep.subr.bf16.mxu0 0
        %4026 = vmatpush1.bf16.msra.mxu0 %v3884
        %4027 = vmatprep.subr.bf16.mxu0 0
        %4028 = vmatpush1.bf16.msra.mxu0 %v3883
        %4029 = vmatprep.subr.bf16.mxu0 0
        %4030 = vmatpush1.bf16.msra.mxu0 %v3882
        %4031 = vmatprep.subr.bf16.mxu0 0
        %4032 = vmatpush1.bf16.msra.mxu0 %v3881
        %4033 = vmatprep.subr.bf16.mxu0 0
        %4034 = vmatpush1.bf16.msra.mxu0 %v3880
        %4035 = vmatprep.subr.bf16.mxu0 0
        %4036 = vmatpush1.bf16.msra.mxu0 %v3879
        %4037 = vmatprep.subr.bf16.mxu0 0
        %4038 = vmatpush1.bf16.msra.mxu0 %v3878
        %4039 = vmatprep.subr.bf16.mxu0 0
        %4040 = vmatpush2.bf16.msra.mxu0 %v3893
        %4041 = vmatprep.subr.bf16.mxu0 0
        %4042 = vmatpush2.bf16.msra.mxu0 %v3892
        %4043 = vmatprep.subr.bf16.mxu0 0
        %4044 = vmatpush2.bf16.msra.mxu0 %v3891
        %4045 = vmatprep.subr.bf16.mxu0 0
        %4046 = vmatpush2.bf16.msra.mxu0 %v3890
        %4047 = vmatprep.subr.bf16.mxu0 0
        %4048 = vmatpush2.bf16.msra.mxu0 %v3889
        %4049 = vmatprep.subr.bf16.mxu0 0
        %4050 = vmatpush2.bf16.msra.mxu0 %v3888
        %4051 = vmatprep.subr.bf16.mxu0 0
        %4052 = vmatpush2.bf16.msra.mxu0 %v3887
        %4053 = vmatprep.subr.bf16.mxu0 0
        %4054 = vmatpush2.bf16.msra.mxu0 %v3886
        %4055 = vmatprep.mubr.bf16.mxu0 %v3634
        %4056 = vmatmul.mubr.bf16.gmra.mxu0 %v3633
        %v4057 = vpop.f32.mrf.mxu0
        %v4058 = vadd.f32 %v3961, %v4057
        %v4059 = vpop.f32.mrf.mxu0
        %v4060 = vpop.f32.mrf.mxu0
        %v4061 = vadd.f32 %v3964, %v4060
        %v4062 = vpop.f32.mrf.mxu0
        %4063 = vmatprep.mubr.bf16.mxu0 %v3638
        %4064 = vmatmul.mubr.bf16.gmra.mxu0 %v3637
        %v4065 = vpop.f32.mrf.mxu0
        %v4066 = vadd.f32 %v3969, %v4065
        %v4067 = vpop.f32.mrf.mxu0
        %v4068 = vpop.f32.mrf.mxu0
        %v4069 = vadd.f32 %v3972, %v4068
        %v4070 = vpop.f32.mrf.mxu0
        %4071 = vmatprep.mubr.bf16.mxu0 %v3642
        %4072 = vmatmul.mubr.bf16.gmra.mxu0 %v3641
        %v4073 = vpop.f32.mrf.mxu0
        %v4074 = vadd.f32 %v3977, %v4073
        %v4075 = vpop.f32.mrf.mxu0
        %v4076 = vpop.f32.mrf.mxu0
        %v4077 = vadd.f32 %v3980, %v4076
        %v4078 = vpop.f32.mrf.mxu0
        %4079 = vmatprep.mubr.bf16.mxu0 %v3646
        %4080 = vmatmul.mubr.bf16.gmra.mxu0 %v3645
        %v4081 = vpop.f32.mrf.mxu0
        %v4082 = vadd.f32 %v3985, %v4081
        %v4083 = vpop.f32.mrf.mxu0
        %v4084 = vpop.f32.mrf.mxu0
        %v4085 = vadd.f32 %v3988, %v4084
        %v4086 = vpop.f32.mrf.mxu0
        %4087 = vmatprep.mubr.bf16.mxu0 %v3650
        %4088 = vmatmul.mubr.bf16.gmra.mxu0 %v3649
        %v4089 = vpop.f32.mrf.mxu0
        %v4090 = vadd.f32 %v3993, %v4089
        %v4091 = vpop.f32.mrf.mxu0
        %v4092 = vpop.f32.mrf.mxu0
        %v4093 = vadd.f32 %v3996, %v4092
        %v4094 = vpop.f32.mrf.mxu0
        %4095 = vmatprep.mubr.bf16.mxu0 %v3654
        %4096 = vmatmul.mubr.bf16.gmra.mxu0 %v3653
        %v4097 = vpop.f32.mrf.mxu0
        %v4098 = vadd.f32 %v4001, %v4097
        %v4099 = vpop.f32.mrf.mxu0
        %v4100 = vpop.f32.mrf.mxu0
        %v4101 = vadd.f32 %v4004, %v4100
        %v4102 = vpop.f32.mrf.mxu0
        %4103 = vmatprep.mubr.bf16.mxu0 %v3658
        %4104 = vmatmul.mubr.bf16.gmra.mxu0 %v3657
        %v4105 = vpop.f32.mrf.mxu0
        %v4106 = vadd.f32 %v4009, %v4105
        %v4107 = vpop.f32.mrf.mxu0
        %v4108 = vpop.f32.mrf.mxu0
        %v4109 = vadd.f32 %v4012, %v4108
        %v4110 = vpop.f32.mrf.mxu0
        %4111 = vmatprep.mubr.bf16.mxu0 %v3662
        %4112 = vmatmul.mubr.bf16.gmra.mxu0 %v3661
        %v4113 = vpop.f32.mrf.mxu0
        %v4114 = vadd.f32 %v4017, %v4113
        %v4115 = vpop.f32.mrf.mxu0
        %v4116 = vpop.f32.mrf.mxu0
        %v4117 = vadd.f32 %v4020, %v4116
        %v4118 = vpop.f32.mrf.mxu0
        %4119 = vdwg.mxu0
        %v4120 = vxor.u32 %v4058, 2147483648
        %v4121 = vxor.u32 %v4061, 2147483648
        %v4122 = vxor.u32 %v4066, 2147483648
        %v4123 = vxor.u32 %v4069, 2147483648
        %v4124 = vxor.u32 %v4074, 2147483648
        %v4125 = vxor.u32 %v4077, 2147483648
        %v4126 = vxor.u32 %v4082, 2147483648
        %v4127 = vxor.u32 %v4085, 2147483648
        %v4128 = vxor.u32 %v4090, 2147483648
        %v4129 = vxor.u32 %v4093, 2147483648
        %v4130 = vxor.u32 %v4098, 2147483648
        %v4131 = vxor.u32 %v4101, 2147483648
        %v4132 = vxor.u32 %v4106, 2147483648
        %v4133 = vxor.u32 %v4109, 2147483648
        %v4134 = vxor.u32 %v4114, 2147483648
        %v4135 = vxor.u32 %v4117, 2147483648
        %v4136 = vmul.f32 %v4120, 1.442695
        %v4137 = vpow.pop %v4136
        %v4138 = vmul.f32 %v4121, 1.442695
        %v4139 = vpow.pop %v4138
        %v4140 = vmul.f32 %v4122, 1.442695
        %v4141 = vpow.pop %v4140
        %v4142 = vmul.f32 %v4123, 1.442695
        %v4143 = vpow.pop %v4142
        %v4144 = vmul.f32 %v4124, 1.442695
        %v4145 = vpow.pop %v4144
        %v4146 = vmul.f32 %v4125, 1.442695
        %v4147 = vpow.pop %v4146
        %v4148 = vmul.f32 %v4126, 1.442695
        %v4149 = vpow.pop %v4148
        %v4150 = vmul.f32 %v4127, 1.442695
        %v4151 = vpow.pop %v4150
        %v4152 = vmul.f32 %v4128, 1.442695
        %v4153 = vpow.pop %v4152
        %v4154 = vmul.f32 %v4129, 1.442695
        %v4155 = vpow.pop %v4154
        %v4156 = vmul.f32 %v4130, 1.442695
        %v4157 = vpow.pop %v4156
        %v4158 = vmul.f32 %v4131, 1.442695
        %v4159 = vpow.pop %v4158
        %v4160 = vmul.f32 %v4132, 1.442695
        %v4161 = vpow.pop %v4160
        %v4162 = vmul.f32 %v4133, 1.442695
        %v4163 = vpow.pop %v4162
        %v4164 = vmul.f32 %v4134, 1.442695
        %v4165 = vpow.pop %v4164
        %v4166 = vmul.f32 %v4135, 1.442695
        %v4167 = vpow.pop %v4166
        %v4168 = vadd.f32 %v4137, 1.0
        %v4169 = vadd.f32 %v4139, 1.0
        %v4170 = vadd.f32 %v4141, 1.0
        %v4171 = vadd.f32 %v4143, 1.0
        %v4172 = vadd.f32 %v4145, 1.0
        %v4173 = vadd.f32 %v4147, 1.0
        %v4174 = vadd.f32 %v4149, 1.0
        %v4175 = vadd.f32 %v4151, 1.0
        %v4176 = vadd.f32 %v4153, 1.0
        %v4177 = vadd.f32 %v4155, 1.0
        %v4178 = vadd.f32 %v4157, 1.0
        %v4179 = vadd.f32 %v4159, 1.0
        %v4180 = vadd.f32 %v4161, 1.0
        %v4181 = vadd.f32 %v4163, 1.0
        %v4182 = vadd.f32 %v4165, 1.0
        %v4183 = vadd.f32 %v4167, 1.0
        %v4184 = vrcp.pop %v4168
        %v4185 = vmul.f32 1.0, %v4184
        %v4186 = vrcp.pop %v4169
        %v4187 = vmul.f32 1.0, %v4186
        %v4188 = vrcp.pop %v4170
        %v4189 = vmul.f32 1.0, %v4188
        %v4190 = vrcp.pop %v4171
        %v4191 = vmul.f32 1.0, %v4190
        %v4192 = vrcp.pop %v4172
        %v4193 = vmul.f32 1.0, %v4192
        %v4194 = vrcp.pop %v4173
        %v4195 = vmul.f32 1.0, %v4194
        %v4196 = vrcp.pop %v4174
        %v4197 = vmul.f32 1.0, %v4196
        %v4198 = vrcp.pop %v4175
        %v4199 = vmul.f32 1.0, %v4198
        %v4200 = vrcp.pop %v4176
        %v4201 = vmul.f32 1.0, %v4200
        %v4202 = vrcp.pop %v4177
        %v4203 = vmul.f32 1.0, %v4202
        %v4204 = vrcp.pop %v4178
        %v4205 = vmul.f32 1.0, %v4204
        %v4206 = vrcp.pop %v4179
        %v4207 = vmul.f32 1.0, %v4206
        %v4208 = vrcp.pop %v4180
        %v4209 = vmul.f32 1.0, %v4208
        %v4210 = vrcp.pop %v4181
        %v4211 = vmul.f32 1.0, %v4210
        %v4212 = vrcp.pop %v4182
        %v4213 = vmul.f32 1.0, %v4212
        %v4214 = vrcp.pop %v4183
        %v4215 = vmul.f32 1.0, %v4214
        %vm4216 = vcmask 7168
        %4217 = vst.msk [vmem:[%s384] sm:$0xff] %vm4216, %v4185
        %4218 = vst.msk [vmem:[%s384 + $0x8] sm:$0xff] %vm4216, %v4187
        %4219 = vst.msk [vmem:[%s384 + $0x10] sm:$0xff] %vm4216, %v4189
        %4220 = vst.msk [vmem:[%s384 + $0x18] sm:$0xff] %vm4216, %v4191
        %4221 = vst.msk [vmem:[%s384 + $0x20] sm:$0xff] %vm4216, %v4193
        %4222 = vst.msk [vmem:[%s384 + $0x28] sm:$0xff] %vm4216, %v4195
        %4223 = vst.msk [vmem:[%s384 + $0x30] sm:$0xff] %vm4216, %v4197
        %4224 = vst.msk [vmem:[%s384 + $0x38] sm:$0xff] %vm4216, %v4199
        %4225 = vst.msk [vmem:[%s384 + $0x40] sm:$0xff] %vm4216, %v4201
        %4226 = vst.msk [vmem:[%s384 + $0x48] sm:$0xff] %vm4216, %v4203
        %4227 = vst.msk [vmem:[%s384 + $0x50] sm:$0xff] %vm4216, %v4205
        %4228 = vst.msk [vmem:[%s384 + $0x58] sm:$0xff] %vm4216, %v4207
        %4229 = vst.msk [vmem:[%s384 + $0x60] sm:$0xff] %vm4216, %v4209
        %4230 = vst.msk [vmem:[%s384 + $0x68] sm:$0xff] %vm4216, %v4211
        %4231 = vst.msk [vmem:[%s384 + $0x70] sm:$0xff] %vm4216, %v4213
        %4232 = vst.msk [vmem:[%s384 + $0x78] sm:$0xff] %vm4216, %v4215
        %s4233 = smul.u32 16, %s26
        %p4234 = scmp.lt.s32.totalorder %s4233, 47
        %s4235 = scalar_select %p4234, %s4233, 47
        %s4236 = smul.addr %s4235, 8
        %s4237 = scalar_lea.vmem %s9, %s4236
        // Predicated region
        $region69: #{tpu_custom_call.1} parent=55 // pred_check
          %p4238 = pneg %p238
        $region70: #{tpu_custom_call.1} parent=55 // pred_check_branch
          %4240 = sbr.rel (%p4238) target = $region72
        $region71: #{tpu_custom_call.1} parent=55 // pred_region
          %s4241 = smul.u32 16, %s26
        $region72: #{tpu_custom_call.1} parent=55 // pred_fallthru
          _
      $region56: #{tpu_custom_call.1} parent=5 // pred_fallthru
        _
      %p4242 = scmp.le.s32.totalorder 2, %s21
      // Predicated region
      $region73: #{tpu_custom_call.1} parent=5 // pred_check
        %p4243 = pneg %p4242
      $region74: #{tpu_custom_call.1} parent=5 // pred_check_branch
        %4245 = sbr.rel (%p4243) target = $region76
      $region75: #{tpu_custom_call.1} parent=5 // pred_region
        %s4246 = ssub.s32 %s21, 2
        // Predicated region
        $region77: #{tpu_custom_call.1} parent=75 // pred_check
          %p4247 = pneg %p244
        $region78: #{tpu_custom_call.1} parent=75 // pred_check_branch
          %4249 = sbr.rel (%p4247) target = $region80
        $region79: #{tpu_custom_call.1} parent=75 // pred_region
          %s4250 = smul.u32 16, %s27
          %p4251 = scmp.lt.s32.totalorder %s4250, 47
          %s4252 = scalar_select %p4251, %s4250, 47
          %s4253 = smul.addr %s4252, 8
          %s4254 = scalar_lea.vmem %s9, %s4253
        $region80: #{tpu_custom_call.1} parent=75 // pred_fallthru
          _
      $region76: #{tpu_custom_call.1} parent=5 // pred_fallthru
        _
    $region6: #{tpu_custom_call.1} parent=1 // loop_footer
      %s25 = sadd.s32 1, %s21
    $region7: #{tpu_custom_call.1} parent=1 // loop_footer_branch
      %20 = sbr.rel target = $region3
    $region8: #{tpu_custom_call.1} parent=1 // loop_exit
      _
    %4255 = vsyncpa [#allocation4], 1
    %s4256 = scalar_lea.sflag [#allocation4], 1
    %4257 = vsyncpa %s4256, 1
    %4258 = vsyncpa [#allocation6], 1

</llo_original>
